<compile_context>
chip_gen: v7x
topology: tpu7x:2x2x1
jax: 0.10.0
libtpu: 0.0.40
codegen_flags: <defaults>
</compile_context>

<pallas_src>
import functools

import jax
import jax.numpy as jnp
from jax import lax
from jax.experimental import pallas as pl
from jax.experimental.pallas import tpu as pltpu


def _elu(x):
    # ELU(alpha=1); clamp the exp argument so the unselected branch stays finite.
    return jnp.where(x > 0, x, jnp.exp(jnp.minimum(x, 0.0)) - 1.0)


def _round_up(x, m):
    return ((x + m - 1) // m) * m


# ------------------------------ kernel ------------------------------

def _tcn_kernel(x_ref, w_ref, b_ref, o_ref, s_ref, r_ref, *,
                level_cfgs, k, cmax, cin_pad, c_out_pad, Bc, Tp, M, W, Sp):
    """One batch chunk (Bc sequences) through the whole TCN stack.

    x_ref : (Bc, cin_pad, Tp)     bf16 input chunk (data starts at lane 0)
    w_ref : (n_taps, cmax, cmax)  bf16 BN-folded conv weights, tap-major
    b_ref : (cmax, n_bias)        f32  BN shifts / downsample biases (columns)
    o_ref : (Bc, c_out_pad, Tp)   f32  output chunk
    s_ref : (cmax, M + W)  bf16 scratch: [M-lane causal margin | active window]
    r_ref : (cmax, W)      bf16 scratch holding the residual branch
    """
    f32 = jnp.float32
    bf16 = jnp.bfloat16

    # ---- init: causal-zero margin + padding rows (everything else is overwritten)
    if Bc > 1:
        # Inter-panel margins must start zeroed as well -> clear the whole scratch.
        s_ref[...] = jnp.zeros_like(s_ref)
    else:
        if M:
            s_ref[:, :M] = jnp.zeros((cmax, M), bf16)
        if cin_pad < cmax:
            # Uninitialised VMEM could hold NaN/Inf and 0 * NaN = NaN, so clear
            # the channel-padding rows once (zero weight columns handle the rest).
            s_ref[cin_pad:, M:] = jnp.zeros((cmax - cin_pad, W), bf16)

    # ---- stage the Bc sequences into their lane panels (data at panel lane 0)
    for i in range(Bc):
        s_ref[:cin_pad, M + i * Sp: M + i * Sp + Tp] = x_ref[i]

    # Mask that re-zeroes the inter-panel causal margins.  Only needed when
    # several sequences share the lane axis; for Bc == 1 the single margin sits
    # left of the active window, is never written, and lanes >= T can never
    # reach a valid lane through a causal conv.
    if Bc > 1:
        lane = lax.broadcasted_iota(jnp.int32, (1, W), 1)
        rel = lane - Tp
        in_margin = jnp.logical_and(rel >= 0, rel % Sp < M)
        mask = jnp.where(in_margin, 0.0, 1.0).astype(f32)
    else:
        mask = None

    def conv(w_base, b_col, dilation, pad):
        # Causal dilated conv as k shifted (cmax,cmax)@(cmax,W) MXU matmuls.
        acc = None
        for j in range(k):
            start = M + j * dilation - pad              # static, >= 0
            tap = s_ref[:, start:start + W]             # width-W shifted window
            y = jnp.dot(w_ref[w_base + j], tap, preferred_element_type=f32)
            acc = y if acc is None else acc + y
        return acc + b_ref[:, b_col:b_col + 1]          # BN shift / bias (f32)

    n_levels = len(level_cfgs)
    for li, (dilation, pad, w1b, w2b, wdb, b1c, b2c, bdc) in enumerate(level_cfgs):
        x_cur = s_ref[:, M:M + W]                       # residual input (bf16)
        if wdb is not None:                             # 1x1 conv + bias
            res = jnp.dot(w_ref[wdb], x_cur, preferred_element_type=f32)
            res = res + b_ref[:, bdc:bdc + 1]
            r_ref[...] = res.astype(bf16)
        else:                                           # identity: no matmul
            r_ref[...] = x_cur

        h1 = _elu(conv(w1b, b1c, dilation, pad))
        if mask is not None:
            h1 = h1 * mask
        s_ref[:, M:M + W] = h1.astype(bf16)             # reuse the single scratch

        h2 = _elu(conv(w2b, b2c, dilation, pad))
        act = _elu(h2 + r_ref[...].astype(f32))
        if mask is not None:
            act = act * mask

        if li == n_levels - 1:
            for i in range(Bc):                         # lane-dense f32 writeback
                o_ref[i] = act[:c_out_pad, i * Sp:i * Sp + Tp].astype(o_ref.dtype)
        else:
            s_ref[:, M:M + W] = act.astype(bf16)


# ------------------------------ wrapper ------------------------------

def _prep_params(params, k, cmax):
    """Fold BN scale into conv weights, pad channels to cmax, and pack
    everything into two operands:
      w_all : (n_taps, cmax, cmax)  tap-major conv weights (bf16)
      b_all : (cmax, n_bias)        per-channel shifts/biases as columns (f32)
    """
    w_slabs, b_cols, cfgs = [], [], []
    for i, p in enumerate(params):
        cout, cin, _ = p["w1"].shape
        dilation = 2 ** i
        pad = (k - 1) * dilation
        w1 = (p["w1"] * p["s1"][:, :, None]).astype(jnp.float32)
        w2 = (p["w2"] * p["s2"][:, :, None]).astype(jnp.float32)

        w1b = len(w_slabs)
        for j in range(k):
            w_slabs.append(jnp.zeros((cmax, cmax), jnp.float32)
                           .at[:cout, :cin].set(w1[:, :, j]))
        w2b = len(w_slabs)
        for j in range(k):
            w_slabs.append(jnp.zeros((cmax, cmax), jnp.float32)
                           .at[:cout, :cout].set(w2[:, :, j]))

        b1c = len(b_cols)
        b_cols.append(jnp.zeros((cmax,), jnp.float32).at[:cout].set(p["b1"][:, 0]))
        b2c = len(b_cols)
        b_cols.append(jnp.zeros((cmax,), jnp.float32).at[:cout].set(p["b2"][:, 0]))

        if p["wd"] is not None:
            wdb = len(w_slabs)
            w_slabs.append(jnp.zeros((cmax, cmax), jnp.float32)
                           .at[:cout, :cin].set(p["wd"]))
            bdc = len(b_cols)
            b_cols.append(jnp.zeros((cmax,), jnp.float32).at[:cout].set(p["bd"][:, 0]))
        else:
            wdb, bdc = None, None
        cfgs.append((dilation, pad, w1b, w2b, wdb, b1c, b2c, bdc))

    w_all = jnp.stack(w_slabs).astype(jnp.bfloat16)      # (n_taps, cmax, cmax)
    b_all = jnp.stack(b_cols, axis=1)                    # (cmax, n_bias) f32
    return w_all, b_all, tuple(cfgs)


def temporal_conv_net(x, params, *, kernel_size, batch_chunk=None):
    """Fused TCN forward.  x: (B, Cin, T) float32 -> (B, Cout_last, T) float32."""
    B, cin0, T = x.shape
    k = kernel_size
    n_levels = len(params)
    channels = [p["w1"].shape[0] for p in params]
    c_last = channels[-1]

    cmax = _round_up(max([cin0] + channels), 8)
    cin_pad = _round_up(cin0, 8)
    c_out_pad = _round_up(c_last, 8)
    P = (k - 1) * (2 ** (n_levels - 1))                  # max causal pad
    M = _round_up(P, 128) if P > 0 else 0                # 128-aligned left margin
    Tp = _round_up(T, 128)                               # lane-dense data width

    # Sequences folded into the lane dim per grid step; keep >= 2 chunks so
    # the v7x megacore still has independent work.
    Bc = batch_chunk if batch_chunk is not None else max(1, B // 2)
    num_chunks = pl.cdiv(B, Bc)
    Bp = num_chunks * Bc
    Sp = Tp + M                                          # panel stride (Bc > 1)
    W = Tp + (Bc - 1) * Sp                               # active window width

    w_all, b_all, cfgs = _prep_params(params, k, cmax)

    # Minimal host padding: channels to a sublane multiple, time to a lane
    # multiple, batch to whole chunks; cast to bf16 (halves input DMA bytes).
    xp = jnp.pad(x, ((0, Bp - B), (0, cin_pad - cin0), (0, Tp - T))).astype(jnp.bfloat16)

    kernel = functools.partial(
        _tcn_kernel, level_cfgs=cfgs, k=k, cmax=cmax, cin_pad=cin_pad,
        c_out_pad=c_out_pad, Bc=Bc, Tp=Tp, M=M, W=W, Sp=Sp)

    # Cost / VMEM bookkeeping for the scheduler.
    n_taps = int(w_all.shape[0])
    out_bytes = Bp * c_out_pad * Tp * 4
    flops = 2 * cmax * cmax * W * n_taps * num_chunks
    transc = 3 * n_levels * cmax * W * num_chunks
    bytes_accessed = int(xp.size * 2 + w_all.size * 2 + b_all.size * 4 + out_bytes)
    scratch_bytes = cmax * (M + W) * 2 + cmax * W * 2
    block_bytes = (2 * Bc * cin_pad * Tp * 2 + 2 * Bc * c_out_pad * Tp * 4
                   + 2 * w_all.size * 2 + 2 * b_all.size * 4)
    vmem_limit = int(min(64 * 2 ** 20,
                         max(32 * 2 ** 20, 2 * (scratch_bytes + block_bytes))))

    def build(single_buffer):
        if single_buffer:
            # Constant-index operands: a second pipeline buffer is pure waste.
            w_spec = pl.BlockSpec(tuple(w_all.shape), lambda b: (0, 0, 0),
                                  pipeline_mode=pl.Buffered(1))
            b_spec = pl.BlockSpec(tuple(b_all.shape), lambda b: (0, 0),
                                  pipeline_mode=pl.Buffered(1))
        else:
            w_spec = pl.BlockSpec(tuple(w_all.shape), lambda b: (0, 0, 0))
            b_spec = pl.BlockSpec(tuple(b_all.shape), lambda b: (0, 0))

        grid_spec = pltpu.PrefetchScalarGridSpec(
            num_scalar_prefetch=0,
            grid=(num_chunks,),
            in_specs=[pl.BlockSpec((Bc, cin_pad, Tp), lambda b: (b, 0, 0)),
                      w_spec, b_spec],
            out_specs=pl.BlockSpec((Bc, c_out_pad, Tp), lambda b: (b, 0, 0)),
            scratch_shapes=[pltpu.VMEM((cmax, M + W), jnp.bfloat16),
                            pltpu.VMEM((cmax, W), jnp.bfloat16)],
        )
        return pl.pallas_call(
            kernel,
            out_shape=jax.ShapeDtypeStruct((Bp, c_out_pad, Tp), jnp.float32),
            grid_spec=grid_spec,
            compiler_params=pltpu.CompilerParams(
                dimension_semantics=("parallel",),
                vmem_limit_bytes=vmem_limit),
            cost_estimate=pl.CostEstimate(
                flops=int(flops), transcendentals=int(transc),
                bytes_accessed=bytes_accessed),
        )

    try:
        out = build(single_buffer=True)(xp, w_all, b_all)
    except Exception:
        # Fallback for jax versions without BlockSpec.pipeline_mode / pl.Buffered.
        out = build(single_buffer=False)(xp, w_all, b_all)

    return out[:B, :c_last, :T]


# ------------------------ parameter construction ------------------------

def init_params(key, num_inputs, num_channels, kernel_size):
    """Deterministic synthetic weights matching the PyTorch module's shapes."""
    eps = 1e-5
    params = []
    in_ch = num_inputs
    for i, out_ch in enumerate(num_channels):
        keys = jax.random.split(jax.random.fold_in(key, i), 12)
        w1 = 0.3 * jax.random.normal(keys[0], (out_ch, in_ch, kernel_size), jnp.float32)
        w2 = 0.3 * jax.random.normal(keys[1], (out_ch, out_ch, kernel_size), jnp.float32)
        # BatchNorm1d params + running stats (eval mode), folded to scale/shift.
        g1 = 1.0 + 0.1 * jax.random.normal(keys[2], (out_ch,), jnp.float32)
        be1 = 0.1 * jax.random.normal(keys[3], (out_ch,), jnp.float32)
        rm1 = 0.1 * jax.random.normal(keys[4], (out_ch,), jnp.float32)
        rv1 = 1.0 + 0.1 * jax.random.uniform(keys[5], (out_ch,), jnp.float32)
        g2 = 1.0 + 0.1 * jax.random.normal(keys[6], (out_ch,), jnp.float32)
        be2 = 0.1 * jax.random.normal(keys[7], (out_ch,), jnp.float32)
        rm2 = 0.1 * jax.random.normal(keys[8], (out_ch,), jnp.float32)
        rv2 = 1.0 + 0.1 * jax.random.uniform(keys[9], (out_ch,), jnp.float32)
        s1 = g1 / jnp.sqrt(rv1 + eps)
        b1 = be1 - rm1 * s1
        s2 = g2 / jnp.sqrt(rv2 + eps)
        b2 = be2 - rm2 * s2
        if in_ch != out_ch:     # nn.Conv1d(in, out, 1) with bias
            wd = 0.3 * jax.random.normal(keys[10], (out_ch, in_ch), jnp.float32)
            bd = 0.1 * jax.random.normal(keys[11], (out_ch,), jnp.float32).reshape(out_ch, 1)
        else:                   # identity residual
            wd, bd = None, None
        params.append(dict(
            w1=w1, s1=s1.reshape(out_ch, 1), b1=b1.reshape(out_ch, 1),
            w2=w2, s2=s2.reshape(out_ch, 1), b2=b2.reshape(out_ch, 1),
            wd=wd, bd=bd,
        ))
        in_ch = out_ch
    return params


# ------------------------ pure-JAX references ------------------------

def _ref_causal_conv(x, w, dilation, pad):
    y = lax.conv_general_dilated(
        x, w, window_strides=(1,), padding=[(pad, pad)],
        rhs_dilation=(dilation,), dimension_numbers=("NCH", "OIH", "NCH"))
    return y[:, :, :x.shape[2]]          # Chomp1d


def ref_temporal_conv_net(x, params, *, kernel_size):
    """Full-f32 reference matching the PyTorch module in eval mode."""
    for i, p in enumerate(params):
        d = 2 ** i
        pad = (kernel_size - 1) * d
        h1 = _elu(_ref_causal_conv(x, p["w1"], d, pad) * p["s1"][None] + p["b1"][None])
        h2 = _elu(_ref_causal_conv(h1, p["w2"], d, pad) * p["s2"][None] + p["b2"][None])
        if p["wd"] is None:
            res = x
        else:
            res = jnp.einsum("oi,bit->bot", p["wd"], x) + p["bd"][None]
        x = _elu(h2 + res)
    return x


def ref_temporal_conv_net_bf16(x, params, *, kernel_size):
    """Reference with the same bf16 operand rounding the kernel uses
    (f32 accumulation) — should match the kernel to float32 roundoff."""
    def bf(a):
        return a.astype(jnp.bfloat16).astype(jnp.float32)

    h = bf(x)
    out = h
    for i, p in enumerate(params):
        d = 2 ** i
        pad = (kernel_size - 1) * d
        w1 = bf(p["w1"] * p["s1"][:, :, None])
        w2 = bf(p["w2"] * p["s2"][:, :, None])
        h1 = bf(_elu(_ref_causal_conv(h, w1, d, pad) + p["b1"][None]))
        h2 = _elu(_ref_causal_conv(h1, w2, d, pad) + p["b2"][None])
        if p["wd"] is None:
            res = h
        else:
            res = bf(jnp.einsum("oi,bit->bot", bf(p["wd"]), h) + p["bd"][None])
        out = _elu(h2 + res)          # last level: kernel writes this unrounded
        h = bf(out)
    return out


# ------------------------ main ------------------------

if __name__ == "__main__":
    B, num_inputs, T = 2, 4, 32
    num_channels = (8, 8, 16)      # level dilations: 1, 2, 4
    kernel_size = 2

    key = jax.random.PRNGKey(0)
    kx, kp = jax.random.split(key)
    x = jax.random.normal(kx, (B, num_inputs, T), jnp.float32)
    params = init_params(kp, num_inputs, num_channels, kernel_size)

    out = temporal_conv_net(x, params, kernel_size=kernel_size)
    out = jax.block_until_ready(out)
    assert out.shape == (B, num_channels[-1], T)

    # Structural check: reference with identical bf16 operand rounding
    # (kernel accumulates in f32, so agreement should be ~f32 roundoff).
    ref_q = ref_temporal_conv_net_bf16(x, params, kernel_size=kernel_size)
    assert jnp.allclose(out, ref_q, atol=1e-3, rtol=1e-3), "mismatch vs bf16-matched reference"

    # Sanity check against the full-f32 module semantics (bf16 MXU operands
    # => relaxed tolerance, as flagged in the performance review).
    ref = ref_temporal_conv_net(x, params, kernel_size=kernel_size)
    assert jnp.allclose(out, ref, atol=1e-1, rtol=1e-1), "mismatch vs f32 reference"

    # TODO(synk): Dropout is identity (inference); training-mode dropout / BN
    # batch statistics / WeightNorm renorm are not part of this kernel.
    print("KERNEL_OK")
</pallas_src>

<mosaic_0001>
module attributes {stable_mosaic.version = 11 : i64} {
  func.func @_tcn_kernel(%arg0: i32, %arg1: memref<1x8x128xbf16, #tpu.memory_space<vmem>>, %arg2: memref<14x16x16xbf16, #tpu.memory_space<vmem>>, %arg3: memref<16x8xf32, #tpu.memory_space<vmem>>, %arg4: memref<1x16x128xf32, #tpu.memory_space<vmem>>, %arg5: memref<16x256xbf16, #tpu.memory_space<vmem>>, %arg6: memref<16x128xbf16, #tpu.memory_space<vmem>>) attributes {dimension_semantics = [#tpu.dimension_semantics<parallel>], iteration_bounds = array<i64: 2>, scalar_prefetch = 0 : i64, scratch_operands = 2 : i64, tpu.core_type = #tpu.core_type<tc>, window_params = [{transform_indices = @transform_0, window_bounds = array<i64: 1, 8, 128>}, {pipeline_mode = #tpu.pipeline_mode<synchronous>, transform_indices = @transform_1, window_bounds = array<i64: 14, 16, 16>}, {pipeline_mode = #tpu.pipeline_mode<synchronous>, transform_indices = @transform_2, window_bounds = array<i64: 16, 8>}, {transform_indices = @transform_3, window_bounds = array<i64: 1, 16, 128>}]} {
    %cst = arith.constant 0.000000e+00 : bf16
    %0 = vector.broadcast %cst : bf16 to vector<16x128xbf16>
    %c0 = arith.constant 0 : index
    %c0_0 = arith.constant 0 : index
    %1 = vector.load %arg5[%c0, %c0_0] : memref<16x256xbf16, #tpu.memory_space<vmem>>, vector<16x128xbf16>
    tpu.vector_store %arg5[%c0, %c0_0], %0 {strides = array<i32>} : memref<16x256xbf16, #tpu.memory_space<vmem>>, vector<16x128xbf16>,
    %cst_1 = arith.constant 0.000000e+00 : bf16
    %2 = vector.broadcast %cst_1 : bf16 to vector<8x128xbf16>
    %c8 = arith.constant 8 : index
    %c128 = arith.constant 128 : index
    %3 = vector.load %arg5[%c8, %c128] : memref<16x256xbf16, #tpu.memory_space<vmem>>, vector<8x128xbf16>
    tpu.vector_store %arg5[%c8, %c128], %2 {strides = array<i32>} : memref<16x256xbf16, #tpu.memory_space<vmem>>, vector<8x128xbf16>,
    %c0_2 = arith.constant 0 : index
    %c0_3 = arith.constant 0 : index
    %c0_4 = arith.constant 0 : index
    %4 = vector.load %arg1[%c0_2, %c0_3, %c0_4] : memref<1x8x128xbf16, #tpu.memory_space<vmem>>, vector<1x8x128xbf16>
    %5 = vector.shape_cast %4 : vector<1x8x128xbf16> to vector<8x128xbf16>
    %c0_5 = arith.constant 0 : index
    %c128_6 = arith.constant 128 : index
    %6 = vector.load %arg5[%c0_5, %c128_6] : memref<16x256xbf16, #tpu.memory_space<vmem>>, vector<8x128xbf16>
    tpu.vector_store %arg5[%c0_5, %c128_6], %5 {strides = array<i32>} : memref<16x256xbf16, #tpu.memory_space<vmem>>, vector<8x128xbf16>,
    %c0_7 = arith.constant 0 : index
    %c128_8 = arith.constant 128 : index
    %7 = vector.load %arg5[%c0_7, %c128_8] : memref<16x256xbf16, #tpu.memory_space<vmem>>, vector<16x128xbf16>
    %c4 = arith.constant 4 : index
    %c0_9 = arith.constant 0 : index
    %c0_10 = arith.constant 0 : index
    %8 = vector.load %arg2[%c4, %c0_9, %c0_10] : memref<14x16x16xbf16, #tpu.memory_space<vmem>>, vector<1x16x16xbf16>
    %9 = vector.shape_cast %8 : vector<1x16x16xbf16> to vector<16x16xbf16>
    %cst_11 = arith.constant dense<0.000000e+00> : vector<16x128xf32>
    %10 = tpu.matmul %9, %7, %cst_11 {dimension_numbers = #tpu.dot_dimension_numbers<[1], [0], [0], [1], [0, 0, 1, 1], [], []>} : vector<16x16xbf16>, vector<16x128xbf16>, vector<16x128xf32> -> vector<16x128xf32>
    %c0_12 = arith.constant 0 : index
    %c2 = arith.constant 2 : index
    %11 = vector.load %arg3[%c0_12, %c2] : memref<16x8xf32, #tpu.memory_space<vmem>>, vector<16x1xf32>
    %12 = vector.broadcast %11 : vector<16x1xf32> to vector<16x128xf32>
    %13 = arith.addf %10, %12 : vector<16x128xf32>
    %14 = arith.truncf %13 : vector<16x128xf32> to vector<16x128xbf16>
    %c0_13 = arith.constant 0 : index
    %c0_14 = arith.constant 0 : index
    %15 = vector.load %arg6[%c0_13, %c0_14] : memref<16x128xbf16, #tpu.memory_space<vmem>>, vector<16x128xbf16>
    tpu.vector_store %arg6[%c0_13, %c0_14], %14 {strides = array<i32>} : memref<16x128xbf16, #tpu.memory_space<vmem>>, vector<16x128xbf16>,
    %c0_15 = arith.constant 0 : index
    %c127 = arith.constant 127 : index
    %16 = vector.load %arg5[%c0_15, %c127] : memref<16x256xbf16, #tpu.memory_space<vmem>>, vector<16x128xbf16>
    %c0_16 = arith.constant 0 : index
    %c0_17 = arith.constant 0 : index
    %c0_18 = arith.constant 0 : index
    %17 = vector.load %arg2[%c0_16, %c0_17, %c0_18] : memref<14x16x16xbf16, #tpu.memory_space<vmem>>, vector<1x16x16xbf16>
    %18 = vector.shape_cast %17 : vector<1x16x16xbf16> to vector<16x16xbf16>
    %cst_19 = arith.constant dense<0.000000e+00> : vector<16x128xf32>
    %19 = tpu.matmul %18, %16, %cst_19 {dimension_numbers = #tpu.dot_dimension_numbers<[1], [0], [0], [1], [0, 0, 1, 1], [], []>} : vector<16x16xbf16>, vector<16x128xbf16>, vector<16x128xf32> -> vector<16x128xf32>
    %c0_20 = arith.constant 0 : index
    %c128_21 = arith.constant 128 : index
    %20 = vector.load %arg5[%c0_20, %c128_21] : memref<16x256xbf16, #tpu.memory_space<vmem>>, vector<16x128xbf16>
    %c1 = arith.constant 1 : index
    %c0_22 = arith.constant 0 : index
    %c0_23 = arith.constant 0 : index
    %21 = vector.load %arg2[%c1, %c0_22, %c0_23] : memref<14x16x16xbf16, #tpu.memory_space<vmem>>, vector<1x16x16xbf16>
    %22 = vector.shape_cast %21 : vector<1x16x16xbf16> to vector<16x16xbf16>
    %cst_24 = arith.constant dense<0.000000e+00> : vector<16x128xf32>
    %23 = tpu.matmul %22, %20, %cst_24 {dimension_numbers = #tpu.dot_dimension_numbers<[1], [0], [0], [1], [0, 0, 1, 1], [], []>} : vector<16x16xbf16>, vector<16x128xbf16>, vector<16x128xf32> -> vector<16x128xf32>
    %24 = arith.addf %19, %23 : vector<16x128xf32>
    %c0_25 = arith.constant 0 : index
    %c0_26 = arith.constant 0 : index
    %25 = vector.load %arg3[%c0_25, %c0_26] : memref<16x8xf32, #tpu.memory_space<vmem>>, vector<16x1xf32>
    %26 = vector.broadcast %25 : vector<16x1xf32> to vector<16x128xf32>
    %27 = arith.addf %24, %26 : vector<16x128xf32>
    %cst_27 = arith.constant 0.000000e+00 : f32
    %28 = vector.broadcast %cst_27 : f32 to vector<16x128xf32>
    %29 = arith.cmpf ogt, %27, %28 : vector<16x128xf32>
    %cst_28 = arith.constant 0.000000e+00 : f32
    %30 = vector.broadcast %cst_28 : f32 to vector<16x128xf32>
    %31 = arith.minimumf %27, %30 : vector<16x128xf32>
    %32 = math.exp %31 : vector<16x128xf32>
    %cst_29 = arith.constant 1.000000e+00 : f32
    %33 = vector.broadcast %cst_29 : f32 to vector<16x128xf32>
    %34 = arith.subf %32, %33 : vector<16x128xf32>
    %35 = arith.select %29, %27, %34 : vector<16x128xi1>, vector<16x128xf32>
    %36 = arith.truncf %35 : vector<16x128xf32> to vector<16x128xbf16>
    %c0_30 = arith.constant 0 : index
    %c128_31 = arith.constant 128 : index
    %37 = vector.load %arg5[%c0_30, %c128_31] : memref<16x256xbf16, #tpu.memory_space<vmem>>, vector<16x128xbf16>
    tpu.vector_store %arg5[%c0_30, %c128_31], %36 {strides = array<i32>} : memref<16x256xbf16, #tpu.memory_space<vmem>>, vector<16x128xbf16>,
    %c0_32 = arith.constant 0 : index
    %c127_33 = arith.constant 127 : index
    %38 = vector.load %arg5[%c0_32, %c127_33] : memref<16x256xbf16, #tpu.memory_space<vmem>>, vector<16x128xbf16>
    %c2_34 = arith.constant 2 : index
    %c0_35 = arith.constant 0 : index
    %c0_36 = arith.constant 0 : index
    %39 = vector.load %arg2[%c2_34, %c0_35, %c0_36] : memref<14x16x16xbf16, #tpu.memory_space<vmem>>, vector<1x16x16xbf16>
    %40 = vector.shape_cast %39 : vector<1x16x16xbf16> to vector<16x16xbf16>
    %cst_37 = arith.constant dense<0.000000e+00> : vector<16x128xf32>
    %41 = tpu.matmul %40, %38, %cst_37 {dimension_numbers = #tpu.dot_dimension_numbers<[1], [0], [0], [1], [0, 0, 1, 1], [], []>} : vector<16x16xbf16>, vector<16x128xbf16>, vector<16x128xf32> -> vector<16x128xf32>
    %c0_38 = arith.constant 0 : index
    %c128_39 = arith.constant 128 : index
    %42 = vector.load %arg5[%c0_38, %c128_39] : memref<16x256xbf16, #tpu.memory_space<vmem>>, vector<16x128xbf16>
    %c3 = arith.constant 3 : index
    %c0_40 = arith.constant 0 : index
    %c0_41 = arith.constant 0 : index
    %43 = vector.load %arg2[%c3, %c0_40, %c0_41] : memref<14x16x16xbf16, #tpu.memory_space<vmem>>, vector<1x16x16xbf16>
    %44 = vector.shape_cast %43 : vector<1x16x16xbf16> to vector<16x16xbf16>
    %cst_42 = arith.constant dense<0.000000e+00> : vector<16x128xf32>
    %45 = tpu.matmul %44, %42, %cst_42 {dimension_numbers = #tpu.dot_dimension_numbers<[1], [0], [0], [1], [0, 0, 1, 1], [], []>} : vector<16x16xbf16>, vector<16x128xbf16>, vector<16x128xf32> -> vector<16x128xf32>
    %46 = arith.addf %41, %45 : vector<16x128xf32>
    %c0_43 = arith.constant 0 : index
    %c1_44 = arith.constant 1 : index
    %47 = vector.load %arg3[%c0_43, %c1_44] : memref<16x8xf32, #tpu.memory_space<vmem>>, vector<16x1xf32>
    %48 = vector.broadcast %47 : vector<16x1xf32> to vector<16x128xf32>
    %49 = arith.addf %46, %48 : vector<16x128xf32>
    %cst_45 = arith.constant 0.000000e+00 : f32
    %50 = vector.broadcast %cst_45 : f32 to vector<16x128xf32>
    %51 = arith.cmpf ogt, %49, %50 : vector<16x128xf32>
    %cst_46 = arith.constant 0.000000e+00 : f32
    %52 = vector.broadcast %cst_46 : f32 to vector<16x128xf32>
    %53 = arith.minimumf %49, %52 : vector<16x128xf32>
    %54 = math.exp %53 : vector<16x128xf32>
    %cst_47 = arith.constant 1.000000e+00 : f32
    %55 = vector.broadcast %cst_47 : f32 to vector<16x128xf32>
    %56 = arith.subf %54, %55 : vector<16x128xf32>
    %57 = arith.select %51, %49, %56 : vector<16x128xi1>, vector<16x128xf32>
    %c0_48 = arith.constant 0 : index
    %c0_49 = arith.constant 0 : index
    %58 = vector.load %arg6[%c0_48, %c0_49] : memref<16x128xbf16, #tpu.memory_space<vmem>>, vector<16x128xbf16>
    %59 = arith.extf %58 : vector<16x128xbf16> to vector<16x128xf32>
    %60 = arith.addf %57, %59 : vector<16x128xf32>
    %cst_50 = arith.constant 0.000000e+00 : f32
    %61 = vector.broadcast %cst_50 : f32 to vector<16x128xf32>
    %62 = arith.cmpf ogt, %60, %61 : vector<16x128xf32>
    %cst_51 = arith.constant 0.000000e+00 : f32
    %63 = vector.broadcast %cst_51 : f32 to vector<16x128xf32>
    %64 = arith.minimumf %60, %63 : vector<16x128xf32>
    %65 = math.exp %64 : vector<16x128xf32>
    %cst_52 = arith.constant 1.000000e+00 : f32
    %66 = vector.broadcast %cst_52 : f32 to vector<16x128xf32>
    %67 = arith.subf %65, %66 : vector<16x128xf32>
    %68 = arith.select %62, %60, %67 : vector<16x128xi1>, vector<16x128xf32>
    %69 = arith.truncf %68 : vector<16x128xf32> to vector<16x128xbf16>
    %c0_53 = arith.constant 0 : index
    %c128_54 = arith.constant 128 : index
    %70 = vector.load %arg5[%c0_53, %c128_54] : memref<16x256xbf16, #tpu.memory_space<vmem>>, vector<16x128xbf16>
    tpu.vector_store %arg5[%c0_53, %c128_54], %69 {strides = array<i32>} : memref<16x256xbf16, #tpu.memory_space<vmem>>, vector<16x128xbf16>,
    %c0_55 = arith.constant 0 : index
    %c128_56 = arith.constant 128 : index
    %71 = vector.load %arg5[%c0_55, %c128_56] : memref<16x256xbf16, #tpu.memory_space<vmem>>, vector<16x128xbf16>
    %c0_57 = arith.constant 0 : index
    %c0_58 = arith.constant 0 : index
    %72 = vector.load %arg6[%c0_57, %c0_58] : memref<16x128xbf16, #tpu.memory_space<vmem>>, vector<16x128xbf16>
    tpu.vector_store %arg6[%c0_57, %c0_58], %71 {strides = array<i32>} : memref<16x128xbf16, #tpu.memory_space<vmem>>, vector<16x128xbf16>,
    %c0_59 = arith.constant 0 : index
    %c126 = arith.constant 126 : index
    %73 = vector.load %arg5[%c0_59, %c126] : memref<16x256xbf16, #tpu.memory_space<vmem>>, vector<16x128xbf16>
    %c5 = arith.constant 5 : index
    %c0_60 = arith.constant 0 : index
    %c0_61 = arith.constant 0 : index
    %74 = vector.load %arg2[%c5, %c0_60, %c0_61] : memref<14x16x16xbf16, #tpu.memory_space<vmem>>, vector<1x16x16xbf16>
    %75 = vector.shape_cast %74 : vector<1x16x16xbf16> to vector<16x16xbf16>
    %cst_62 = arith.constant dense<0.000000e+00> : vector<16x128xf32>
    %76 = tpu.matmul %75, %73, %cst_62 {dimension_numbers = #tpu.dot_dimension_numbers<[1], [0], [0], [1], [0, 0, 1, 1], [], []>} : vector<16x16xbf16>, vector<16x128xbf16>, vector<16x128xf32> -> vector<16x128xf32>
    %c0_63 = arith.constant 0 : index
    %c128_64 = arith.constant 128 : index
    %77 = vector.load %arg5[%c0_63, %c128_64] : memref<16x256xbf16, #tpu.memory_space<vmem>>, vector<16x128xbf16>
    %c6 = arith.constant 6 : index
    %c0_65 = arith.constant 0 : index
    %c0_66 = arith.constant 0 : index
    %78 = vector.load %arg2[%c6, %c0_65, %c0_66] : memref<14x16x16xbf16, #tpu.memory_space<vmem>>, vector<1x16x16xbf16>
    %79 = vector.shape_cast %78 : vector<1x16x16xbf16> to vector<16x16xbf16>
    %cst_67 = arith.constant dense<0.000000e+00> : vector<16x128xf32>
    %80 = tpu.matmul %79, %77, %cst_67 {dimension_numbers = #tpu.dot_dimension_numbers<[1], [0], [0], [1], [0, 0, 1, 1], [], []>} : vector<16x16xbf16>, vector<16x128xbf16>, vector<16x128xf32> -> vector<16x128xf32>
    %81 = arith.addf %76, %80 : vector<16x128xf32>
    %c0_68 = arith.constant 0 : index
    %c3_69 = arith.constant 3 : index
    %82 = vector.load %arg3[%c0_68, %c3_69] : memref<16x8xf32, #tpu.memory_space<vmem>>, vector<16x1xf32>
    %83 = vector.broadcast %82 : vector<16x1xf32> to vector<16x128xf32>
    %84 = arith.addf %81, %83 : vector<16x128xf32>
    %cst_70 = arith.constant 0.000000e+00 : f32
    %85 = vector.broadcast %cst_70 : f32 to vector<16x128xf32>
    %86 = arith.cmpf ogt, %84, %85 : vector<16x128xf32>
    %cst_71 = arith.constant 0.000000e+00 : f32
    %87 = vector.broadcast %cst_71 : f32 to vector<16x128xf32>
    %88 = arith.minimumf %84, %87 : vector<16x128xf32>
    %89 = math.exp %88 : vector<16x128xf32>
    %cst_72 = arith.constant 1.000000e+00 : f32
    %90 = vector.broadcast %cst_72 : f32 to vector<16x128xf32>
    %91 = arith.subf %89, %90 : vector<16x128xf32>
    %92 = arith.select %86, %84, %91 : vector<16x128xi1>, vector<16x128xf32>
    %93 = arith.truncf %92 : vector<16x128xf32> to vector<16x128xbf16>
    %c0_73 = arith.constant 0 : index
    %c128_74 = arith.constant 128 : index
    %94 = vector.load %arg5[%c0_73, %c128_74] : memref<16x256xbf16, #tpu.memory_space<vmem>>, vector<16x128xbf16>
    tpu.vector_store %arg5[%c0_73, %c128_74], %93 {strides = array<i32>} : memref<16x256xbf16, #tpu.memory_space<vmem>>, vector<16x128xbf16>,
    %c0_75 = arith.constant 0 : index
    %c126_76 = arith.constant 126 : index
    %95 = vector.load %arg5[%c0_75, %c126_76] : memref<16x256xbf16, #tpu.memory_space<vmem>>, vector<16x128xbf16>
    %c7 = arith.constant 7 : index
    %c0_77 = arith.constant 0 : index
    %c0_78 = arith.constant 0 : index
    %96 = vector.load %arg2[%c7, %c0_77, %c0_78] : memref<14x16x16xbf16, #tpu.memory_space<vmem>>, vector<1x16x16xbf16>
    %97 = vector.shape_cast %96 : vector<1x16x16xbf16> to vector<16x16xbf16>
    %cst_79 = arith.constant dense<0.000000e+00> : vector<16x128xf32>
    %98 = tpu.matmul %97, %95, %cst_79 {dimension_numbers = #tpu.dot_dimension_numbers<[1], [0], [0], [1], [0, 0, 1, 1], [], []>} : vector<16x16xbf16>, vector<16x128xbf16>, vector<16x128xf32> -> vector<16x128xf32>
    %c0_80 = arith.constant 0 : index
    %c128_81 = arith.constant 128 : index
    %99 = vector.load %arg5[%c0_80, %c128_81] : memref<16x256xbf16, #tpu.memory_space<vmem>>, vector<16x128xbf16>
    %c8_82 = arith.constant 8 : index
    %c0_83 = arith.constant 0 : index
    %c0_84 = arith.constant 0 : index
    %100 = vector.load %arg2[%c8_82, %c0_83, %c0_84] : memref<14x16x16xbf16, #tpu.memory_space<vmem>>, vector<1x16x16xbf16>
    %101 = vector.shape_cast %100 : vector<1x16x16xbf16> to vector<16x16xbf16>
    %cst_85 = arith.constant dense<0.000000e+00> : vector<16x128xf32>
    %102 = tpu.matmul %101, %99, %cst_85 {dimension_numbers = #tpu.dot_dimension_numbers<[1], [0], [0], [1], [0, 0, 1, 1], [], []>} : vector<16x16xbf16>, vector<16x128xbf16>, vector<16x128xf32> -> vector<16x128xf32>
    %103 = arith.addf %98, %102 : vector<16x128xf32>
    %c0_86 = arith.constant 0 : index
    %c4_87 = arith.constant 4 : index
    %104 = vector.load %arg3[%c0_86, %c4_87] : memref<16x8xf32, #tpu.memory_space<vmem>>, vector<16x1xf32>
    %105 = vector.broadcast %104 : vector<16x1xf32> to vector<16x128xf32>
    %106 = arith.addf %103, %105 : vector<16x128xf32>
    %cst_88 = arith.constant 0.000000e+00 : f32
    %107 = vector.broadcast %cst_88 : f32 to vector<16x128xf32>
    %108 = arith.cmpf ogt, %106, %107 : vector<16x128xf32>
    %cst_89 = arith.constant 0.000000e+00 : f32
    %109 = vector.broadcast %cst_89 : f32 to vector<16x128xf32>
    %110 = arith.minimumf %106, %109 : vector<16x128xf32>
    %111 = math.exp %110 : vector<16x128xf32>
    %cst_90 = arith.constant 1.000000e+00 : f32
    %112 = vector.broadcast %cst_90 : f32 to vector<16x128xf32>
    %113 = arith.subf %111, %112 : vector<16x128xf32>
    %114 = arith.select %108, %106, %113 : vector<16x128xi1>, vector<16x128xf32>
    %c0_91 = arith.constant 0 : index
    %c0_92 = arith.constant 0 : index
    %115 = vector.load %arg6[%c0_91, %c0_92] : memref<16x128xbf16, #tpu.memory_space<vmem>>, vector<16x128xbf16>
    %116 = arith.extf %115 : vector<16x128xbf16> to vector<16x128xf32>
    %117 = arith.addf %114, %116 : vector<16x128xf32>
    %cst_93 = arith.constant 0.000000e+00 : f32
    %118 = vector.broadcast %cst_93 : f32 to vector<16x128xf32>
    %119 = arith.cmpf ogt, %117, %118 : vector<16x128xf32>
    %cst_94 = arith.constant 0.000000e+00 : f32
    %120 = vector.broadcast %cst_94 : f32 to vector<16x128xf32>
    %121 = arith.minimumf %117, %120 : vector<16x128xf32>
    %122 = math.exp %121 : vector<16x128xf32>
    %cst_95 = arith.constant 1.000000e+00 : f32
    %123 = vector.broadcast %cst_95 : f32 to vector<16x128xf32>
    %124 = arith.subf %122, %123 : vector<16x128xf32>
    %125 = arith.select %119, %117, %124 : vector<16x128xi1>, vector<16x128xf32>
    %126 = arith.truncf %125 : vector<16x128xf32> to vector<16x128xbf16>
    %c0_96 = arith.constant 0 : index
    %c128_97 = arith.constant 128 : index
    %127 = vector.load %arg5[%c0_96, %c128_97] : memref<16x256xbf16, #tpu.memory_space<vmem>>, vector<16x128xbf16>
    tpu.vector_store %arg5[%c0_96, %c128_97], %126 {strides = array<i32>} : memref<16x256xbf16, #tpu.memory_space<vmem>>, vector<16x128xbf16>,
    %c0_98 = arith.constant 0 : index
    %c128_99 = arith.constant 128 : index
    %128 = vector.load %arg5[%c0_98, %c128_99] : memref<16x256xbf16, #tpu.memory_space<vmem>>, vector<16x128xbf16>
    %c13 = arith.constant 13 : index
    %c0_100 = arith.constant 0 : index
    %c0_101 = arith.constant 0 : index
    %129 = vector.load %arg2[%c13, %c0_100, %c0_101] : memref<14x16x16xbf16, #tpu.memory_space<vmem>>, vector<1x16x16xbf16>
    %130 = vector.shape_cast %129 : vector<1x16x16xbf16> to vector<16x16xbf16>
    %cst_102 = arith.constant dense<0.000000e+00> : vector<16x128xf32>
    %131 = tpu.matmul %130, %128, %cst_102 {dimension_numbers = #tpu.dot_dimension_numbers<[1], [0], [0], [1], [0, 0, 1, 1], [], []>} : vector<16x16xbf16>, vector<16x128xbf16>, vector<16x128xf32> -> vector<16x128xf32>
    %c0_103 = arith.constant 0 : index
    %c7_104 = arith.constant 7 : index
    %132 = vector.load %arg3[%c0_103, %c7_104] : memref<16x8xf32, #tpu.memory_space<vmem>>, vector<16x1xf32>
    %133 = vector.broadcast %132 : vector<16x1xf32> to vector<16x128xf32>
    %134 = arith.addf %131, %133 : vector<16x128xf32>
    %135 = arith.truncf %134 : vector<16x128xf32> to vector<16x128xbf16>
    %c0_105 = arith.constant 0 : index
    %c0_106 = arith.constant 0 : index
    %136 = vector.load %arg6[%c0_105, %c0_106] : memref<16x128xbf16, #tpu.memory_space<vmem>>, vector<16x128xbf16>
    tpu.vector_store %arg6[%c0_105, %c0_106], %135 {strides = array<i32>} : memref<16x128xbf16, #tpu.memory_space<vmem>>, vector<16x128xbf16>,
    %c0_107 = arith.constant 0 : index
    %c124 = arith.constant 124 : index
    %137 = vector.load %arg5[%c0_107, %c124] : memref<16x256xbf16, #tpu.memory_space<vmem>>, vector<16x128xbf16>
    %c9 = arith.constant 9 : index
    %c0_108 = arith.constant 0 : index
    %c0_109 = arith.constant 0 : index
    %138 = vector.load %arg2[%c9, %c0_108, %c0_109] : memref<14x16x16xbf16, #tpu.memory_space<vmem>>, vector<1x16x16xbf16>
    %139 = vector.shape_cast %138 : vector<1x16x16xbf16> to vector<16x16xbf16>
    %cst_110 = arith.constant dense<0.000000e+00> : vector<16x128xf32>
    %140 = tpu.matmul %139, %137, %cst_110 {dimension_numbers = #tpu.dot_dimension_numbers<[1], [0], [0], [1], [0, 0, 1, 1], [], []>} : vector<16x16xbf16>, vector<16x128xbf16>, vector<16x128xf32> -> vector<16x128xf32>
    %c0_111 = arith.constant 0 : index
    %c128_112 = arith.constant 128 : index
    %141 = vector.load %arg5[%c0_111, %c128_112] : memref<16x256xbf16, #tpu.memory_space<vmem>>, vector<16x128xbf16>
    %c10 = arith.constant 10 : index
    %c0_113 = arith.constant 0 : index
    %c0_114 = arith.constant 0 : index
    %142 = vector.load %arg2[%c10, %c0_113, %c0_114] : memref<14x16x16xbf16, #tpu.memory_space<vmem>>, vector<1x16x16xbf16>
    %143 = vector.shape_cast %142 : vector<1x16x16xbf16> to vector<16x16xbf16>
    %cst_115 = arith.constant dense<0.000000e+00> : vector<16x128xf32>
    %144 = tpu.matmul %143, %141, %cst_115 {dimension_numbers = #tpu.dot_dimension_numbers<[1], [0], [0], [1], [0, 0, 1, 1], [], []>} : vector<16x16xbf16>, vector<16x128xbf16>, vector<16x128xf32> -> vector<16x128xf32>
    %145 = arith.addf %140, %144 : vector<16x128xf32>
    %c0_116 = arith.constant 0 : index
    %c5_117 = arith.constant 5 : index
    %146 = vector.load %arg3[%c0_116, %c5_117] : memref<16x8xf32, #tpu.memory_space<vmem>>, vector<16x1xf32>
    %147 = vector.broadcast %146 : vector<16x1xf32> to vector<16x128xf32>
    %148 = arith.addf %145, %147 : vector<16x128xf32>
    %cst_118 = arith.constant 0.000000e+00 : f32
    %149 = vector.broadcast %cst_118 : f32 to vector<16x128xf32>
    %150 = arith.cmpf ogt, %148, %149 : vector<16x128xf32>
    %cst_119 = arith.constant 0.000000e+00 : f32
    %151 = vector.broadcast %cst_119 : f32 to vector<16x128xf32>
    %152 = arith.minimumf %148, %151 : vector<16x128xf32>
    %153 = math.exp %152 : vector<16x128xf32>
    %cst_120 = arith.constant 1.000000e+00 : f32
    %154 = vector.broadcast %cst_120 : f32 to vector<16x128xf32>
    %155 = arith.subf %153, %154 : vector<16x128xf32>
    %156 = arith.select %150, %148, %155 : vector<16x128xi1>, vector<16x128xf32>
    %157 = arith.truncf %156 : vector<16x128xf32> to vector<16x128xbf16>
    %c0_121 = arith.constant 0 : index
    %c128_122 = arith.constant 128 : index
    %158 = vector.load %arg5[%c0_121, %c128_122] : memref<16x256xbf16, #tpu.memory_space<vmem>>, vector<16x128xbf16>
    tpu.vector_store %arg5[%c0_121, %c128_122], %157 {strides = array<i32>} : memref<16x256xbf16, #tpu.memory_space<vmem>>, vector<16x128xbf16>,
    %c0_123 = arith.constant 0 : index
    %c124_124 = arith.constant 124 : index
    %159 = vector.load %arg5[%c0_123, %c124_124] : memref<16x256xbf16, #tpu.memory_space<vmem>>, vector<16x128xbf16>
    %c11 = arith.constant 11 : index
    %c0_125 = arith.constant 0 : index
    %c0_126 = arith.constant 0 : index
    %160 = vector.load %arg2[%c11, %c0_125, %c0_126] : memref<14x16x16xbf16, #tpu.memory_space<vmem>>, vector<1x16x16xbf16>
    %161 = vector.shape_cast %160 : vector<1x16x16xbf16> to vector<16x16xbf16>
    %cst_127 = arith.constant dense<0.000000e+00> : vector<16x128xf32>
    %162 = tpu.matmul %161, %159, %cst_127 {dimension_numbers = #tpu.dot_dimension_numbers<[1], [0], [0], [1], [0, 0, 1, 1], [], []>} : vector<16x16xbf16>, vector<16x128xbf16>, vector<16x128xf32> -> vector<16x128xf32>
    %c0_128 = arith.constant 0 : index
    %c128_129 = arith.constant 128 : index
    %163 = vector.load %arg5[%c0_128, %c128_129] : memref<16x256xbf16, #tpu.memory_space<vmem>>, vector<16x128xbf16>
    %c12 = arith.constant 12 : index
    %c0_130 = arith.constant 0 : index
    %c0_131 = arith.constant 0 : index
    %164 = vector.load %arg2[%c12, %c0_130, %c0_131] : memref<14x16x16xbf16, #tpu.memory_space<vmem>>, vector<1x16x16xbf16>
    %165 = vector.shape_cast %164 : vector<1x16x16xbf16> to vector<16x16xbf16>
    %cst_132 = arith.constant dense<0.000000e+00> : vector<16x128xf32>
    %166 = tpu.matmul %165, %163, %cst_132 {dimension_numbers = #tpu.dot_dimension_numbers<[1], [0], [0], [1], [0, 0, 1, 1], [], []>} : vector<16x16xbf16>, vector<16x128xbf16>, vector<16x128xf32> -> vector<16x128xf32>
    %167 = arith.addf %162, %166 : vector<16x128xf32>
    %c0_133 = arith.constant 0 : index
    %c6_134 = arith.constant 6 : index
    %168 = vector.load %arg3[%c0_133, %c6_134] : memref<16x8xf32, #tpu.memory_space<vmem>>, vector<16x1xf32>
    %169 = vector.broadcast %168 : vector<16x1xf32> to vector<16x128xf32>
    %170 = arith.addf %167, %169 : vector<16x128xf32>
    %cst_135 = arith.constant 0.000000e+00 : f32
    %171 = vector.broadcast %cst_135 : f32 to vector<16x128xf32>
    %172 = arith.cmpf ogt, %170, %171 : vector<16x128xf32>
    %cst_136 = arith.constant 0.000000e+00 : f32
    %173 = vector.broadcast %cst_136 : f32 to vector<16x128xf32>
    %174 = arith.minimumf %170, %173 : vector<16x128xf32>
    %175 = math.exp %174 : vector<16x128xf32>
    %cst_137 = arith.constant 1.000000e+00 : f32
    %176 = vector.broadcast %cst_137 : f32 to vector<16x128xf32>
    %177 = arith.subf %175, %176 : vector<16x128xf32>
    %178 = arith.select %172, %170, %177 : vector<16x128xi1>, vector<16x128xf32>
    %c0_138 = arith.constant 0 : index
    %c0_139 = arith.constant 0 : index
    %179 = vector.load %arg6[%c0_138, %c0_139] : memref<16x128xbf16, #tpu.memory_space<vmem>>, vector<16x128xbf16>
    %180 = arith.extf %179 : vector<16x128xbf16> to vector<16x128xf32>
    %181 = arith.addf %178, %180 : vector<16x128xf32>
    %cst_140 = arith.constant 0.000000e+00 : f32
    %182 = vector.broadcast %cst_140 : f32 to vector<16x128xf32>
    %183 = arith.cmpf ogt, %181, %182 : vector<16x128xf32>
    %cst_141 = arith.constant 0.000000e+00 : f32
    %184 = vector.broadcast %cst_141 : f32 to vector<16x128xf32>
    %185 = arith.minimumf %181, %184 : vector<16x128xf32>
    %186 = math.exp %185 : vector<16x128xf32>
    %cst_142 = arith.constant 1.000000e+00 : f32
    %187 = vector.broadcast %cst_142 : f32 to vector<16x128xf32>
    %188 = arith.subf %186, %187 : vector<16x128xf32>
    %189 = arith.select %183, %181, %188 : vector<16x128xi1>, vector<16x128xf32>
    %c0_143 = arith.constant 0 : index
    %c0_144 = arith.constant 0 : index
    %c0_145 = arith.constant 0 : index
    %190 = vector.load %arg4[%c0_143, %c0_144, %c0_145] : memref<1x16x128xf32, #tpu.memory_space<vmem>>, vector<1x16x128xf32>
    %191 = vector.shape_cast %190 : vector<1x16x128xf32> to vector<16x128xf32>
    %192 = vector.shape_cast %189 : vector<16x128xf32> to vector<1x16x128xf32>
    tpu.vector_store %arg4[%c0_143, %c0_144, %c0_145], %192 {strides = array<i32>} : memref<1x16x128xf32, #tpu.memory_space<vmem>>, vector<1x16x128xf32>,
    return
  }
  func.func @transform_0(%arg0: i32) -> (i32, i32, i32) {
    %c0_i32 = arith.constant 0 : i32
    %c0_i32_0 = arith.constant 0 : i32
    %c0_i32_1 = arith.constant 0 : i32
    return %arg0, %c0_i32, %c0_i32_0 : i32, i32, i32
  }
  func.func @transform_1(%arg0: i32) -> (i32, i32, i32) {
    %c0_i32 = arith.constant 0 : i32
    %c0_i32_0 = arith.constant 0 : i32
    %c0_i32_1 = arith.constant 0 : i32
    %c0_i32_2 = arith.constant 0 : i32
    return %c0_i32, %c0_i32_0, %c0_i32_1 : i32, i32, i32
  }
  func.func @transform_2(%arg0: i32) -> (i32, i32) {
    %c0_i32 = arith.constant 0 : i32
    %c0_i32_0 = arith.constant 0 : i32
    %c0_i32_1 = arith.constant 0 : i32
    return %c0_i32, %c0_i32_0 : i32, i32
  }
  func.func @transform_3(%arg0: i32) -> (i32, i32, i32) {
    %c0_i32 = arith.constant 0 : i32
    %c0_i32_0 = arith.constant 0 : i32
    %c0_i32_1 = arith.constant 0 : i32
    return %arg0, %c0_i32, %c0_i32_0 : i32, i32, i32
  }
}

module attributes {stable_mosaic.version = 11 : i64} {
  func.func @_tcn_kernel(%arg0: i32, %arg1: memref<1x8x128xbf16, #tpu.memory_space<vmem>>, %arg2: memref<14x16x16xbf16, #tpu.memory_space<vmem>>, %arg3: memref<16x8xf32, #tpu.memory_space<vmem>>, %arg4: memref<1x16x128xf32, #tpu.memory_space<vmem>>, %arg5: memref<16x256xbf16, #tpu.memory_space<vmem>>, %arg6: memref<16x128xbf16, #tpu.memory_space<vmem>>) attributes {dimension_semantics = [#tpu.dimension_semantics<parallel>], iteration_bounds = array<i64: 2>, scalar_prefetch = 0 : i64, scratch_operands = 2 : i64, tpu.core_type = #tpu.core_type<tc>, window_params = [{transform_indices = @transform_0, window_bounds = array<i64: 1, 8, 128>}, {pipeline_mode = #tpu.pipeline_mode<synchronous>, transform_indices = @transform_1, window_bounds = array<i64: 14, 16, 16>}, {pipeline_mode = #tpu.pipeline_mode<synchronous>, transform_indices = @transform_2, window_bounds = array<i64: 16, 8>}, {transform_indices = @transform_3, window_bounds = array<i64: 1, 16, 128>}]} {
    %cst = arith.constant 0.000000e+00 : bf16
    %0 = vector.broadcast %cst : bf16 to vector<16x128xbf16>
    %c0 = arith.constant 0 : index
    %c0_0 = arith.constant 0 : index
    %1 = vector.load %arg5[%c0, %c0_0] : memref<16x256xbf16, #tpu.memory_space<vmem>>, vector<16x128xbf16>
    tpu.vector_store %arg5[%c0, %c0_0], %0 {strides = array<i32>} : memref<16x256xbf16, #tpu.memory_space<vmem>>, vector<16x128xbf16>,
    %cst_1 = arith.constant 0.000000e+00 : bf16
    %2 = vector.broadcast %cst_1 : bf16 to vector<8x128xbf16>
    %c8 = arith.constant 8 : index
    %c128 = arith.constant 128 : index
    %3 = vector.load %arg5[%c8, %c128] : memref<16x256xbf16, #tpu.memory_space<vmem>>, vector<8x128xbf16>
    tpu.vector_store %arg5[%c8, %c128], %2 {strides = array<i32>} : memref<16x256xbf16, #tpu.memory_space<vmem>>, vector<8x128xbf16>,
    %c0_2 = arith.constant 0 : index
    %c0_3 = arith.constant 0 : index
    %c0_4 = arith.constant 0 : index
    %4 = vector.load %arg1[%c0_2, %c0_3, %c0_4] : memref<1x8x128xbf16, #tpu.memory_space<vmem>>, vector<1x8x128xbf16>
    %5 = vector.shape_cast %4 : vector<1x8x128xbf16> to vector<8x128xbf16>
    %c0_5 = arith.constant 0 : index
    %c128_6 = arith.constant 128 : index
    %6 = vector.load %arg5[%c0_5, %c128_6] : memref<16x256xbf16, #tpu.memory_space<vmem>>, vector<8x128xbf16>
    tpu.vector_store %arg5[%c0_5, %c128_6], %5 {strides = array<i32>} : memref<16x256xbf16, #tpu.memory_space<vmem>>, vector<8x128xbf16>,
    %c0_7 = arith.constant 0 : index
    %c128_8 = arith.constant 128 : index
    %7 = vector.load %arg5[%c0_7, %c128_8] : memref<16x256xbf16, #tpu.memory_space<vmem>>, vector<16x128xbf16>
    %c4 = arith.constant 4 : index
    %c0_9 = arith.constant 0 : index
    %c0_10 = arith.constant 0 : index
    %8 = vector.load %arg2[%c4, %c0_9, %c0_10] : memref<14x16x16xbf16, #tpu.memory_space<vmem>>, vector<1x16x16xbf16>
    %9 = vector.shape_cast %8 : vector<1x16x16xbf16> to vector<16x16xbf16>
    %cst_11 = arith.constant dense<0.000000e+00> : vector<16x128xf32>
    %10 = tpu.matmul %9, %7, %cst_11 {dimension_numbers = #tpu.dot_dimension_numbers<[1], [0], [0], [1], [0, 0, 1, 1], [], []>} : vector<16x16xbf16>, vector<16x128xbf16>, vector<16x128xf32> -> vector<16x128xf32>
    %c0_12 = arith.constant 0 : index
    %c2 = arith.constant 2 : index
    %11 = vector.load %arg3[%c0_12, %c2] : memref<16x8xf32, #tpu.memory_space<vmem>>, vector<16x1xf32>
    %12 = vector.broadcast %11 : vector<16x1xf32> to vector<16x128xf32>
    %13 = arith.addf %10, %12 : vector<16x128xf32>
    %14 = arith.truncf %13 : vector<16x128xf32> to vector<16x128xbf16>
    %c0_13 = arith.constant 0 : index
    %c0_14 = arith.constant 0 : index
    %15 = vector.load %arg6[%c0_13, %c0_14] : memref<16x128xbf16, #tpu.memory_space<vmem>>, vector<16x128xbf16>
    tpu.vector_store %arg6[%c0_13, %c0_14], %14 {strides = array<i32>} : memref<16x128xbf16, #tpu.memory_space<vmem>>, vector<16x128xbf16>,
    %c0_15 = arith.constant 0 : index
    %c127 = arith.constant 127 : index
    %16 = vector.load %arg5[%c0_15, %c127] : memref<16x256xbf16, #tpu.memory_space<vmem>>, vector<16x128xbf16>
    %c0_16 = arith.constant 0 : index
    %c0_17 = arith.constant 0 : index
    %c0_18 = arith.constant 0 : index
    %17 = vector.load %arg2[%c0_16, %c0_17, %c0_18] : memref<14x16x16xbf16, #tpu.memory_space<vmem>>, vector<1x16x16xbf16>
    %18 = vector.shape_cast %17 : vector<1x16x16xbf16> to vector<16x16xbf16>
    %cst_19 = arith.constant dense<0.000000e+00> : vector<16x128xf32>
    %19 = tpu.matmul %18, %16, %cst_19 {dimension_numbers = #tpu.dot_dimension_numbers<[1], [0], [0], [1], [0, 0, 1, 1], [], []>} : vector<16x16xbf16>, vector<16x128xbf16>, vector<16x128xf32> -> vector<16x128xf32>
    %c0_20 = arith.constant 0 : index
    %c128_21 = arith.constant 128 : index
    %20 = vector.load %arg5[%c0_20, %c128_21] : memref<16x256xbf16, #tpu.memory_space<vmem>>, vector<16x128xbf16>
    %c1 = arith.constant 1 : index
    %c0_22 = arith.constant 0 : index
    %c0_23 = arith.constant 0 : index
    %21 = vector.load %arg2[%c1, %c0_22, %c0_23] : memref<14x16x16xbf16, #tpu.memory_space<vmem>>, vector<1x16x16xbf16>
    %22 = vector.shape_cast %21 : vector<1x16x16xbf16> to vector<16x16xbf16>
    %cst_24 = arith.constant dense<0.000000e+00> : vector<16x128xf32>
    %23 = tpu.matmul %22, %20, %cst_24 {dimension_numbers = #tpu.dot_dimension_numbers<[1], [0], [0], [1], [0, 0, 1, 1], [], []>} : vector<16x16xbf16>, vector<16x128xbf16>, vector<16x128xf32> -> vector<16x128xf32>
    %24 = arith.addf %19, %23 : vector<16x128xf32>
    %c0_25 = arith.constant 0 : index
    %c0_26 = arith.constant 0 : index
    %25 = vector.load %arg3[%c0_25, %c0_26] : memref<16x8xf32, #tpu.memory_space<vmem>>, vector<16x1xf32>
    %26 = vector.broadcast %25 : vector<16x1xf32> to vector<16x128xf32>
    %27 = arith.addf %24, %26 : vector<16x128xf32>
    %cst_27 = arith.constant 0.000000e+00 : f32
    %28 = vector.broadcast %cst_27 : f32 to vector<16x128xf32>
    %29 = arith.cmpf ogt, %27, %28 : vector<16x128xf32>
    %cst_28 = arith.constant 0.000000e+00 : f32
    %30 = vector.broadcast %cst_28 : f32 to vector<16x128xf32>
    %31 = arith.minimumf %27, %30 : vector<16x128xf32>
    %32 = math.exp %31 : vector<16x128xf32>
    %cst_29 = arith.constant 1.000000e+00 : f32
    %33 = vector.broadcast %cst_29 : f32 to vector<16x128xf32>
    %34 = arith.subf %32, %33 : vector<16x128xf32>
    %35 = arith.select %29, %27, %34 : vector<16x128xi1>, vector<16x128xf32>
    %36 = arith.truncf %35 : vector<16x128xf32> to vector<16x128xbf16>
    %c0_30 = arith.constant 0 : index
    %c128_31 = arith.constant 128 : index
    %37 = vector.load %arg5[%c0_30, %c128_31] : memref<16x256xbf16, #tpu.memory_space<vmem>>, vector<16x128xbf16>
    tpu.vector_store %arg5[%c0_30, %c128_31], %36 {strides = array<i32>} : memref<16x256xbf16, #tpu.memory_space<vmem>>, vector<16x128xbf16>,
    %c0_32 = arith.constant 0 : index
    %c127_33 = arith.constant 127 : index
    %38 = vector.load %arg5[%c0_32, %c127_33] : memref<16x256xbf16, #tpu.memory_space<vmem>>, vector<16x128xbf16>
    %c2_34 = arith.constant 2 : index
    %c0_35 = arith.constant 0 : index
    %c0_36 = arith.constant 0 : index
    %39 = vector.load %arg2[%c2_34, %c0_35, %c0_36] : memref<14x16x16xbf16, #tpu.memory_space<vmem>>, vector<1x16x16xbf16>
    %40 = vector.shape_cast %39 : vector<1x16x16xbf16> to vector<16x16xbf16>
    %cst_37 = arith.constant dense<0.000000e+00> : vector<16x128xf32>
    %41 = tpu.matmul %40, %38, %cst_37 {dimension_numbers = #tpu.dot_dimension_numbers<[1], [0], [0], [1], [0, 0, 1, 1], [], []>} : vector<16x16xbf16>, vector<16x128xbf16>, vector<16x128xf32> -> vector<16x128xf32>
    %c0_38 = arith.constant 0 : index
    %c128_39 = arith.constant 128 : index
    %42 = vector.load %arg5[%c0_38, %c128_39] : memref<16x256xbf16, #tpu.memory_space<vmem>>, vector<16x128xbf16>
    %c3 = arith.constant 3 : index
    %c0_40 = arith.constant 0 : index
    %c0_41 = arith.constant 0 : index
    %43 = vector.load %arg2[%c3, %c0_40, %c0_41] : memref<14x16x16xbf16, #tpu.memory_space<vmem>>, vector<1x16x16xbf16>
    %44 = vector.shape_cast %43 : vector<1x16x16xbf16> to vector<16x16xbf16>
    %cst_42 = arith.constant dense<0.000000e+00> : vector<16x128xf32>
    %45 = tpu.matmul %44, %42, %cst_42 {dimension_numbers = #tpu.dot_dimension_numbers<[1], [0], [0], [1], [0, 0, 1, 1], [], []>} : vector<16x16xbf16>, vector<16x128xbf16>, vector<16x128xf32> -> vector<16x128xf32>
    %46 = arith.addf %41, %45 : vector<16x128xf32>
    %c0_43 = arith.constant 0 : index
    %c1_44 = arith.constant 1 : index
    %47 = vector.load %arg3[%c0_43, %c1_44] : memref<16x8xf32, #tpu.memory_space<vmem>>, vector<16x1xf32>
    %48 = vector.broadcast %47 : vector<16x1xf32> to vector<16x128xf32>
    %49 = arith.addf %46, %48 : vector<16x128xf32>
    %cst_45 = arith.constant 0.000000e+00 : f32
    %50 = vector.broadcast %cst_45 : f32 to vector<16x128xf32>
    %51 = arith.cmpf ogt, %49, %50 : vector<16x128xf32>
    %cst_46 = arith.constant 0.000000e+00 : f32
    %52 = vector.broadcast %cst_46 : f32 to vector<16x128xf32>
    %53 = arith.minimumf %49, %52 : vector<16x128xf32>
    %54 = math.exp %53 : vector<16x128xf32>
    %cst_47 = arith.constant 1.000000e+00 : f32
    %55 = vector.broadcast %cst_47 : f32 to vector<16x128xf32>
    %56 = arith.subf %54, %55 : vector<16x128xf32>
    %57 = arith.select %51, %49, %56 : vector<16x128xi1>, vector<16x128xf32>
    %c0_48 = arith.constant 0 : index
    %c0_49 = arith.constant 0 : index
    %58 = vector.load %arg6[%c0_48, %c0_49] : memref<16x128xbf16, #tpu.memory_space<vmem>>, vector<16x128xbf16>
    %59 = arith.extf %58 : vector<16x128xbf16> to vector<16x128xf32>
    %60 = arith.addf %57, %59 : vector<16x128xf32>
    %cst_50 = arith.constant 0.000000e+00 : f32
    %61 = vector.broadcast %cst_50 : f32 to vector<16x128xf32>
    %62 = arith.cmpf ogt, %60, %61 : vector<16x128xf32>
    %cst_51 = arith.constant 0.000000e+00 : f32
    %63 = vector.broadcast %cst_51 : f32 to vector<16x128xf32>
    %64 = arith.minimumf %60, %63 : vector<16x128xf32>
    %65 = math.exp %64 : vector<16x128xf32>
    %cst_52 = arith.constant 1.000000e+00 : f32
    %66 = vector.broadcast %cst_52 : f32 to vector<16x128xf32>
    %67 = arith.subf %65, %66 : vector<16x128xf32>
    %68 = arith.select %62, %60, %67 : vector<16x128xi1>, vector<16x128xf32>
    %69 = arith.truncf %68 : vector<16x128xf32> to vector<16x128xbf16>
    %c0_53 = arith.constant 0 : index
    %c128_54 = arith.constant 128 : index
    %70 = vector.load %arg5[%c0_53, %c128_54] : memref<16x256xbf16, #tpu.memory_space<vmem>>, vector<16x128xbf16>
    tpu.vector_store %arg5[%c0_53, %c128_54], %69 {strides = array<i32>} : memref<16x256xbf16, #tpu.memory_space<vmem>>, vector<16x128xbf16>,
    %c0_55 = arith.constant 0 : index
    %c128_56 = arith.constant 128 : index
    %71 = vector.load %arg5[%c0_55, %c128_56] : memref<16x256xbf16, #tpu.memory_space<vmem>>, vector<16x128xbf16>
    %c0_57 = arith.constant 0 : index
    %c0_58 = arith.constant 0 : index
    %72 = vector.load %arg6[%c0_57, %c0_58] : memref<16x128xbf16, #tpu.memory_space<vmem>>, vector<16x128xbf16>
    tpu.vector_store %arg6[%c0_57, %c0_58], %71 {strides = array<i32>} : memref<16x128xbf16, #tpu.memory_space<vmem>>, vector<16x128xbf16>,
    %c0_59 = arith.constant 0 : index
    %c126 = arith.constant 126 : index
    %73 = vector.load %arg5[%c0_59, %c126] : memref<16x256xbf16, #tpu.memory_space<vmem>>, vector<16x128xbf16>
    %c5 = arith.constant 5 : index
    %c0_60 = arith.constant 0 : index
    %c0_61 = arith.constant 0 : index
    %74 = vector.load %arg2[%c5, %c0_60, %c0_61] : memref<14x16x16xbf16, #tpu.memory_space<vmem>>, vector<1x16x16xbf16>
    %75 = vector.shape_cast %74 : vector<1x16x16xbf16> to vector<16x16xbf16>
    %cst_62 = arith.constant dense<0.000000e+00> : vector<16x128xf32>
    %76 = tpu.matmul %75, %73, %cst_62 {dimension_numbers = #tpu.dot_dimension_numbers<[1], [0], [0], [1], [0, 0, 1, 1], [], []>} : vector<16x16xbf16>, vector<16x128xbf16>, vector<16x128xf32> -> vector<16x128xf32>
    %c0_63 = arith.constant 0 : index
    %c128_64 = arith.constant 128 : index
    %77 = vector.load %arg5[%c0_63, %c128_64] : memref<16x256xbf16, #tpu.memory_space<vmem>>, vector<16x128xbf16>
    %c6 = arith.constant 6 : index
    %c0_65 = arith.constant 0 : index
    %c0_66 = arith.constant 0 : index
    %78 = vector.load %arg2[%c6, %c0_65, %c0_66] : memref<14x16x16xbf16, #tpu.memory_space<vmem>>, vector<1x16x16xbf16>
    %79 = vector.shape_cast %78 : vector<1x16x16xbf16> to vector<16x16xbf16>
    %cst_67 = arith.constant dense<0.000000e+00> : vector<16x128xf32>
    %80 = tpu.matmul %79, %77, %cst_67 {dimension_numbers = #tpu.dot_dimension_numbers<[1], [0], [0], [1], [0, 0, 1, 1], [], []>} : vector<16x16xbf16>, vector<16x128xbf16>, vector<16x128xf32> -> vector<16x128xf32>
    %81 = arith.addf %76, %80 : vector<16x128xf32>
    %c0_68 = arith.constant 0 : index
    %c3_69 = arith.constant 3 : index
    %82 = vector.load %arg3[%c0_68, %c3_69] : memref<16x8xf32, #tpu.memory_space<vmem>>, vector<16x1xf32>
    %83 = vector.broadcast %82 : vector<16x1xf32> to vector<16x128xf32>
    %84 = arith.addf %81, %83 : vector<16x128xf32>
    %cst_70 = arith.constant 0.000000e+00 : f32
    %85 = vector.broadcast %cst_70 : f32 to vector<16x128xf32>
    %86 = arith.cmpf ogt, %84, %85 : vector<16x128xf32>
    %cst_71 = arith.constant 0.000000e+00 : f32
    %87 = vector.broadcast %cst_71 : f32 to vector<16x128xf32>
    %88 = arith.minimumf %84, %87 : vector<16x128xf32>
    %89 = math.exp %88 : vector<16x128xf32>
    %cst_72 = arith.constant 1.000000e+00 : f32
    %90 = vector.broadcast %cst_72 : f32 to vector<16x128xf32>
    %91 = arith.subf %89, %90 : vector<16x128xf32>
    %92 = arith.select %86, %84, %91 : vector<16x128xi1>, vector<16x128xf32>
    %93 = arith.truncf %92 : vector<16x128xf32> to vector<16x128xbf16>
    %c0_73 = arith.constant 0 : index
    %c128_74 = arith.constant 128 : index
    %94 = vector.load %arg5[%c0_73, %c128_74] : memref<16x256xbf16, #tpu.memory_space<vmem>>, vector<16x128xbf16>
    tpu.vector_store %arg5[%c0_73, %c128_74], %93 {strides = array<i32>} : memref<16x256xbf16, #tpu.memory_space<vmem>>, vector<16x128xbf16>,
    %c0_75 = arith.constant 0 : index
    %c126_76 = arith.constant 126 : index
    %95 = vector.load %arg5[%c0_75, %c126_76] : memref<16x256xbf16, #tpu.memory_space<vmem>>, vector<16x128xbf16>
    %c7 = arith.constant 7 : index
    %c0_77 = arith.constant 0 : index
    %c0_78 = arith.constant 0 : index
    %96 = vector.load %arg2[%c7, %c0_77, %c0_78] : memref<14x16x16xbf16, #tpu.memory_space<vmem>>, vector<1x16x16xbf16>
    %97 = vector.shape_cast %96 : vector<1x16x16xbf16> to vector<16x16xbf16>
    %cst_79 = arith.constant dense<0.000000e+00> : vector<16x128xf32>
    %98 = tpu.matmul %97, %95, %cst_79 {dimension_numbers = #tpu.dot_dimension_numbers<[1], [0], [0], [1], [0, 0, 1, 1], [], []>} : vector<16x16xbf16>, vector<16x128xbf16>, vector<16x128xf32> -> vector<16x128xf32>
    %c0_80 = arith.constant 0 : index
    %c128_81 = arith.constant 128 : index
    %99 = vector.load %arg5[%c0_80, %c128_81] : memref<16x256xbf16, #tpu.memory_space<vmem>>, vector<16x128xbf16>
    %c8_82 = arith.constant 8 : index
    %c0_83 = arith.constant 0 : index
    %c0_84 = arith.constant 0 : index
    %100 = vector.load %arg2[%c8_82, %c0_83, %c0_84] : memref<14x16x16xbf16, #tpu.memory_space<vmem>>, vector<1x16x16xbf16>
    %101 = vector.shape_cast %100 : vector<1x16x16xbf16> to vector<16x16xbf16>
    %cst_85 = arith.constant dense<0.000000e+00> : vector<16x128xf32>
    %102 = tpu.matmul %101, %99, %cst_85 {dimension_numbers = #tpu.dot_dimension_numbers<[1], [0], [0], [1], [0, 0, 1, 1], [], []>} : vector<16x16xbf16>, vector<16x128xbf16>, vector<16x128xf32> -> vector<16x128xf32>
    %103 = arith.addf %98, %102 : vector<16x128xf32>
    %c0_86 = arith.constant 0 : index
    %c4_87 = arith.constant 4 : index
    %104 = vector.load %arg3[%c0_86, %c4_87] : memref<16x8xf32, #tpu.memory_space<vmem>>, vector<16x1xf32>
    %105 = vector.broadcast %104 : vector<16x1xf32> to vector<16x128xf32>
    %106 = arith.addf %103, %105 : vector<16x128xf32>
    %cst_88 = arith.constant 0.000000e+00 : f32
    %107 = vector.broadcast %cst_88 : f32 to vector<16x128xf32>
    %108 = arith.cmpf ogt, %106, %107 : vector<16x128xf32>
    %cst_89 = arith.constant 0.000000e+00 : f32
    %109 = vector.broadcast %cst_89 : f32 to vector<16x128xf32>
    %110 = arith.minimumf %106, %109 : vector<16x128xf32>
    %111 = math.exp %110 : vector<16x128xf32>
    %cst_90 = arith.constant 1.000000e+00 : f32
    %112 = vector.broadcast %cst_90 : f32 to vector<16x128xf32>
    %113 = arith.subf %111, %112 : vector<16x128xf32>
    %114 = arith.select %108, %106, %113 : vector<16x128xi1>, vector<16x128xf32>
    %c0_91 = arith.constant 0 : index
    %c0_92 = arith.constant 0 : index
    %115 = vector.load %arg6[%c0_91, %c0_92] : memref<16x128xbf16, #tpu.memory_space<vmem>>, vector<16x128xbf16>
    %116 = arith.extf %115 : vector<16x128xbf16> to vector<16x128xf32>
    %117 = arith.addf %114, %116 : vector<16x128xf32>
    %cst_93 = arith.constant 0.000000e+00 : f32
    %118 = vector.broadcast %cst_93 : f32 to vector<16x128xf32>
    %119 = arith.cmpf ogt, %117, %118 : vector<16x128xf32>
    %cst_94 = arith.constant 0.000000e+00 : f32
    %120 = vector.broadcast %cst_94 : f32 to vector<16x128xf32>
    %121 = arith.minimumf %117, %120 : vector<16x128xf32>
    %122 = math.exp %121 : vector<16x128xf32>
    %cst_95 = arith.constant 1.000000e+00 : f32
    %123 = vector.broadcast %cst_95 : f32 to vector<16x128xf32>
    %124 = arith.subf %122, %123 : vector<16x128xf32>
    %125 = arith.select %119, %117, %124 : vector<16x128xi1>, vector<16x128xf32>
    %126 = arith.truncf %125 : vector<16x128xf32> to vector<16x128xbf16>
    %c0_96 = arith.constant 0 : index
    %c128_97 = arith.constant 128 : index
    %127 = vector.load %arg5[%c0_96, %c128_97] : memref<16x256xbf16, #tpu.memory_space<vmem>>, vector<16x128xbf16>
    tpu.vector_store %arg5[%c0_96, %c128_97], %126 {strides = array<i32>} : memref<16x256xbf16, #tpu.memory_space<vmem>>, vector<16x128xbf16>,
    %c0_98 = arith.constant 0 : index
    %c128_99 = arith.constant 128 : index
    %128 = vector.load %arg5[%c0_98, %c128_99] : memref<16x256xbf16, #tpu.memory_space<vmem>>, vector<16x128xbf16>
    %c13 = arith.constant 13 : index
    %c0_100 = arith.constant 0 : index
    %c0_101 = arith.constant 0 : index
    %129 = vector.load %arg2[%c13, %c0_100, %c0_101] : memref<14x16x16xbf16, #tpu.memory_space<vmem>>, vector<1x16x16xbf16>
    %130 = vector.shape_cast %129 : vector<1x16x16xbf16> to vector<16x16xbf16>
    %cst_102 = arith.constant dense<0.000000e+00> : vector<16x128xf32>
    %131 = tpu.matmul %130, %128, %cst_102 {dimension_numbers = #tpu.dot_dimension_numbers<[1], [0], [0], [1], [0, 0, 1, 1], [], []>} : vector<16x16xbf16>, vector<16x128xbf16>, vector<16x128xf32> -> vector<16x128xf32>
    %c0_103 = arith.constant 0 : index
    %c7_104 = arith.constant 7 : index
    %132 = vector.load %arg3[%c0_103, %c7_104] : memref<16x8xf32, #tpu.memory_space<vmem>>, vector<16x1xf32>
    %133 = vector.broadcast %132 : vector<16x1xf32> to vector<16x128xf32>
    %134 = arith.addf %131, %133 : vector<16x128xf32>
    %135 = arith.truncf %134 : vector<16x128xf32> to vector<16x128xbf16>
    %c0_105 = arith.constant 0 : index
    %c0_106 = arith.constant 0 : index
    %136 = vector.load %arg6[%c0_105, %c0_106] : memref<16x128xbf16, #tpu.memory_space<vmem>>, vector<16x128xbf16>
    tpu.vector_store %arg6[%c0_105, %c0_106], %135 {strides = array<i32>} : memref<16x128xbf16, #tpu.memory_space<vmem>>, vector<16x128xbf16>,
    %c0_107 = arith.constant 0 : index
    %c124 = arith.constant 124 : index
    %137 = vector.load %arg5[%c0_107, %c124] : memref<16x256xbf16, #tpu.memory_space<vmem>>, vector<16x128xbf16>
    %c9 = arith.constant 9 : index
    %c0_108 = arith.constant 0 : index
    %c0_109 = arith.constant 0 : index
    %138 = vector.load %arg2[%c9, %c0_108, %c0_109] : memref<14x16x16xbf16, #tpu.memory_space<vmem>>, vector<1x16x16xbf16>
    %139 = vector.shape_cast %138 : vector<1x16x16xbf16> to vector<16x16xbf16>
    %cst_110 = arith.constant dense<0.000000e+00> : vector<16x128xf32>
    %140 = tpu.matmul %139, %137, %cst_110 {dimension_numbers = #tpu.dot_dimension_numbers<[1], [0], [0], [1], [0, 0, 1, 1], [], []>} : vector<16x16xbf16>, vector<16x128xbf16>, vector<16x128xf32> -> vector<16x128xf32>
    %c0_111 = arith.constant 0 : index
    %c128_112 = arith.constant 128 : index
    %141 = vector.load %arg5[%c0_111, %c128_112] : memref<16x256xbf16, #tpu.memory_space<vmem>>, vector<16x128xbf16>
    %c10 = arith.constant 10 : index
    %c0_113 = arith.constant 0 : index
    %c0_114 = arith.constant 0 : index
    %142 = vector.load %arg2[%c10, %c0_113, %c0_114] : memref<14x16x16xbf16, #tpu.memory_space<vmem>>, vector<1x16x16xbf16>
    %143 = vector.shape_cast %142 : vector<1x16x16xbf16> to vector<16x16xbf16>
    %cst_115 = arith.constant dense<0.000000e+00> : vector<16x128xf32>
    %144 = tpu.matmul %143, %141, %cst_115 {dimension_numbers = #tpu.dot_dimension_numbers<[1], [0], [0], [1], [0, 0, 1, 1], [], []>} : vector<16x16xbf16>, vector<16x128xbf16>, vector<16x128xf32> -> vector<16x128xf32>
    %145 = arith.addf %140, %144 : vector<16x128xf32>
    %c0_116 = arith.constant 0 : index
    %c5_117 = arith.constant 5 : index
    %146 = vector.load %arg3[%c0_116, %c5_117] : memref<16x8xf32, #tpu.memory_space<vmem>>, vector<16x1xf32>
    %147 = vector.broadcast %146 : vector<16x1xf32> to vector<16x128xf32>
    %148 = arith.addf %145, %147 : vector<16x128xf32>
    %cst_118 = arith.constant 0.000000e+00 : f32
    %149 = vector.broadcast %cst_118 : f32 to vector<16x128xf32>
    %150 = arith.cmpf ogt, %148, %149 : vector<16x128xf32>
    %cst_119 = arith.constant 0.000000e+00 : f32
    %151 = vector.broadcast %cst_119 : f32 to vector<16x128xf32>
    %152 = arith.minimumf %148, %151 : vector<16x128xf32>
    %153 = math.exp %152 : vector<16x128xf32>
    %cst_120 = arith.constant 1.000000e+00 : f32
    %154 = vector.broadcast %cst_120 : f32 to vector<16x128xf32>
    %155 = arith.subf %153, %154 : vector<16x128xf32>
    %156 = arith.select %150, %148, %155 : vector<16x128xi1>, vector<16x128xf32>
    %157 = arith.truncf %156 : vector<16x128xf32> to vector<16x128xbf16>
    %c0_121 = arith.constant 0 : index
    %c128_122 = arith.constant 128 : index
    %158 = vector.load %arg5[%c0_121, %c128_122] : memref<16x256xbf16, #tpu.memory_space<vmem>>, vector<16x128xbf16>
    tpu.vector_store %arg5[%c0_121, %c128_122], %157 {strides = array<i32>} : memref<16x256xbf16, #tpu.memory_space<vmem>>, vector<16x128xbf16>,
    %c0_123 = arith.constant 0 : index
    %c124_124 = arith.constant 124 : index
    %159 = vector.load %arg5[%c0_123, %c124_124] : memref<16x256xbf16, #tpu.memory_space<vmem>>, vector<16x128xbf16>
    %c11 = arith.constant 11 : index
    %c0_125 = arith.constant 0 : index
    %c0_126 = arith.constant 0 : index
    %160 = vector.load %arg2[%c11, %c0_125, %c0_126] : memref<14x16x16xbf16, #tpu.memory_space<vmem>>, vector<1x16x16xbf16>
    %161 = vector.shape_cast %160 : vector<1x16x16xbf16> to vector<16x16xbf16>
    %cst_127 = arith.constant dense<0.000000e+00> : vector<16x128xf32>
    %162 = tpu.matmul %161, %159, %cst_127 {dimension_numbers = #tpu.dot_dimension_numbers<[1], [0], [0], [1], [0, 0, 1, 1], [], []>} : vector<16x16xbf16>, vector<16x128xbf16>, vector<16x128xf32> -> vector<16x128xf32>
    %c0_128 = arith.constant 0 : index
    %c128_129 = arith.constant 128 : index
    %163 = vector.load %arg5[%c0_128, %c128_129] : memref<16x256xbf16, #tpu.memory_space<vmem>>, vector<16x128xbf16>
    %c12 = arith.constant 12 : index
    %c0_130 = arith.constant 0 : index
    %c0_131 = arith.constant 0 : index
    %164 = vector.load %arg2[%c12, %c0_130, %c0_131] : memref<14x16x16xbf16, #tpu.memory_space<vmem>>, vector<1x16x16xbf16>
    %165 = vector.shape_cast %164 : vector<1x16x16xbf16> to vector<16x16xbf16>
    %cst_132 = arith.constant dense<0.000000e+00> : vector<16x128xf32>
    %166 = tpu.matmul %165, %163, %cst_132 {dimension_numbers = #tpu.dot_dimension_numbers<[1], [0], [0], [1], [0, 0, 1, 1], [], []>} : vector<16x16xbf16>, vector<16x128xbf16>, vector<16x128xf32> -> vector<16x128xf32>
    %167 = arith.addf %162, %166 : vector<16x128xf32>
    %c0_133 = arith.constant 0 : index
    %c6_134 = arith.constant 6 : index
    %168 = vector.load %arg3[%c0_133, %c6_134] : memref<16x8xf32, #tpu.memory_space<vmem>>, vector<16x1xf32>
    %169 = vector.broadcast %168 : vector<16x1xf32> to vector<16x128xf32>
    %170 = arith.addf %167, %169 : vector<16x128xf32>
    %cst_135 = arith.constant 0.000000e+00 : f32
    %171 = vector.broadcast %cst_135 : f32 to vector<16x128xf32>
    %172 = arith.cmpf ogt, %170, %171 : vector<16x128xf32>
    %cst_136 = arith.constant 0.000000e+00 : f32
    %173 = vector.broadcast %cst_136 : f32 to vector<16x128xf32>
    %174 = arith.minimumf %170, %173 : vector<16x128xf32>
    %175 = math.exp %174 : vector<16x128xf32>
    %cst_137 = arith.constant 1.000000e+00 : f32
    %176 = vector.broadcast %cst_137 : f32 to vector<16x128xf32>
    %177 = arith.subf %175, %176 : vector<16x128xf32>
    %178 = arith.select %172, %170, %177 : vector<16x128xi1>, vector<16x128xf32>
    %c0_138 = arith.constant 0 : index
    %c0_139 = arith.constant 0 : index
    %179 = vector.load %arg6[%c0_138, %c0_139] : memref<16x128xbf16, #tpu.memory_space<vmem>>, vector<16x128xbf16>
    %180 = arith.extf %179 : vector<16x128xbf16> to vector<16x128xf32>
    %181 = arith.addf %178, %180 : vector<16x128xf32>
    %cst_140 = arith.constant 0.000000e+00 : f32
    %182 = vector.broadcast %cst_140 : f32 to vector<16x128xf32>
    %183 = arith.cmpf ogt, %181, %182 : vector<16x128xf32>
    %cst_141 = arith.constant 0.000000e+00 : f32
    %184 = vector.broadcast %cst_141 : f32 to vector<16x128xf32>
    %185 = arith.minimumf %181, %184 : vector<16x128xf32>
    %186 = math.exp %185 : vector<16x128xf32>
    %cst_142 = arith.constant 1.000000e+00 : f32
    %187 = vector.broadcast %cst_142 : f32 to vector<16x128xf32>
    %188 = arith.subf %186, %187 : vector<16x128xf32>
    %189 = arith.select %183, %181, %188 : vector<16x128xi1>, vector<16x128xf32>
    %c0_143 = arith.constant 0 : index
    %c0_144 = arith.constant 0 : index
    %c0_145 = arith.constant 0 : index
    %190 = vector.load %arg4[%c0_143, %c0_144, %c0_145] : memref<1x16x128xf32, #tpu.memory_space<vmem>>, vector<1x16x128xf32>
    %191 = vector.shape_cast %190 : vector<1x16x128xf32> to vector<16x128xf32>
    %192 = vector.shape_cast %189 : vector<16x128xf32> to vector<1x16x128xf32>
    tpu.vector_store %arg4[%c0_143, %c0_144, %c0_145], %192 {strides = array<i32>} : memref<1x16x128xf32, #tpu.memory_space<vmem>>, vector<1x16x128xf32>,
    return
  }
  func.func @transform_0(%arg0: i32) -> (i32, i32, i32) {
    %c0_i32 = arith.constant 0 : i32
    %c0_i32_0 = arith.constant 0 : i32
    %c0_i32_1 = arith.constant 0 : i32
    return %arg0, %c0_i32, %c0_i32_0 : i32, i32, i32
  }
  func.func @transform_1(%arg0: i32) -> (i32, i32, i32) {
    %c0_i32 = arith.constant 0 : i32
    %c0_i32_0 = arith.constant 0 : i32
    %c0_i32_1 = arith.constant 0 : i32
    %c0_i32_2 = arith.constant 0 : i32
    return %c0_i32, %c0_i32_0, %c0_i32_1 : i32, i32, i32
  }
  func.func @transform_2(%arg0: i32) -> (i32, i32) {
    %c0_i32 = arith.constant 0 : i32
    %c0_i32_0 = arith.constant 0 : i32
    %c0_i32_1 = arith.constant 0 : i32
    return %c0_i32, %c0_i32_0 : i32, i32
  }
  func.func @transform_3(%arg0: i32) -> (i32, i32, i32) {
    %c0_i32 = arith.constant 0 : i32
    %c0_i32_0 = arith.constant 0 : i32
    %c0_i32_1 = arith.constant 0 : i32
    return %arg0, %c0_i32, %c0_i32_0 : i32, i32, i32
  }
}

</mosaic_0001>

<llo_original>
// kernel: tpu_custom_call.1
$region0: #{tpu_custom_call.1}
  #allocation0 [shape = 'u32[]', space=smem, size = 0x4, offset = 0x4, fixed_abs, tag = 'smem constant byte address 0x4 - core index']
  #allocation1 [shape = 'u32[144,128]{1,0:T(1,128)}', space=vmem, size = 0x12000, scoped, tag = 'internal scratch']
  #allocation2 [shape = 'bf16[16,256]{1,0:T(16,128)(2,1)}', space=vmem, size = 0x2000, scoped, tag = 'scratch operand']
  #allocation3 [shape = 'bf16[16,128]{1,0:T(16,128)(2,1)}', space=vmem, size = 0x1000, scoped, tag = 'scratch operand']
  %s0 = inlined_call_operand.vmem [shape: bf16[2,8,128], index: 0, kind: input, shape index: {}]
  %s1 = inlined_call_operand.hbm [shape: bf16[14,16,16], index: 1, kind: input, shape index: {}]
  %s2 = inlined_call_operand.vmem [shape: f32[16,8], index: 2, kind: input, shape index: {}]
  %s3 = inlined_call_operand.hbm [shape: f32[2,16,128], index: 3, kind: output, shape index: {}]
  %s4 = sld [smem:[#allocation0]]
  $region49: #{tpu_custom_call.1} parent=0
    _
  %s6 = ssub.s32 1, %s4
  %s7 = scalar_select 0, %s6, %s4
  $region1: #{tpu_custom_call.1} parent=0
    #allocation4 [shape = 'u8[57344]{0}', space=vmem, size = 0xe000, scoped, tag = 'input window, operand 1, single buffered']
    #allocation5 [shape = 's32[2]{0}', space=sflag, size = 0x8, scoped, tag = 'scoped memory for tpu_custom_call.1']
    #allocation6 [shape = 's32[2]{0}', space=sflag, size = 0x8, scoped, tag = 'scoped memory for tpu_custom_call.1']
    #allocation7 [shape = 'u8[16384]{0}', space=vmem, size = 0x4000, scoped, tag = 'output window, operand 0']
    %8 = vsyncpa [#allocation5], 0
    %9 = vsyncpa [#allocation6], 0
    %s10 = scalar_lea.sflag [#allocation6], 1
    %11 = vsyncpa %s10, 0
    loop: start=0, step=1, limit=4
    $region2: #{tpu_custom_call.1} parent=1 // loop_pre_header
      _
    $region3: #{tpu_custom_call.1} parent=1 // loop_header
      %s13 = sphi 0, %s17
      %p14 = scmp.ge.s32.totalorder %s13, 4
      %s23 = sphi 0, %s25
      %s26 = sphi 0, %s23
      %s27 = sphi 0, %s26
      %s43 = sphi 0, %s27
      %s47 = sphi 0, %s47
      %s49 = sphi 0, %s47
      %s50 = sphi 0, %s49
      %s64 = sphi 0, %s50
      %s68 = sphi 0, %s68
      %s70 = sphi 0, %s68
      %s71 = sphi 0, %s70
      %s85 = sphi 0, %s71
      %s91 = sphi 0, %s93
      %s94 = sphi 0, %s91
      %s95 = sphi 0, %s94
      %s111 = sphi 0, %s95
    $region4: #{tpu_custom_call.1} parent=1 // loop_header_branch
      %16 = sbr.rel (%p14) target = $region8
    $region5: #{tpu_custom_call.1} parent=1 // loop_body
      %s18 = ssub.s32 %s13, 1
      %s19 = ssub.s32 %s13, 2
      %s20 = sadd.s32 %s13, 1
      %s21 = ssub.s32 %s13, %s20
      %p22 = scmp.eq.s32.totalorder %s21, 0
      %s24 = sadd.s32 %s23, 1
      %s25 = scalar_select %p22, %s23, %s24
      %p28 = pneg %p22
      %p29 = scmp.eq.s32.totalorder %s13, 1
      %p30 = por %p28, %p29
      %p31 = scmp.ne.s32.totalorder %s23, %s26
      %p32 = scmp.eq.s32.totalorder %s13, 0
      %p33 = por %p31, %p32
      %p34 = scmp.ne.s32.totalorder %s23, %s26
      %p35 = scmp.eq.s32.totalorder %s18, 1
      %p36 = por %p34, %p35
      %p37 = scmp.ne.s32.totalorder %s26, %s27
      %p38 = scmp.eq.s32.totalorder %s18, 0
      %p39 = por %p37, %p38
      %p40 = scmp.ne.s32.totalorder %s26, %s27
      %p41 = scmp.eq.s32.totalorder %s19, 1
      %p42 = por %p40, %p41
      %p44 = scmp.ne.s32.totalorder %s27, %s43
      %p45 = scmp.eq.s32.totalorder %s19, 0
      %p46 = por %p44, %p45
      %s48 = sadd.s32 %s47, 1
      %p51 = scmp.eq.s32.totalorder %s13, 1
      %p52 = scmp.ne.s32.totalorder %s47, %s49
      %p53 = scmp.eq.s32.totalorder %s13, 0
      %p54 = por %p52, %p53
      %p55 = scmp.ne.s32.totalorder %s47, %s49
      %p56 = scmp.eq.s32.totalorder %s18, 1
      %p57 = por %p55, %p56
      %p58 = scmp.ne.s32.totalorder %s49, %s50
      %p59 = scmp.eq.s32.totalorder %s18, 0
      %p60 = por %p58, %p59
      %p61 = scmp.ne.s32.totalorder %s49, %s50
      %p62 = scmp.eq.s32.totalorder %s19, 1
      %p63 = por %p61, %p62
      %p65 = scmp.ne.s32.totalorder %s50, %s64
      %p66 = scmp.eq.s32.totalorder %s19, 0
      %p67 = por %p65, %p66
      %s69 = sadd.s32 %s68, 1
      %p72 = scmp.eq.s32.totalorder %s13, 1
      %p73 = scmp.ne.s32.totalorder %s68, %s70
      %p74 = scmp.eq.s32.totalorder %s13, 0
      %p75 = por %p73, %p74
      %p76 = scmp.ne.s32.totalorder %s68, %s70
      %p77 = scmp.eq.s32.totalorder %s18, 1
      %p78 = por %p76, %p77
      %p79 = scmp.ne.s32.totalorder %s70, %s71
      %p80 = scmp.eq.s32.totalorder %s18, 0
      %p81 = por %p79, %p80
      %p82 = scmp.ne.s32.totalorder %s70, %s71
      %p83 = scmp.eq.s32.totalorder %s19, 1
      %p84 = por %p82, %p83
      %p86 = scmp.ne.s32.totalorder %s71, %s85
      %p87 = scmp.eq.s32.totalorder %s19, 0
      %p88 = por %p86, %p87
      %s89 = ssub.s32 %s13, %s20
      %p90 = scmp.eq.s32.totalorder %s89, 0
      %s92 = sadd.s32 %s91, 1
      %s93 = scalar_select %p90, %s91, %s92
      %p96 = pneg %p90
      %p97 = scmp.eq.s32.totalorder %s13, 1
      %p98 = por %p96, %p97
      %p99 = scmp.ne.s32.totalorder %s91, %s94
      %p100 = scmp.eq.s32.totalorder %s13, 0
      %p101 = por %p99, %p100
      %p102 = scmp.ne.s32.totalorder %s91, %s94
      %p103 = scmp.eq.s32.totalorder %s18, 1
      %p104 = por %p102, %p103
      %p105 = scmp.ne.s32.totalorder %s94, %s95
      %p106 = scmp.eq.s32.totalorder %s18, 0
      %p107 = por %p105, %p106
      %p108 = scmp.ne.s32.totalorder %s94, %s95
      %p109 = scmp.eq.s32.totalorder %s19, 1
      %p110 = por %p108, %p109
      %p112 = scmp.ne.s32.totalorder %s95, %s111
      %p113 = scmp.eq.s32.totalorder %s19, 0
      %p114 = por %p112, %p113
      %p115 = scmp.le.s32.totalorder 1, %s13
      %p116 = scmp.lt.s32.totalorder %s13, 3
      %p117 = pnand %p115, %p116
      %p118 = pneg %p117
      // Predicated region
      $region9: #{tpu_custom_call.1} parent=5 // pred_check
        _
      $region10: #{tpu_custom_call.1} parent=5 // pred_check_branch
        %120 = sbr.rel (%p117) target = $region12
      $region11: #{tpu_custom_call.1} parent=5 // pred_region
        %s121 = ssub.s32 %s13, 1
        // Predicated region
        $region13: #{tpu_custom_call.1} parent=11 // pred_check
          %p122 = pneg %p60
        $region14: #{tpu_custom_call.1} parent=11 // pred_check_branch
          %124 = sbr.rel (%p122) target = $region16
        $region15: #{tpu_custom_call.1} parent=11 // pred_region
          %s126 = ssub.s32 1792, 1792
          %127 = vsyncadd [#allocation5], %s126
          %s128 = sshll.u32 [#allocation4], 4
          %s129 = int_to_ptr.vmem [resolvable:$true] %s128
          %134 = dma.hbm_to_vmem [thread:$0]  %s1, 1792, %s129, [#allocation5], 64, 64, 4
        $region16: #{tpu_custom_call.1} parent=11 // pred_fallthru
          _
        // Predicated region
        $region17: #{tpu_custom_call.1} parent=11 // pred_check
          %p135 = pneg %p81
        $region18: #{tpu_custom_call.1} parent=11 // pred_check_branch
          %137 = sbr.rel (%p135) target = $region20
        $region19: #{tpu_custom_call.1} parent=11 // pred_region
          _
        $region20: #{tpu_custom_call.1} parent=11 // pred_fallthru
          _
      $region12: #{tpu_custom_call.1} parent=5 // pred_fallthru
        _
      %p138 = scmp.lt.s32.totalorder %s13, 2
      // Predicated region
      $region21: #{tpu_custom_call.1} parent=5 // pred_check
        %p139 = pneg %p138
      $region22: #{tpu_custom_call.1} parent=5 // pred_check_branch
        %141 = sbr.rel (%p139) target = $region24
      $region23: #{tpu_custom_call.1} parent=5 // pred_region
        // Predicated region
        $region25: #{tpu_custom_call.1} parent=23 // pred_check
          %p142 = pneg %p33
        $region26: #{tpu_custom_call.1} parent=23 // pred_check_branch
          %144 = sbr.rel (%p142) target = $region28
        $region27: #{tpu_custom_call.1} parent=23 // pred_region
          %p145 = scmp.lt.s32.totalorder %s13, 1
          %s146 = scalar_select %p145, %s13, 1
          %s147 = smul.addr %s146, 4
          %s148 = scalar_lea.vmem %s0, %s147
        $region28: #{tpu_custom_call.1} parent=23 // pred_fallthru
          _
      $region24: #{tpu_custom_call.1} parent=5 // pred_fallthru
        _
      %p149 = scmp.le.s32.totalorder 1, %s13
      %p150 = scmp.lt.s32.totalorder %s13, 3
      %p151 = pnand %p149, %p150
      %p152 = pneg %p151
      // Predicated region
      $region29: #{tpu_custom_call.1} parent=5 // pred_check
        _
      $region30: #{tpu_custom_call.1} parent=5 // pred_check_branch
        %154 = sbr.rel (%p151) target = $region32
      $region31: #{tpu_custom_call.1} parent=5 // pred_region
        %s155 = ssub.s32 %s13, 1
        // Predicated region
        $region33: #{tpu_custom_call.1} parent=31 // pred_check
          %p156 = pneg %p60
        $region34: #{tpu_custom_call.1} parent=31 // pred_check_branch
          %158 = sbr.rel (%p156) target = $region36
        $region35: #{tpu_custom_call.1} parent=31 // pred_region
          %159 = dma.done [#allocation5], 1792
        $region36: #{tpu_custom_call.1} parent=31 // pred_fallthru
          _
        %p160 = scmp.lt.s32.totalorder %s18, 1
        %s161 = scalar_select %p160, %s18, 1
        %s162 = smul.addr %s161, 4
        %s163 = scalar_lea.vmem %s0, %s162
        %p164 = pneg %p39
        %p165 = pneg %p36
        %p166 = pneg %p60
        %p167 = pneg %p57
        %p168 = pneg %p81
        %p169 = pneg %p78
        %p170 = pneg %p107
        %p171 = pneg %p104
        %s172 = sand.u32 %s94, 1
        %s173 = scalar_lea.sflag [#allocation6], %s172
        %s174 = sand.u32 %s94, 1
        %s175 = smul.addr %s174, 16
        %s176 = scalar_lea.vmem [#allocation7], %s175
        %p177 = scmp.lt.s32.totalorder %s18, 1
        %s178 = scalar_select %p177, %s18, 1
        %s179 = smul.addr %s178, 4
        %s180 = scalar_lea.vmem %s0, %s179
        %182 = vst [vmem:[#allocation2] sm:$0xff] 0
        %183 = vst [vmem:[#allocation2 + $0x8] sm:$0xf0] 0
        %v184 = vld [vmem:[%s180] sm:$0xf]
        %185 = vst [vmem:[#allocation2 + $0x8] sm:$0xf] %v184
        %v186 = vld [vmem:[#allocation2 + $0x8] sm:$0xff]
        %s187 = scalar_lea.vmem [#allocation4], 32
        %v188 = vld [vmem:[%s187] sm:$0xf]
        %v189 = vld [vmem:[%s187 + $0x4] sm:$0xf]
        %v190 = vld [vmem:[%s2] sm:$0xff]
        %v191 = vld [vmem:[%s2 + $0x8] sm:$0xff]
        %193 = vset.pattern.permute.xlu0 2
        %194 = vperm.xlu0 %193, %v190
        %v195 = vpop.permute.xlu0 %194
        %198 = vset.pattern.permute.xlu0 2
        %199 = vperm.xlu0 %198, %v191
        %v200 = vpop.permute.xlu0 %199
        %v204 = vunpack.c.l.b16 %v188
        %v205 = vunpack.c.l.b16 %v189
        %v206 = vpack.c.b16 %v205, %v204
        %vm207 = vcmask 130048
        %v209 = vsel %vm207, %v206, 0
        %211 = vmatprep.subr.bf16.mxu0 0
        %212 = vmatpush1.bf16.msra.mxu0 %v186
        %213 = vmatprep.subr.bf16.mxu0 0
        %214 = vmatpush1.bf16.msra.mxu0 0
        %215 = vmatprep.subr.bf16.mxu0 0
        %216 = vmatpush1.bf16.msra.mxu0 0
        %217 = vmatprep.subr.bf16.mxu0 0
        %218 = vmatpush1.bf16.msra.mxu0 0
        %219 = vmatprep.subr.bf16.mxu0 0
        %220 = vmatpush1.bf16.msra.mxu0 0
        %221 = vmatprep.subr.bf16.mxu0 0
        %222 = vmatpush1.bf16.msra.mxu0 0
        %223 = vmatprep.subr.bf16.mxu0 0
        %224 = vmatpush1.bf16.msra.mxu0 0
        %225 = vmatprep.subr.bf16.mxu0 0
        %226 = vmatpush1.bf16.msra.mxu0 0
        %227 = vmatprep.subr.bf16.mxu0 0
        %228 = vmatpush1.bf16.msra.mxu0 0
        %229 = vmatprep.subr.bf16.mxu0 0
        %230 = vmatpush1.bf16.msra.mxu0 0
        %231 = vmatprep.subr.bf16.mxu0 0
        %232 = vmatpush1.bf16.msra.mxu0 0
        %233 = vmatprep.subr.bf16.mxu0 0
        %234 = vmatpush1.bf16.msra.mxu0 0
        %235 = vmatprep.subr.bf16.mxu0 0
        %236 = vmatpush1.bf16.msra.mxu0 0
        %237 = vmatprep.subr.bf16.mxu0 0
        %238 = vmatpush1.bf16.msra.mxu0 0
        %239 = vmatprep.subr.bf16.mxu0 0
        %240 = vmatpush1.bf16.msra.mxu0 0
        %241 = vmatprep.subr.bf16.mxu0 0
        %242 = vmatpush1.bf16.msra.mxu0 0
        %243 = vmatprep.mubr.bf16.mxu0 0
        %244 = vmatmul.mubr.bf16.gmra.mrb[0].mxu0 %v209
        %v245 = vpop.f32.mrb[0].mxu0
        %v246 = vadd.f32 %v195, %v245
        %v247 = vpop.f32.mrb[0].mxu0
        %v248 = vpop.f32.mrb[0].mxu0
        %v249 = vadd.f32 %v200, %v248
        %v250 = vpop.f32.mrb[0].mxu0
        %251 = vdwg.mxu0
        %v252 = vpack.c.bf16 %v249, %v246
        %253 = vst [vmem:[#allocation3] sm:$0xff] %v252
        %v254 = vld [vmem:[#allocation2] sm:$0xff]
        %v255 = vld [vmem:[#allocation2 + $0x8] sm:$0xff]
        %v256 = vld [vmem:[#allocation4] sm:$0xf]
        %v257 = vld [vmem:[#allocation4 + $0x4] sm:$0xf]
        %s258 = scalar_lea.vmem [#allocation4], 8
        %v259 = vld [vmem:[%s258] sm:$0xf]
        %v260 = vld [vmem:[%s258 + $0x4] sm:$0xf]
        %v263 = vunpack.c.l.b16 %v259
        %v264 = vunpack.c.l.b16 %v260
        %v265 = vpack.c.b16 %v264, %v263
        %v267 = vsel %vm207, %v265, 0
        %269 = vmatprep.subr.bf16.mxu0 0
        %270 = vmatpush1.bf16.msra.mxu0 %v255
        %271 = vmatprep.subr.bf16.mxu0 0
        %272 = vmatpush1.bf16.msra.mxu0 0
        %273 = vmatprep.subr.bf16.mxu0 0
        %274 = vmatpush1.bf16.msra.mxu0 0
        %275 = vmatprep.subr.bf16.mxu0 0
        %276 = vmatpush1.bf16.msra.mxu0 0
        %277 = vmatprep.subr.bf16.mxu0 0
        %278 = vmatpush1.bf16.msra.mxu0 0
        %279 = vmatprep.subr.bf16.mxu0 0
        %280 = vmatpush1.bf16.msra.mxu0 0
        %281 = vmatprep.subr.bf16.mxu0 0
        %282 = vmatpush1.bf16.msra.mxu0 0
        %283 = vmatprep.subr.bf16.mxu0 0
        %284 = vmatpush1.bf16.msra.mxu0 0
        %285 = vmatprep.subr.bf16.mxu0 0
        %286 = vmatpush1.bf16.msra.mxu0 0
        %287 = vmatprep.subr.bf16.mxu0 0
        %288 = vmatpush1.bf16.msra.mxu0 0
        %289 = vmatprep.subr.bf16.mxu0 0
        %290 = vmatpush1.bf16.msra.mxu0 0
        %291 = vmatprep.subr.bf16.mxu0 0
        %292 = vmatpush1.bf16.msra.mxu0 0
        %293 = vmatprep.subr.bf16.mxu0 0
        %294 = vmatpush1.bf16.msra.mxu0 0
        %295 = vmatprep.subr.bf16.mxu0 0
        %296 = vmatpush1.bf16.msra.mxu0 0
        %297 = vmatprep.subr.bf16.mxu0 0
        %298 = vmatpush1.bf16.msra.mxu0 0
        %299 = vmatprep.subr.bf16.mxu0 0
        %300 = vmatpush1.bf16.msra.mxu0 0
        %301 = vmatprep.mubr.bf16.mxu0 0
        %302 = vmatmul.mubr.bf16.gmra.mrb[0].mxu0 %v267
        %v303 = vpop.f32.mrb[0].mxu0
        %v304 = vadd.f32 0.0, %v303
        %v305 = vpop.f32.mrb[0].mxu0
        %v306 = vpop.f32.mrb[0].mxu0
        %v307 = vadd.f32 0.0, %v306
        %v308 = vpop.f32.mrb[0].mxu0
        %309 = vdwg.mxu0
        %v312 = vunpack.c.l.b16 %v256
        %v313 = vunpack.c.l.b16 %v257
        %v314 = vpack.c.b16 %v313, %v312
        %317 = vrot.lane.b32.xlu0 %v254, 1
        %v318 = vpop.permute.xlu0 %317
        %319 = vrot.lane.b32.xlu0 %v255, 1
        %v320 = vpop.permute.xlu0 %319
        %vm321 = vcmask 7168
        %v322 = vsel %vm321, %v318, %v320
        %v325 = vsel %vm207, %v314, 0
        %327 = vmatprep.subr.bf16.mxu0 0
        %328 = vmatpush1.bf16.msra.mxu0 %v322
        %329 = vmatprep.subr.bf16.mxu0 0
        %330 = vmatpush1.bf16.msra.mxu0 0
        %331 = vmatprep.subr.bf16.mxu0 0
        %332 = vmatpush1.bf16.msra.mxu0 0
        %333 = vmatprep.subr.bf16.mxu0 0
        %334 = vmatpush1.bf16.msra.mxu0 0
        %335 = vmatprep.subr.bf16.mxu0 0
        %336 = vmatpush1.bf16.msra.mxu0 0
        %337 = vmatprep.subr.bf16.mxu0 0
        %338 = vmatpush1.bf16.msra.mxu0 0
        %339 = vmatprep.subr.bf16.mxu0 0
        %340 = vmatpush1.bf16.msra.mxu0 0
        %341 = vmatprep.subr.bf16.mxu0 0
        %342 = vmatpush1.bf16.msra.mxu0 0
        %343 = vmatprep.subr.bf16.mxu0 0
        %344 = vmatpush1.bf16.msra.mxu0 0
        %345 = vmatprep.subr.bf16.mxu0 0
        %346 = vmatpush1.bf16.msra.mxu0 0
        %347 = vmatprep.subr.bf16.mxu0 0
        %348 = vmatpush1.bf16.msra.mxu0 0
        %349 = vmatprep.subr.bf16.mxu0 0
        %350 = vmatpush1.bf16.msra.mxu0 0
        %351 = vmatprep.subr.bf16.mxu0 0
        %352 = vmatpush1.bf16.msra.mxu0 0
        %353 = vmatprep.subr.bf16.mxu0 0
        %354 = vmatpush1.bf16.msra.mxu0 0
        %355 = vmatprep.subr.bf16.mxu0 0
        %356 = vmatpush1.bf16.msra.mxu0 0
        %357 = vmatprep.subr.bf16.mxu0 0
        %358 = vmatpush1.bf16.msra.mxu0 0
        %359 = vmatprep.mubr.bf16.mxu0 0
        %360 = vmatmul.mubr.bf16.gmra.mrb[0].mxu0 %v325
        %v361 = vpop.f32.mrb[0].mxu0
        %v362 = vadd.f32 %v304, %v361
        %v363 = vpop.f32.mrb[0].mxu0
        %v364 = vpop.f32.mrb[0].mxu0
        %v365 = vadd.f32 %v307, %v364
        %v366 = vpop.f32.mrb[0].mxu0
        %367 = vdwg.mxu0
        %v368 = vld [vmem:[%s2] sm:$0xff]
        %v369 = vld [vmem:[%s2 + $0x8] sm:$0xff]
        %371 = vset.pattern.permute.xlu0 0
        %372 = vperm.xlu0 %371, %v368
        %v373 = vpop.permute.xlu0 %372
        %376 = vset.pattern.permute.xlu0 0
        %377 = vperm.xlu0 %376, %v369
        %v378 = vpop.permute.xlu0 %377
        %v380 = vadd.f32 %v362, %v373
        %v381 = vadd.f32 %v365, %v378
        %vm382 = vcmp.gt.f32.partialorder %v380, 0.0
        %vm383 = vcmp.gt.f32.partialorder %v381, 0.0
        %v384 = vmin.f32 %v380, 0.0
        %v385 = vmin.f32 %v381, 0.0
        %v386 = vmul.f32 %v384, 1.442695
        %v387 = vpow.pop %v386
        %v388 = vmul.f32 %v385, 1.442695
        %v389 = vpow.pop %v388
        %v390 = vsub.f32 %v387, 1.0
        %v391 = vsub.f32 %v389, 1.0
        %v392 = vsel %vm382, %v380, %v390
        %v393 = vsel %vm383, %v381, %v391
        %v394 = vpack.c.bf16 %v393, %v392
        %395 = vst [vmem:[#allocation2 + $0x8] sm:$0xff] %v394
        %v396 = vld [vmem:[#allocation2] sm:$0xff]
        %v397 = vld [vmem:[#allocation2 + $0x8] sm:$0xff]
        %s398 = scalar_lea.vmem [#allocation4], 16
        %v399 = vld [vmem:[%s398] sm:$0xf]
        %v400 = vld [vmem:[%s398 + $0x4] sm:$0xf]
        %s401 = scalar_lea.vmem [#allocation4], 24
        %v402 = vld [vmem:[%s401] sm:$0xf]
        %v403 = vld [vmem:[%s401 + $0x4] sm:$0xf]
        %v406 = vunpack.c.l.b16 %v402
        %v407 = vunpack.c.l.b16 %v403
        %v408 = vpack.c.b16 %v407, %v406
        %v410 = vsel %vm207, %v408, 0
        %412 = vmatprep.subr.bf16.mxu0 0
        %413 = vmatpush1.bf16.msra.mxu0 %v397
        %414 = vmatprep.subr.bf16.mxu0 0
        %415 = vmatpush1.bf16.msra.mxu0 0
        %416 = vmatprep.subr.bf16.mxu0 0
        %417 = vmatpush1.bf16.msra.mxu0 0
        %418 = vmatprep.subr.bf16.mxu0 0
        %419 = vmatpush1.bf16.msra.mxu0 0
        %420 = vmatprep.subr.bf16.mxu0 0
        %421 = vmatpush1.bf16.msra.mxu0 0
        %422 = vmatprep.subr.bf16.mxu0 0
        %423 = vmatpush1.bf16.msra.mxu0 0
        %424 = vmatprep.subr.bf16.mxu0 0
        %425 = vmatpush1.bf16.msra.mxu0 0
        %426 = vmatprep.subr.bf16.mxu0 0
        %427 = vmatpush1.bf16.msra.mxu0 0
        %428 = vmatprep.subr.bf16.mxu0 0
        %429 = vmatpush1.bf16.msra.mxu0 0
        %430 = vmatprep.subr.bf16.mxu0 0
        %431 = vmatpush1.bf16.msra.mxu0 0
        %432 = vmatprep.subr.bf16.mxu0 0
        %433 = vmatpush1.bf16.msra.mxu0 0
        %434 = vmatprep.subr.bf16.mxu0 0
        %435 = vmatpush1.bf16.msra.mxu0 0
        %436 = vmatprep.subr.bf16.mxu0 0
        %437 = vmatpush1.bf16.msra.mxu0 0
        %438 = vmatprep.subr.bf16.mxu0 0
        %439 = vmatpush1.bf16.msra.mxu0 0
        %440 = vmatprep.subr.bf16.mxu0 0
        %441 = vmatpush1.bf16.msra.mxu0 0
        %442 = vmatprep.subr.bf16.mxu0 0
        %443 = vmatpush1.bf16.msra.mxu0 0
        %444 = vmatprep.mubr.bf16.mxu0 0
        %445 = vmatmul.mubr.bf16.gmra.mrb[0].mxu0 %v410
        %v446 = vpop.f32.mrb[0].mxu0
        %v447 = vadd.f32 0.0, %v446
        %v448 = vpop.f32.mrb[0].mxu0
        %v449 = vpop.f32.mrb[0].mxu0
        %v450 = vadd.f32 0.0, %v449
        %v451 = vpop.f32.mrb[0].mxu0
        %452 = vdwg.mxu0
        %v455 = vunpack.c.l.b16 %v399
        %v456 = vunpack.c.l.b16 %v400
        %v457 = vpack.c.b16 %v456, %v455
        %460 = vrot.lane.b32.xlu0 %v396, 1
        %v461 = vpop.permute.xlu0 %460
        %462 = vrot.lane.b32.xlu0 %v397, 1
        %v463 = vpop.permute.xlu0 %462
        %v464 = vsel %vm321, %v461, %v463
        %v467 = vsel %vm207, %v457, 0
        %469 = vmatprep.subr.bf16.mxu0 0
        %470 = vmatpush1.bf16.msra.mxu0 %v464
        %471 = vmatprep.subr.bf16.mxu0 0
        %472 = vmatpush1.bf16.msra.mxu0 0
        %473 = vmatprep.subr.bf16.mxu0 0
        %474 = vmatpush1.bf16.msra.mxu0 0
        %475 = vmatprep.subr.bf16.mxu0 0
        %476 = vmatpush1.bf16.msra.mxu0 0
        %477 = vmatprep.subr.bf16.mxu0 0
        %478 = vmatpush1.bf16.msra.mxu0 0
        %479 = vmatprep.subr.bf16.mxu0 0
        %480 = vmatpush1.bf16.msra.mxu0 0
        %481 = vmatprep.subr.bf16.mxu0 0
        %482 = vmatpush1.bf16.msra.mxu0 0
        %483 = vmatprep.subr.bf16.mxu0 0
        %484 = vmatpush1.bf16.msra.mxu0 0
        %485 = vmatprep.subr.bf16.mxu0 0
        %486 = vmatpush1.bf16.msra.mxu0 0
        %487 = vmatprep.subr.bf16.mxu0 0
        %488 = vmatpush1.bf16.msra.mxu0 0
        %489 = vmatprep.subr.bf16.mxu0 0
        %490 = vmatpush1.bf16.msra.mxu0 0
        %491 = vmatprep.subr.bf16.mxu0 0
        %492 = vmatpush1.bf16.msra.mxu0 0
        %493 = vmatprep.subr.bf16.mxu0 0
        %494 = vmatpush1.bf16.msra.mxu0 0
        %495 = vmatprep.subr.bf16.mxu0 0
        %496 = vmatpush1.bf16.msra.mxu0 0
        %497 = vmatprep.subr.bf16.mxu0 0
        %498 = vmatpush1.bf16.msra.mxu0 0
        %499 = vmatprep.subr.bf16.mxu0 0
        %500 = vmatpush1.bf16.msra.mxu0 0
        %501 = vmatprep.mubr.bf16.mxu0 0
        %502 = vmatmul.mubr.bf16.gmra.mrb[0].mxu0 %v467
        %v503 = vpop.f32.mrb[0].mxu0
        %v504 = vadd.f32 %v447, %v503
        %v505 = vpop.f32.mrb[0].mxu0
        %v506 = vpop.f32.mrb[0].mxu0
        %v507 = vadd.f32 %v450, %v506
        %v508 = vpop.f32.mrb[0].mxu0
        %509 = vdwg.mxu0
        %v510 = vld [vmem:[%s2] sm:$0xff]
        %v511 = vld [vmem:[%s2 + $0x8] sm:$0xff]
        %513 = vset.pattern.permute.xlu0 1
        %514 = vperm.xlu0 %513, %v510
        %v515 = vpop.permute.xlu0 %514
        %518 = vset.pattern.permute.xlu0 1
        %519 = vperm.xlu0 %518, %v511
        %v520 = vpop.permute.xlu0 %519
        %v522 = vadd.f32 %v504, %v515
        %v523 = vadd.f32 %v507, %v520
        %vm524 = vcmp.gt.f32.partialorder %v522, 0.0
        %vm525 = vcmp.gt.f32.partialorder %v523, 0.0
        %v526 = vmin.f32 %v522, 0.0
        %v527 = vmin.f32 %v523, 0.0
        %v528 = vmul.f32 %v526, 1.442695
        %v529 = vpow.pop %v528
        %v530 = vmul.f32 %v527, 1.442695
        %v531 = vpow.pop %v530
        %v532 = vsub.f32 %v529, 1.0
        %v533 = vsub.f32 %v531, 1.0
        %v534 = vsel %vm524, %v522, %v532
        %v535 = vsel %vm525, %v523, %v533
        %v536 = vld [vmem:[#allocation3] sm:$0xff]
        %v537 = vunpack.c.l.bf16 %v536
        %v538 = vunpack.c.h.bf16 %v536
        %v539 = vadd.f32 %v534, %v537
        %v540 = vadd.f32 %v535, %v538
        %vm541 = vcmp.gt.f32.partialorder %v539, 0.0
        %vm542 = vcmp.gt.f32.partialorder %v540, 0.0
        %v543 = vmin.f32 %v539, 0.0
        %v544 = vmin.f32 %v540, 0.0
        %v545 = vmul.f32 %v543, 1.442695
        %v546 = vpow.pop %v545
        %v547 = vmul.f32 %v544, 1.442695
        %v548 = vpow.pop %v547
        %v549 = vsub.f32 %v546, 1.0
        %v550 = vsub.f32 %v548, 1.0
        %v551 = vsel %vm541, %v539, %v549
        %v552 = vsel %vm542, %v540, %v550
        %v553 = vpack.c.bf16 %v552, %v551
        %554 = vst [vmem:[#allocation2 + $0x8] sm:$0xff] %v553
        %v555 = vld [vmem:[#allocation2 + $0x8] sm:$0xff]
        %556 = vst [vmem:[#allocation3] sm:$0xff] %v555
        %v557 = vld [vmem:[#allocation2] sm:$0xff]
        %v558 = vld [vmem:[#allocation2 + $0x8] sm:$0xff]
        %s559 = scalar_lea.vmem [#allocation4], 40
        %v560 = vld [vmem:[%s559] sm:$0xf]
        %v561 = vld [vmem:[%s559 + $0x4] sm:$0xf]
        %s562 = scalar_lea.vmem [#allocation4], 48
        %v563 = vld [vmem:[%s562] sm:$0xf]
        %v564 = vld [vmem:[%s562 + $0x4] sm:$0xf]
        %v567 = vunpack.c.l.b16 %v563
        %v568 = vunpack.c.l.b16 %v564
        %v569 = vpack.c.b16 %v568, %v567
        %v571 = vsel %vm207, %v569, 0
        %573 = vmatprep.subr.bf16.mxu0 0
        %574 = vmatpush1.bf16.msra.mxu0 %v558
        %575 = vmatprep.subr.bf16.mxu0 0
        %576 = vmatpush1.bf16.msra.mxu0 0
        %577 = vmatprep.subr.bf16.mxu0 0
        %578 = vmatpush1.bf16.msra.mxu0 0
        %579 = vmatprep.subr.bf16.mxu0 0
        %580 = vmatpush1.bf16.msra.mxu0 0
        %581 = vmatprep.subr.bf16.mxu0 0
        %582 = vmatpush1.bf16.msra.mxu0 0
        %583 = vmatprep.subr.bf16.mxu0 0
        %584 = vmatpush1.bf16.msra.mxu0 0
        %585 = vmatprep.subr.bf16.mxu0 0
        %586 = vmatpush1.bf16.msra.mxu0 0
        %587 = vmatprep.subr.bf16.mxu0 0
        %588 = vmatpush1.bf16.msra.mxu0 0
        %589 = vmatprep.subr.bf16.mxu0 0
        %590 = vmatpush1.bf16.msra.mxu0 0
        %591 = vmatprep.subr.bf16.mxu0 0
        %592 = vmatpush1.bf16.msra.mxu0 0
        %593 = vmatprep.subr.bf16.mxu0 0
        %594 = vmatpush1.bf16.msra.mxu0 0
        %595 = vmatprep.subr.bf16.mxu0 0
        %596 = vmatpush1.bf16.msra.mxu0 0
        %597 = vmatprep.subr.bf16.mxu0 0
        %598 = vmatpush1.bf16.msra.mxu0 0
        %599 = vmatprep.subr.bf16.mxu0 0
        %600 = vmatpush1.bf16.msra.mxu0 0
        %601 = vmatprep.subr.bf16.mxu0 0
        %602 = vmatpush1.bf16.msra.mxu0 0
        %603 = vmatprep.subr.bf16.mxu0 0
        %604 = vmatpush1.bf16.msra.mxu0 0
        %605 = vmatprep.mubr.bf16.mxu0 0
        %606 = vmatmul.mubr.bf16.gmra.mrb[0].mxu0 %v571
        %v607 = vpop.f32.mrb[0].mxu0
        %v608 = vadd.f32 0.0, %v607
        %v609 = vpop.f32.mrb[0].mxu0
        %v610 = vpop.f32.mrb[0].mxu0
        %v611 = vadd.f32 0.0, %v610
        %v612 = vpop.f32.mrb[0].mxu0
        %613 = vdwg.mxu0
        %v616 = vunpack.c.l.b16 %v560
        %v617 = vunpack.c.l.b16 %v561
        %v618 = vpack.c.b16 %v617, %v616
        %621 = vrot.lane.b32.xlu0 %v557, 2
        %v622 = vpop.permute.xlu0 %621
        %623 = vrot.lane.b32.xlu0 %v558, 2
        %v624 = vpop.permute.xlu0 %623
        %vm625 = vcmask 15360
        %v626 = vsel %vm625, %v622, %v624
        %v629 = vsel %vm207, %v618, 0
        %631 = vmatprep.subr.bf16.mxu0 0
        %632 = vmatpush1.bf16.msra.mxu0 %v626
        %633 = vmatprep.subr.bf16.mxu0 0
        %634 = vmatpush1.bf16.msra.mxu0 0
        %635 = vmatprep.subr.bf16.mxu0 0
        %636 = vmatpush1.bf16.msra.mxu0 0
        %637 = vmatprep.subr.bf16.mxu0 0
        %638 = vmatpush1.bf16.msra.mxu0 0
        %639 = vmatprep.subr.bf16.mxu0 0
        %640 = vmatpush1.bf16.msra.mxu0 0
        %641 = vmatprep.subr.bf16.mxu0 0
        %642 = vmatpush1.bf16.msra.mxu0 0
        %643 = vmatprep.subr.bf16.mxu0 0
        %644 = vmatpush1.bf16.msra.mxu0 0
        %645 = vmatprep.subr.bf16.mxu0 0
        %646 = vmatpush1.bf16.msra.mxu0 0
        %647 = vmatprep.subr.bf16.mxu0 0
        %648 = vmatpush1.bf16.msra.mxu0 0
        %649 = vmatprep.subr.bf16.mxu0 0
        %650 = vmatpush1.bf16.msra.mxu0 0
        %651 = vmatprep.subr.bf16.mxu0 0
        %652 = vmatpush1.bf16.msra.mxu0 0
        %653 = vmatprep.subr.bf16.mxu0 0
        %654 = vmatpush1.bf16.msra.mxu0 0
        %655 = vmatprep.subr.bf16.mxu0 0
        %656 = vmatpush1.bf16.msra.mxu0 0
        %657 = vmatprep.subr.bf16.mxu0 0
        %658 = vmatpush1.bf16.msra.mxu0 0
        %659 = vmatprep.subr.bf16.mxu0 0
        %660 = vmatpush1.bf16.msra.mxu0 0
        %661 = vmatprep.subr.bf16.mxu0 0
        %662 = vmatpush1.bf16.msra.mxu0 0
        %663 = vmatprep.mubr.bf16.mxu0 0
        %664 = vmatmul.mubr.bf16.gmra.mrb[0].mxu0 %v629
        %v665 = vpop.f32.mrb[0].mxu0
        %v666 = vadd.f32 %v608, %v665
        %v667 = vpop.f32.mrb[0].mxu0
        %v668 = vpop.f32.mrb[0].mxu0
        %v669 = vadd.f32 %v611, %v668
        %v670 = vpop.f32.mrb[0].mxu0
        %671 = vdwg.mxu0
        %v672 = vld [vmem:[%s2] sm:$0xff]
        %v673 = vld [vmem:[%s2 + $0x8] sm:$0xff]
        %675 = vset.pattern.permute.xlu0 3
        %676 = vperm.xlu0 %675, %v672
        %v677 = vpop.permute.xlu0 %676
        %680 = vset.pattern.permute.xlu0 3
        %681 = vperm.xlu0 %680, %v673
        %v682 = vpop.permute.xlu0 %681
        %v684 = vadd.f32 %v666, %v677
        %v685 = vadd.f32 %v669, %v682
        %vm686 = vcmp.gt.f32.partialorder %v684, 0.0
        %vm687 = vcmp.gt.f32.partialorder %v685, 0.0
        %v688 = vmin.f32 %v684, 0.0
        %v689 = vmin.f32 %v685, 0.0
        %v690 = vmul.f32 %v688, 1.442695
        %v691 = vpow.pop %v690
        %v692 = vmul.f32 %v689, 1.442695
        %v693 = vpow.pop %v692
        %v694 = vsub.f32 %v691, 1.0
        %v695 = vsub.f32 %v693, 1.0
        %v696 = vsel %vm686, %v684, %v694
        %v697 = vsel %vm687, %v685, %v695
        %v698 = vpack.c.bf16 %v697, %v696
        %699 = vst [vmem:[#allocation2 + $0x8] sm:$0xff] %v698
        %v700 = vld [vmem:[#allocation2] sm:$0xff]
        %v701 = vld [vmem:[#allocation2 + $0x8] sm:$0xff]
        %s702 = scalar_lea.vmem [#allocation4], 56
        %v703 = vld [vmem:[%s702] sm:$0xf]
        %v704 = vld [vmem:[%s702 + $0x4] sm:$0xf]
        %s705 = scalar_lea.vmem [#allocation4], 64
        %v706 = vld [vmem:[%s705] sm:$0xf]
        %v707 = vld [vmem:[%s705 + $0x4] sm:$0xf]
        %v710 = vunpack.c.l.b16 %v706
        %v711 = vunpack.c.l.b16 %v707
        %v712 = vpack.c.b16 %v711, %v710
        %v714 = vsel %vm207, %v712, 0
        %716 = vmatprep.subr.bf16.mxu0 0
        %717 = vmatpush1.bf16.msra.mxu0 %v701
        %718 = vmatprep.subr.bf16.mxu0 0
        %719 = vmatpush1.bf16.msra.mxu0 0
        %720 = vmatprep.subr.bf16.mxu0 0
        %721 = vmatpush1.bf16.msra.mxu0 0
        %722 = vmatprep.subr.bf16.mxu0 0
        %723 = vmatpush1.bf16.msra.mxu0 0
        %724 = vmatprep.subr.bf16.mxu0 0
        %725 = vmatpush1.bf16.msra.mxu0 0
        %726 = vmatprep.subr.bf16.mxu0 0
        %727 = vmatpush1.bf16.msra.mxu0 0
        %728 = vmatprep.subr.bf16.mxu0 0
        %729 = vmatpush1.bf16.msra.mxu0 0
        %730 = vmatprep.subr.bf16.mxu0 0
        %731 = vmatpush1.bf16.msra.mxu0 0
        %732 = vmatprep.subr.bf16.mxu0 0
        %733 = vmatpush1.bf16.msra.mxu0 0
        %734 = vmatprep.subr.bf16.mxu0 0
        %735 = vmatpush1.bf16.msra.mxu0 0
        %736 = vmatprep.subr.bf16.mxu0 0
        %737 = vmatpush1.bf16.msra.mxu0 0
        %738 = vmatprep.subr.bf16.mxu0 0
        %739 = vmatpush1.bf16.msra.mxu0 0
        %740 = vmatprep.subr.bf16.mxu0 0
        %741 = vmatpush1.bf16.msra.mxu0 0
        %742 = vmatprep.subr.bf16.mxu0 0
        %743 = vmatpush1.bf16.msra.mxu0 0
        %744 = vmatprep.subr.bf16.mxu0 0
        %745 = vmatpush1.bf16.msra.mxu0 0
        %746 = vmatprep.subr.bf16.mxu0 0
        %747 = vmatpush1.bf16.msra.mxu0 0
        %748 = vmatprep.mubr.bf16.mxu0 0
        %749 = vmatmul.mubr.bf16.gmra.mrb[0].mxu0 %v714
        %v750 = vpop.f32.mrb[0].mxu0
        %v751 = vadd.f32 0.0, %v750
        %v752 = vpop.f32.mrb[0].mxu0
        %v753 = vpop.f32.mrb[0].mxu0
        %v754 = vadd.f32 0.0, %v753
        %v755 = vpop.f32.mrb[0].mxu0
        %756 = vdwg.mxu0
        %v759 = vunpack.c.l.b16 %v703
        %v760 = vunpack.c.l.b16 %v704
        %v761 = vpack.c.b16 %v760, %v759
        %764 = vrot.lane.b32.xlu0 %v700, 2
        %v765 = vpop.permute.xlu0 %764
        %766 = vrot.lane.b32.xlu0 %v701, 2
        %v767 = vpop.permute.xlu0 %766
        %v768 = vsel %vm625, %v765, %v767
        %v771 = vsel %vm207, %v761, 0
        %773 = vmatprep.subr.bf16.mxu0 0
        %774 = vmatpush1.bf16.msra.mxu0 %v768
        %775 = vmatprep.subr.bf16.mxu0 0
        %776 = vmatpush1.bf16.msra.mxu0 0
        %777 = vmatprep.subr.bf16.mxu0 0
        %778 = vmatpush1.bf16.msra.mxu0 0
        %779 = vmatprep.subr.bf16.mxu0 0
        %780 = vmatpush1.bf16.msra.mxu0 0
        %781 = vmatprep.subr.bf16.mxu0 0
        %782 = vmatpush1.bf16.msra.mxu0 0
        %783 = vmatprep.subr.bf16.mxu0 0
        %784 = vmatpush1.bf16.msra.mxu0 0
        %785 = vmatprep.subr.bf16.mxu0 0
        %786 = vmatpush1.bf16.msra.mxu0 0
        %787 = vmatprep.subr.bf16.mxu0 0
        %788 = vmatpush1.bf16.msra.mxu0 0
        %789 = vmatprep.subr.bf16.mxu0 0
        %790 = vmatpush1.bf16.msra.mxu0 0
        %791 = vmatprep.subr.bf16.mxu0 0
        %792 = vmatpush1.bf16.msra.mxu0 0
        %793 = vmatprep.subr.bf16.mxu0 0
        %794 = vmatpush1.bf16.msra.mxu0 0
        %795 = vmatprep.subr.bf16.mxu0 0
        %796 = vmatpush1.bf16.msra.mxu0 0
        %797 = vmatprep.subr.bf16.mxu0 0
        %798 = vmatpush1.bf16.msra.mxu0 0
        %799 = vmatprep.subr.bf16.mxu0 0
        %800 = vmatpush1.bf16.msra.mxu0 0
        %801 = vmatprep.subr.bf16.mxu0 0
        %802 = vmatpush1.bf16.msra.mxu0 0
        %803 = vmatprep.subr.bf16.mxu0 0
        %804 = vmatpush1.bf16.msra.mxu0 0
        %805 = vmatprep.mubr.bf16.mxu0 0
        %806 = vmatmul.mubr.bf16.gmra.mrb[0].mxu0 %v771
        %v807 = vpop.f32.mrb[0].mxu0
        %v808 = vadd.f32 %v751, %v807
        %v809 = vpop.f32.mrb[0].mxu0
        %v810 = vpop.f32.mrb[0].mxu0
        %v811 = vadd.f32 %v754, %v810
        %v812 = vpop.f32.mrb[0].mxu0
        %813 = vdwg.mxu0
        %v814 = vld [vmem:[%s2] sm:$0xff]
        %v815 = vld [vmem:[%s2 + $0x8] sm:$0xff]
        %817 = vset.pattern.permute.xlu0 4
        %818 = vperm.xlu0 %817, %v814
        %v819 = vpop.permute.xlu0 %818
        %822 = vset.pattern.permute.xlu0 4
        %823 = vperm.xlu0 %822, %v815
        %v824 = vpop.permute.xlu0 %823
        %v826 = vadd.f32 %v808, %v819
        %v827 = vadd.f32 %v811, %v824
        %vm828 = vcmp.gt.f32.partialorder %v826, 0.0
        %vm829 = vcmp.gt.f32.partialorder %v827, 0.0
        %v830 = vmin.f32 %v826, 0.0
        %v831 = vmin.f32 %v827, 0.0
        %v832 = vmul.f32 %v830, 1.442695
        %v833 = vpow.pop %v832
        %v834 = vmul.f32 %v831, 1.442695
        %v835 = vpow.pop %v834
        %v836 = vsub.f32 %v833, 1.0
        %v837 = vsub.f32 %v835, 1.0
        %v838 = vsel %vm828, %v826, %v836
        %v839 = vsel %vm829, %v827, %v837
        %v840 = vld [vmem:[#allocation3] sm:$0xff]
        %v841 = vunpack.c.l.bf16 %v840
        %v842 = vunpack.c.h.bf16 %v840
        %v843 = vadd.f32 %v838, %v841
        %v844 = vadd.f32 %v839, %v842
        %vm845 = vcmp.gt.f32.partialorder %v843, 0.0
        %vm846 = vcmp.gt.f32.partialorder %v844, 0.0
        %v847 = vmin.f32 %v843, 0.0
        %v848 = vmin.f32 %v844, 0.0
        %v849 = vmul.f32 %v847, 1.442695
        %v850 = vpow.pop %v849
        %v851 = vmul.f32 %v848, 1.442695
        %v852 = vpow.pop %v851
        %v853 = vsub.f32 %v850, 1.0
        %v854 = vsub.f32 %v852, 1.0
        %v855 = vsel %vm845, %v843, %v853
        %v856 = vsel %vm846, %v844, %v854
        %v857 = vpack.c.bf16 %v856, %v855
        %858 = vst [vmem:[#allocation2 + $0x8] sm:$0xff] %v857
        %v859 = vld [vmem:[#allocation2 + $0x8] sm:$0xff]
        %s860 = scalar_lea.vmem [#allocation4], 104
        %v861 = vld [vmem:[%s860] sm:$0xf]
        %v862 = vld [vmem:[%s860 + $0x4] sm:$0xf]
        %v863 = vld [vmem:[%s2] sm:$0xff]
        %v864 = vld [vmem:[%s2 + $0x8] sm:$0xff]
        %866 = vset.pattern.permute.xlu0 7
        %867 = vperm.xlu0 %866, %v863
        %v868 = vpop.permute.xlu0 %867
        %871 = vset.pattern.permute.xlu0 7
        %872 = vperm.xlu0 %871, %v864
        %v873 = vpop.permute.xlu0 %872
        %v877 = vunpack.c.l.b16 %v861
        %v878 = vunpack.c.l.b16 %v862
        %v879 = vpack.c.b16 %v878, %v877
        %v881 = vsel %vm207, %v879, 0
        %883 = vmatprep.subr.bf16.mxu0 0
        %884 = vmatpush1.bf16.msra.mxu0 %v859
        %885 = vmatprep.subr.bf16.mxu0 0
        %886 = vmatpush1.bf16.msra.mxu0 0
        %887 = vmatprep.subr.bf16.mxu0 0
        %888 = vmatpush1.bf16.msra.mxu0 0
        %889 = vmatprep.subr.bf16.mxu0 0
        %890 = vmatpush1.bf16.msra.mxu0 0
        %891 = vmatprep.subr.bf16.mxu0 0
        %892 = vmatpush1.bf16.msra.mxu0 0
        %893 = vmatprep.subr.bf16.mxu0 0
        %894 = vmatpush1.bf16.msra.mxu0 0
        %895 = vmatprep.subr.bf16.mxu0 0
        %896 = vmatpush1.bf16.msra.mxu0 0
        %897 = vmatprep.subr.bf16.mxu0 0
        %898 = vmatpush1.bf16.msra.mxu0 0
        %899 = vmatprep.subr.bf16.mxu0 0
        %900 = vmatpush1.bf16.msra.mxu0 0
        %901 = vmatprep.subr.bf16.mxu0 0
        %902 = vmatpush1.bf16.msra.mxu0 0
        %903 = vmatprep.subr.bf16.mxu0 0
        %904 = vmatpush1.bf16.msra.mxu0 0
        %905 = vmatprep.subr.bf16.mxu0 0
        %906 = vmatpush1.bf16.msra.mxu0 0
        %907 = vmatprep.subr.bf16.mxu0 0
        %908 = vmatpush1.bf16.msra.mxu0 0
        %909 = vmatprep.subr.bf16.mxu0 0
        %910 = vmatpush1.bf16.msra.mxu0 0
        %911 = vmatprep.subr.bf16.mxu0 0
        %912 = vmatpush1.bf16.msra.mxu0 0
        %913 = vmatprep.subr.bf16.mxu0 0
        %914 = vmatpush1.bf16.msra.mxu0 0
        %915 = vmatprep.mubr.bf16.mxu0 0
        %916 = vmatmul.mubr.bf16.gmra.mrb[0].mxu0 %v881
        %v917 = vpop.f32.mrb[0].mxu0
        %v918 = vadd.f32 %v868, %v917
        %v919 = vpop.f32.mrb[0].mxu0
        %v920 = vpop.f32.mrb[0].mxu0
        %v921 = vadd.f32 %v873, %v920
        %v922 = vpop.f32.mrb[0].mxu0
        %923 = vdwg.mxu0
        %v924 = vpack.c.bf16 %v921, %v918
        %925 = vst [vmem:[#allocation3] sm:$0xff] %v924
        %v926 = vld [vmem:[#allocation2] sm:$0xff]
        %v927 = vld [vmem:[#allocation2 + $0x8] sm:$0xff]
        %s928 = scalar_lea.vmem [#allocation4], 72
        %v929 = vld [vmem:[%s928] sm:$0xf]
        %v930 = vld [vmem:[%s928 + $0x4] sm:$0xf]
        %s931 = scalar_lea.vmem [#allocation4], 80
        %v932 = vld [vmem:[%s931] sm:$0xf]
        %v933 = vld [vmem:[%s931 + $0x4] sm:$0xf]
        %v936 = vunpack.c.l.b16 %v932
        %v937 = vunpack.c.l.b16 %v933
        %v938 = vpack.c.b16 %v937, %v936
        %v940 = vsel %vm207, %v938, 0
        %942 = vmatprep.subr.bf16.mxu0 0
        %943 = vmatpush1.bf16.msra.mxu0 %v927
        %944 = vmatprep.subr.bf16.mxu0 0
        %945 = vmatpush1.bf16.msra.mxu0 0
        %946 = vmatprep.subr.bf16.mxu0 0
        %947 = vmatpush1.bf16.msra.mxu0 0
        %948 = vmatprep.subr.bf16.mxu0 0
        %949 = vmatpush1.bf16.msra.mxu0 0
        %950 = vmatprep.subr.bf16.mxu0 0
        %951 = vmatpush1.bf16.msra.mxu0 0
        %952 = vmatprep.subr.bf16.mxu0 0
        %953 = vmatpush1.bf16.msra.mxu0 0
        %954 = vmatprep.subr.bf16.mxu0 0
        %955 = vmatpush1.bf16.msra.mxu0 0
        %956 = vmatprep.subr.bf16.mxu0 0
        %957 = vmatpush1.bf16.msra.mxu0 0
        %958 = vmatprep.subr.bf16.mxu0 0
        %959 = vmatpush1.bf16.msra.mxu0 0
        %960 = vmatprep.subr.bf16.mxu0 0
        %961 = vmatpush1.bf16.msra.mxu0 0
        %962 = vmatprep.subr.bf16.mxu0 0
        %963 = vmatpush1.bf16.msra.mxu0 0
        %964 = vmatprep.subr.bf16.mxu0 0
        %965 = vmatpush1.bf16.msra.mxu0 0
        %966 = vmatprep.subr.bf16.mxu0 0
        %967 = vmatpush1.bf16.msra.mxu0 0
        %968 = vmatprep.subr.bf16.mxu0 0
        %969 = vmatpush1.bf16.msra.mxu0 0
        %970 = vmatprep.subr.bf16.mxu0 0
        %971 = vmatpush1.bf16.msra.mxu0 0
        %972 = vmatprep.subr.bf16.mxu0 0
        %973 = vmatpush1.bf16.msra.mxu0 0
        %974 = vmatprep.mubr.bf16.mxu0 0
        %975 = vmatmul.mubr.bf16.gmra.mrb[0].mxu0 %v940
        %v976 = vpop.f32.mrb[0].mxu0
        %v977 = vadd.f32 0.0, %v976
        %v978 = vpop.f32.mrb[0].mxu0
        %v979 = vpop.f32.mrb[0].mxu0
        %v980 = vadd.f32 0.0, %v979
        %v981 = vpop.f32.mrb[0].mxu0
        %982 = vdwg.mxu0
        %v985 = vunpack.c.l.b16 %v929
        %v986 = vunpack.c.l.b16 %v930
        %v987 = vpack.c.b16 %v986, %v985
        %990 = vrot.lane.b32.xlu0 %v926, 4
        %v991 = vpop.permute.xlu0 %990
        %992 = vrot.lane.b32.xlu0 %v927, 4
        %v993 = vpop.permute.xlu0 %992
        %vm994 = vcmask 31744
        %v995 = vsel %vm994, %v991, %v993
        %v998 = vsel %vm207, %v987, 0
        %1000 = vmatprep.subr.bf16.mxu0 0
        %1001 = vmatpush1.bf16.msra.mxu0 %v995
        %1002 = vmatprep.subr.bf16.mxu0 0
        %1003 = vmatpush1.bf16.msra.mxu0 0
        %1004 = vmatprep.subr.bf16.mxu0 0
        %1005 = vmatpush1.bf16.msra.mxu0 0
        %1006 = vmatprep.subr.bf16.mxu0 0
        %1007 = vmatpush1.bf16.msra.mxu0 0
        %1008 = vmatprep.subr.bf16.mxu0 0
        %1009 = vmatpush1.bf16.msra.mxu0 0
        %1010 = vmatprep.subr.bf16.mxu0 0
        %1011 = vmatpush1.bf16.msra.mxu0 0
        %1012 = vmatprep.subr.bf16.mxu0 0
        %1013 = vmatpush1.bf16.msra.mxu0 0
        %1014 = vmatprep.subr.bf16.mxu0 0
        %1015 = vmatpush1.bf16.msra.mxu0 0
        %1016 = vmatprep.subr.bf16.mxu0 0
        %1017 = vmatpush1.bf16.msra.mxu0 0
        %1018 = vmatprep.subr.bf16.mxu0 0
        %1019 = vmatpush1.bf16.msra.mxu0 0
        %1020 = vmatprep.subr.bf16.mxu0 0
        %1021 = vmatpush1.bf16.msra.mxu0 0
        %1022 = vmatprep.subr.bf16.mxu0 0
        %1023 = vmatpush1.bf16.msra.mxu0 0
        %1024 = vmatprep.subr.bf16.mxu0 0
        %1025 = vmatpush1.bf16.msra.mxu0 0
        %1026 = vmatprep.subr.bf16.mxu0 0
        %1027 = vmatpush1.bf16.msra.mxu0 0
        %1028 = vmatprep.subr.bf16.mxu0 0
        %1029 = vmatpush1.bf16.msra.mxu0 0
        %1030 = vmatprep.subr.bf16.mxu0 0
        %1031 = vmatpush1.bf16.msra.mxu0 0
        %1032 = vmatprep.mubr.bf16.mxu0 0
        %1033 = vmatmul.mubr.bf16.gmra.mrb[0].mxu0 %v998
        %v1034 = vpop.f32.mrb[0].mxu0
        %v1035 = vadd.f32 %v977, %v1034
        %v1036 = vpop.f32.mrb[0].mxu0
        %v1037 = vpop.f32.mrb[0].mxu0
        %v1038 = vadd.f32 %v980, %v1037
        %v1039 = vpop.f32.mrb[0].mxu0
        %1040 = vdwg.mxu0
        %v1041 = vld [vmem:[%s2] sm:$0xff]
        %v1042 = vld [vmem:[%s2 + $0x8] sm:$0xff]
        %1044 = vset.pattern.permute.xlu0 5
        %1045 = vperm.xlu0 %1044, %v1041
        %v1046 = vpop.permute.xlu0 %1045
        %1049 = vset.pattern.permute.xlu0 5
        %1050 = vperm.xlu0 %1049, %v1042
        %v1051 = vpop.permute.xlu0 %1050
        %v1053 = vadd.f32 %v1035, %v1046
        %v1054 = vadd.f32 %v1038, %v1051
        %vm1055 = vcmp.gt.f32.partialorder %v1053, 0.0
        %vm1056 = vcmp.gt.f32.partialorder %v1054, 0.0
        %v1057 = vmin.f32 %v1053, 0.0
        %v1058 = vmin.f32 %v1054, 0.0
        %v1059 = vmul.f32 %v1057, 1.442695
        %v1060 = vpow.pop %v1059
        %v1061 = vmul.f32 %v1058, 1.442695
        %v1062 = vpow.pop %v1061
        %v1063 = vsub.f32 %v1060, 1.0
        %v1064 = vsub.f32 %v1062, 1.0
        %v1065 = vsel %vm1055, %v1053, %v1063
        %v1066 = vsel %vm1056, %v1054, %v1064
        %v1067 = vpack.c.bf16 %v1066, %v1065
        %1068 = vst [vmem:[#allocation2 + $0x8] sm:$0xff] %v1067
        %v1069 = vld [vmem:[#allocation2] sm:$0xff]
        %v1070 = vld [vmem:[#allocation2 + $0x8] sm:$0xff]
        %s1071 = scalar_lea.vmem [#allocation4], 88
        %v1072 = vld [vmem:[%s1071] sm:$0xf]
        %v1073 = vld [vmem:[%s1071 + $0x4] sm:$0xf]
        %s1074 = scalar_lea.vmem [#allocation4], 96
        %v1075 = vld [vmem:[%s1074] sm:$0xf]
        %v1076 = vld [vmem:[%s1074 + $0x4] sm:$0xf]
        %v1079 = vunpack.c.l.b16 %v1075
        %v1080 = vunpack.c.l.b16 %v1076
        %v1081 = vpack.c.b16 %v1080, %v1079
        %v1083 = vsel %vm207, %v1081, 0
        %1085 = vmatprep.subr.bf16.mxu0 0
        %1086 = vmatpush1.bf16.msra.mxu0 %v1070
        %1087 = vmatprep.subr.bf16.mxu0 0
        %1088 = vmatpush1.bf16.msra.mxu0 0
        %1089 = vmatprep.subr.bf16.mxu0 0
        %1090 = vmatpush1.bf16.msra.mxu0 0
        %1091 = vmatprep.subr.bf16.mxu0 0
        %1092 = vmatpush1.bf16.msra.mxu0 0
        %1093 = vmatprep.subr.bf16.mxu0 0
        %1094 = vmatpush1.bf16.msra.mxu0 0
        %1095 = vmatprep.subr.bf16.mxu0 0
        %1096 = vmatpush1.bf16.msra.mxu0 0
        %1097 = vmatprep.subr.bf16.mxu0 0
        %1098 = vmatpush1.bf16.msra.mxu0 0
        %1099 = vmatprep.subr.bf16.mxu0 0
        %1100 = vmatpush1.bf16.msra.mxu0 0
        %1101 = vmatprep.subr.bf16.mxu0 0
        %1102 = vmatpush1.bf16.msra.mxu0 0
        %1103 = vmatprep.subr.bf16.mxu0 0
        %1104 = vmatpush1.bf16.msra.mxu0 0
        %1105 = vmatprep.subr.bf16.mxu0 0
        %1106 = vmatpush1.bf16.msra.mxu0 0
        %1107 = vmatprep.subr.bf16.mxu0 0
        %1108 = vmatpush1.bf16.msra.mxu0 0
        %1109 = vmatprep.subr.bf16.mxu0 0
        %1110 = vmatpush1.bf16.msra.mxu0 0
        %1111 = vmatprep.subr.bf16.mxu0 0
        %1112 = vmatpush1.bf16.msra.mxu0 0
        %1113 = vmatprep.subr.bf16.mxu0 0
        %1114 = vmatpush1.bf16.msra.mxu0 0
        %1115 = vmatprep.subr.bf16.mxu0 0
        %1116 = vmatpush1.bf16.msra.mxu0 0
        %1117 = vmatprep.mubr.bf16.mxu0 0
        %1118 = vmatmul.mubr.bf16.gmra.mrb[0].mxu0 %v1083
        %v1119 = vpop.f32.mrb[0].mxu0
        %v1120 = vadd.f32 0.0, %v1119
        %v1121 = vpop.f32.mrb[0].mxu0
        %v1122 = vpop.f32.mrb[0].mxu0
        %v1123 = vadd.f32 0.0, %v1122
        %v1124 = vpop.f32.mrb[0].mxu0
        %1125 = vdwg.mxu0
        %v1128 = vunpack.c.l.b16 %v1072
        %v1129 = vunpack.c.l.b16 %v1073
        %v1130 = vpack.c.b16 %v1129, %v1128
        %1133 = vrot.lane.b32.xlu0 %v1069, 4
        %v1134 = vpop.permute.xlu0 %1133
        %1135 = vrot.lane.b32.xlu0 %v1070, 4
        %v1136 = vpop.permute.xlu0 %1135
        %v1137 = vsel %vm994, %v1134, %v1136
        %v1140 = vsel %vm207, %v1130, 0
        %1142 = vmatprep.subr.bf16.mxu0 0
        %1143 = vmatpush1.bf16.msra.mxu0 %v1137
        %1144 = vmatprep.subr.bf16.mxu0 0
        %1145 = vmatpush1.bf16.msra.mxu0 0
        %1146 = vmatprep.subr.bf16.mxu0 0
        %1147 = vmatpush1.bf16.msra.mxu0 0
        %1148 = vmatprep.subr.bf16.mxu0 0
        %1149 = vmatpush1.bf16.msra.mxu0 0
        %1150 = vmatprep.subr.bf16.mxu0 0
        %1151 = vmatpush1.bf16.msra.mxu0 0
        %1152 = vmatprep.subr.bf16.mxu0 0
        %1153 = vmatpush1.bf16.msra.mxu0 0
        %1154 = vmatprep.subr.bf16.mxu0 0
        %1155 = vmatpush1.bf16.msra.mxu0 0
        %1156 = vmatprep.subr.bf16.mxu0 0
        %1157 = vmatpush1.bf16.msra.mxu0 0
        %1158 = vmatprep.subr.bf16.mxu0 0
        %1159 = vmatpush1.bf16.msra.mxu0 0
        %1160 = vmatprep.subr.bf16.mxu0 0
        %1161 = vmatpush1.bf16.msra.mxu0 0
        %1162 = vmatprep.subr.bf16.mxu0 0
        %1163 = vmatpush1.bf16.msra.mxu0 0
        %1164 = vmatprep.subr.bf16.mxu0 0
        %1165 = vmatpush1.bf16.msra.mxu0 0
        %1166 = vmatprep.subr.bf16.mxu0 0
        %1167 = vmatpush1.bf16.msra.mxu0 0
        %1168 = vmatprep.subr.bf16.mxu0 0
        %1169 = vmatpush1.bf16.msra.mxu0 0
        %1170 = vmatprep.subr.bf16.mxu0 0
        %1171 = vmatpush1.bf16.msra.mxu0 0
        %1172 = vmatprep.subr.bf16.mxu0 0
        %1173 = vmatpush1.bf16.msra.mxu0 0
        %1174 = vmatprep.mubr.bf16.mxu0 0
        %1175 = vmatmul.mubr.bf16.gmra.mrb[0].mxu0 %v1140
        %v1176 = vpop.f32.mrb[0].mxu0
        %v1177 = vadd.f32 %v1120, %v1176
        %v1178 = vpop.f32.mrb[0].mxu0
        %v1179 = vpop.f32.mrb[0].mxu0
        %v1180 = vadd.f32 %v1123, %v1179
        %v1181 = vpop.f32.mrb[0].mxu0
        %1182 = vdwg.mxu0
        %v1183 = vld [vmem:[%s2] sm:$0xff]
        %v1184 = vld [vmem:[%s2 + $0x8] sm:$0xff]
        %1186 = vset.pattern.permute.xlu0 6
        %1187 = vperm.xlu0 %1186, %v1183
        %v1188 = vpop.permute.xlu0 %1187
        %1191 = vset.pattern.permute.xlu0 6
        %1192 = vperm.xlu0 %1191, %v1184
        %v1193 = vpop.permute.xlu0 %1192
        %v1195 = vadd.f32 %v1177, %v1188
        %v1196 = vadd.f32 %v1180, %v1193
        %vm1197 = vcmp.gt.f32.partialorder %v1195, 0.0
        %vm1198 = vcmp.gt.f32.partialorder %v1196, 0.0
        %v1199 = vmin.f32 %v1195, 0.0
        %v1200 = vmin.f32 %v1196, 0.0
        %v1201 = vmul.f32 %v1199, 1.442695
        %v1202 = vpow.pop %v1201
        %v1203 = vmul.f32 %v1200, 1.442695
        %v1204 = vpow.pop %v1203
        %v1205 = vsub.f32 %v1202, 1.0
        %v1206 = vsub.f32 %v1204, 1.0
        %v1207 = vsel %vm1197, %v1195, %v1205
        %v1208 = vsel %vm1198, %v1196, %v1206
        %v1209 = vld [vmem:[#allocation3] sm:$0xff]
        %v1210 = vunpack.c.l.bf16 %v1209
        %v1211 = vunpack.c.h.bf16 %v1209
        %v1212 = vadd.f32 %v1207, %v1210
        %v1213 = vadd.f32 %v1208, %v1211
        %vm1214 = vcmp.gt.f32.partialorder %v1212, 0.0
        %vm1215 = vcmp.gt.f32.partialorder %v1213, 0.0
        %v1216 = vmin.f32 %v1212, 0.0
        %v1217 = vmin.f32 %v1213, 0.0
        %v1218 = vmul.f32 %v1216, 1.442695
        %v1219 = vpow.pop %v1218
        %v1220 = vmul.f32 %v1217, 1.442695
        %v1221 = vpow.pop %v1220
        %v1222 = vsub.f32 %v1219, 1.0
        %v1223 = vsub.f32 %v1221, 1.0
        %v1224 = vsel %vm1214, %v1212, %v1222
        %v1225 = vsel %vm1215, %v1213, %v1223
        %1226 = vst [vmem:[%s176] sm:$0xff] %v1224
        %1227 = vst [vmem:[%s176 + $0x8] sm:$0xff] %v1225
        %s1228 = sand.u32 %s94, 1
        %s1229 = scalar_lea.sflag [#allocation6], %s1228
        %s1230 = sand.u32 %s94, 1
        %s1231 = smul.addr %s1230, 16
        %s1232 = scalar_lea.vmem [#allocation7], %s1231
        // Predicated region
        $region37: #{tpu_custom_call.1} parent=31 // pred_check
          %p1233 = pneg %p104
        $region38: #{tpu_custom_call.1} parent=31 // pred_check_branch
          %1235 = sbr.rel (%p1233) target = $region40
        $region39: #{tpu_custom_call.1} parent=31 // pred_region
          %s1237 = ssub.s32 256, 256
          %1238 = vsyncadd %s1229, %s1237
          %s1239 = smul.addr %s18, 2
          %s1240 = smul.addr %s1239, 128
          %s1241 = scalar_lea.hbm %s3, %s1240
          %s1242 = sshll.u32 %s1232, 4
          %s1243 = int_to_ptr.vmem [resolvable:$true] %s1242
          %1248 = dma.vmem_to_hbm [thread:$0]  %s1243, 256, %s1241, %s1229, 128, 128, 8
        $region40: #{tpu_custom_call.1} parent=31 // pred_fallthru
          _
      $region32: #{tpu_custom_call.1} parent=5 // pred_fallthru
        _
      %p1249 = scmp.le.s32.totalorder 2, %s13
      // Predicated region
      $region41: #{tpu_custom_call.1} parent=5 // pred_check
        %p1250 = pneg %p1249
      $region42: #{tpu_custom_call.1} parent=5 // pred_check_branch
        %1252 = sbr.rel (%p1250) target = $region44
      $region43: #{tpu_custom_call.1} parent=5 // pred_region
        %s1253 = ssub.s32 %s13, 2
        // Predicated region
        $region45: #{tpu_custom_call.1} parent=43 // pred_check
          %p1254 = pneg %p110
        $region46: #{tpu_custom_call.1} parent=43 // pred_check_branch
          %1256 = sbr.rel (%p1254) target = $region48
        $region47: #{tpu_custom_call.1} parent=43 // pred_region
          %s1257 = sand.u32 %s95, 1
          %s1258 = scalar_lea.sflag [#allocation6], %s1257
          %s1259 = sand.u32 %s95, 1
          %s1260 = smul.addr %s1259, 16
          %s1261 = scalar_lea.vmem [#allocation7], %s1260
          %1262 = dma.done %s1258, 256
        $region48: #{tpu_custom_call.1} parent=43 // pred_fallthru
          _
      $region44: #{tpu_custom_call.1} parent=5 // pred_fallthru
        _
    $region6: #{tpu_custom_call.1} parent=1 // loop_footer
      %s17 = sadd.s32 1, %s13
    $region7: #{tpu_custom_call.1} parent=1 // loop_footer_branch
      %12 = sbr.rel target = $region3
    $region8: #{tpu_custom_call.1} parent=1 // loop_exit
      _
    %1263 = vsyncpa [#allocation5], 1
    %s1264 = scalar_lea.sflag [#allocation5], 1
    %1265 = vsyncpa %s1264, 1
    %1266 = vsyncpa [#allocation6], 1
    %s1267 = scalar_lea.sflag [#allocation6], 1
    %1268 = vsyncpa %s1267, 1

// kernel: tpu_custom_call.1
$region0: #{tpu_custom_call.1}
  #allocation0 [shape = 'u32[]', space=smem, size = 0x4, offset = 0x4, fixed_abs, tag = 'smem constant byte address 0x4 - core index']
  #allocation1 [shape = 'u32[144,128]{1,0:T(1,128)}', space=vmem, size = 0x12000, scoped, tag = 'internal scratch']
  #allocation2 [shape = 'bf16[16,256]{1,0:T(16,128)(2,1)}', space=vmem, size = 0x2000, scoped, tag = 'scratch operand']
  #allocation3 [shape = 'bf16[16,128]{1,0:T(16,128)(2,1)}', space=vmem, size = 0x1000, scoped, tag = 'scratch operand']
  %s0 = inlined_call_operand.vmem [shape: bf16[2,8,128], index: 0, kind: input, shape index: {}]
  %s1 = inlined_call_operand.hbm [shape: bf16[14,16,16], index: 1, kind: input, shape index: {}]
  %s2 = inlined_call_operand.vmem [shape: f32[16,8], index: 2, kind: input, shape index: {}]
  %s3 = inlined_call_operand.hbm [shape: f32[2,16,128], index: 3, kind: output, shape index: {}]
  %s4 = sld [smem:[#allocation0]]
  $region49: #{tpu_custom_call.1} parent=0
    _
  %s6 = ssub.s32 1, %s4
  %s7 = scalar_select 0, %s6, %s4
  $region1: #{tpu_custom_call.1} parent=0
    #allocation4 [shape = 'u8[57344]{0}', space=vmem, size = 0xe000, scoped, tag = 'input window, operand 1, single buffered']
    #allocation5 [shape = 's32[2]{0}', space=sflag, size = 0x8, scoped, tag = 'scoped memory for tpu_custom_call.1']
    #allocation6 [shape = 's32[2]{0}', space=sflag, size = 0x8, scoped, tag = 'scoped memory for tpu_custom_call.1']
    #allocation7 [shape = 'u8[16384]{0}', space=vmem, size = 0x4000, scoped, tag = 'output window, operand 0']
    %8 = vsyncpa [#allocation5], 0
    %9 = vsyncpa [#allocation6], 0
    %s10 = scalar_lea.sflag [#allocation6], 1
    %11 = vsyncpa %s10, 0
    loop: start=0, step=1, limit=4
    $region2: #{tpu_custom_call.1} parent=1 // loop_pre_header
      _
    $region3: #{tpu_custom_call.1} parent=1 // loop_header
      %s13 = sphi 0, %s17
      %p14 = scmp.ge.s32.totalorder %s13, 4
      %s23 = sphi 0, %s25
      %s26 = sphi 0, %s23
      %s27 = sphi 0, %s26
      %s43 = sphi 0, %s27
      %s47 = sphi 0, %s47
      %s49 = sphi 0, %s47
      %s50 = sphi 0, %s49
      %s64 = sphi 0, %s50
      %s68 = sphi 0, %s68
      %s70 = sphi 0, %s68
      %s71 = sphi 0, %s70
      %s85 = sphi 0, %s71
      %s91 = sphi 0, %s93
      %s94 = sphi 0, %s91
      %s95 = sphi 0, %s94
      %s111 = sphi 0, %s95
    $region4: #{tpu_custom_call.1} parent=1 // loop_header_branch
      %16 = sbr.rel (%p14) target = $region8
    $region5: #{tpu_custom_call.1} parent=1 // loop_body
      %s18 = ssub.s32 %s13, 1
      %s19 = ssub.s32 %s13, 2
      %s20 = sadd.s32 %s13, 1
      %s21 = ssub.s32 %s13, %s20
      %p22 = scmp.eq.s32.totalorder %s21, 0
      %s24 = sadd.s32 %s23, 1
      %s25 = scalar_select %p22, %s23, %s24
      %p28 = pneg %p22
      %p29 = scmp.eq.s32.totalorder %s13, 1
      %p30 = por %p28, %p29
      %p31 = scmp.ne.s32.totalorder %s23, %s26
      %p32 = scmp.eq.s32.totalorder %s13, 0
      %p33 = por %p31, %p32
      %p34 = scmp.ne.s32.totalorder %s23, %s26
      %p35 = scmp.eq.s32.totalorder %s18, 1
      %p36 = por %p34, %p35
      %p37 = scmp.ne.s32.totalorder %s26, %s27
      %p38 = scmp.eq.s32.totalorder %s18, 0
      %p39 = por %p37, %p38
      %p40 = scmp.ne.s32.totalorder %s26, %s27
      %p41 = scmp.eq.s32.totalorder %s19, 1
      %p42 = por %p40, %p41
      %p44 = scmp.ne.s32.totalorder %s27, %s43
      %p45 = scmp.eq.s32.totalorder %s19, 0
      %p46 = por %p44, %p45
      %s48 = sadd.s32 %s47, 1
      %p51 = scmp.eq.s32.totalorder %s13, 1
      %p52 = scmp.ne.s32.totalorder %s47, %s49
      %p53 = scmp.eq.s32.totalorder %s13, 0
      %p54 = por %p52, %p53
      %p55 = scmp.ne.s32.totalorder %s47, %s49
      %p56 = scmp.eq.s32.totalorder %s18, 1
      %p57 = por %p55, %p56
      %p58 = scmp.ne.s32.totalorder %s49, %s50
      %p59 = scmp.eq.s32.totalorder %s18, 0
      %p60 = por %p58, %p59
      %p61 = scmp.ne.s32.totalorder %s49, %s50
      %p62 = scmp.eq.s32.totalorder %s19, 1
      %p63 = por %p61, %p62
      %p65 = scmp.ne.s32.totalorder %s50, %s64
      %p66 = scmp.eq.s32.totalorder %s19, 0
      %p67 = por %p65, %p66
      %s69 = sadd.s32 %s68, 1
      %p72 = scmp.eq.s32.totalorder %s13, 1
      %p73 = scmp.ne.s32.totalorder %s68, %s70
      %p74 = scmp.eq.s32.totalorder %s13, 0
      %p75 = por %p73, %p74
      %p76 = scmp.ne.s32.totalorder %s68, %s70
      %p77 = scmp.eq.s32.totalorder %s18, 1
      %p78 = por %p76, %p77
      %p79 = scmp.ne.s32.totalorder %s70, %s71
      %p80 = scmp.eq.s32.totalorder %s18, 0
      %p81 = por %p79, %p80
      %p82 = scmp.ne.s32.totalorder %s70, %s71
      %p83 = scmp.eq.s32.totalorder %s19, 1
      %p84 = por %p82, %p83
      %p86 = scmp.ne.s32.totalorder %s71, %s85
      %p87 = scmp.eq.s32.totalorder %s19, 0
      %p88 = por %p86, %p87
      %s89 = ssub.s32 %s13, %s20
      %p90 = scmp.eq.s32.totalorder %s89, 0
      %s92 = sadd.s32 %s91, 1
      %s93 = scalar_select %p90, %s91, %s92
      %p96 = pneg %p90
      %p97 = scmp.eq.s32.totalorder %s13, 1
      %p98 = por %p96, %p97
      %p99 = scmp.ne.s32.totalorder %s91, %s94
      %p100 = scmp.eq.s32.totalorder %s13, 0
      %p101 = por %p99, %p100
      %p102 = scmp.ne.s32.totalorder %s91, %s94
      %p103 = scmp.eq.s32.totalorder %s18, 1
      %p104 = por %p102, %p103
      %p105 = scmp.ne.s32.totalorder %s94, %s95
      %p106 = scmp.eq.s32.totalorder %s18, 0
      %p107 = por %p105, %p106
      %p108 = scmp.ne.s32.totalorder %s94, %s95
      %p109 = scmp.eq.s32.totalorder %s19, 1
      %p110 = por %p108, %p109
      %p112 = scmp.ne.s32.totalorder %s95, %s111
      %p113 = scmp.eq.s32.totalorder %s19, 0
      %p114 = por %p112, %p113
      %p115 = scmp.le.s32.totalorder 1, %s13
      %p116 = scmp.lt.s32.totalorder %s13, 3
      %p117 = pnand %p115, %p116
      %p118 = pneg %p117
      // Predicated region
      $region9: #{tpu_custom_call.1} parent=5 // pred_check
        _
      $region10: #{tpu_custom_call.1} parent=5 // pred_check_branch
        %120 = sbr.rel (%p117) target = $region12
      $region11: #{tpu_custom_call.1} parent=5 // pred_region
        %s121 = ssub.s32 %s13, 1
        // Predicated region
        $region13: #{tpu_custom_call.1} parent=11 // pred_check
          %p122 = pneg %p60
        $region14: #{tpu_custom_call.1} parent=11 // pred_check_branch
          %124 = sbr.rel (%p122) target = $region16
        $region15: #{tpu_custom_call.1} parent=11 // pred_region
          %s126 = ssub.s32 1792, 1792
          %127 = vsyncadd [#allocation5], %s126
          %s128 = sshll.u32 [#allocation4], 4
          %s129 = int_to_ptr.vmem [resolvable:$true] %s128
          %134 = dma.hbm_to_vmem [thread:$0]  %s1, 1792, %s129, [#allocation5], 64, 64, 4
        $region16: #{tpu_custom_call.1} parent=11 // pred_fallthru
          _
        // Predicated region
        $region17: #{tpu_custom_call.1} parent=11 // pred_check
          %p135 = pneg %p81
        $region18: #{tpu_custom_call.1} parent=11 // pred_check_branch
          %137 = sbr.rel (%p135) target = $region20
        $region19: #{tpu_custom_call.1} parent=11 // pred_region
          _
        $region20: #{tpu_custom_call.1} parent=11 // pred_fallthru
          _
      $region12: #{tpu_custom_call.1} parent=5 // pred_fallthru
        _
      %p138 = scmp.lt.s32.totalorder %s13, 2
      // Predicated region
      $region21: #{tpu_custom_call.1} parent=5 // pred_check
        %p139 = pneg %p138
      $region22: #{tpu_custom_call.1} parent=5 // pred_check_branch
        %141 = sbr.rel (%p139) target = $region24
      $region23: #{tpu_custom_call.1} parent=5 // pred_region
        // Predicated region
        $region25: #{tpu_custom_call.1} parent=23 // pred_check
          %p142 = pneg %p33
        $region26: #{tpu_custom_call.1} parent=23 // pred_check_branch
          %144 = sbr.rel (%p142) target = $region28
        $region27: #{tpu_custom_call.1} parent=23 // pred_region
          %p145 = scmp.lt.s32.totalorder %s13, 1
          %s146 = scalar_select %p145, %s13, 1
          %s147 = smul.addr %s146, 4
          %s148 = scalar_lea.vmem %s0, %s147
        $region28: #{tpu_custom_call.1} parent=23 // pred_fallthru
          _
      $region24: #{tpu_custom_call.1} parent=5 // pred_fallthru
        _
      %p149 = scmp.le.s32.totalorder 1, %s13
      %p150 = scmp.lt.s32.totalorder %s13, 3
      %p151 = pnand %p149, %p150
      %p152 = pneg %p151
      // Predicated region
      $region29: #{tpu_custom_call.1} parent=5 // pred_check
        _
      $region30: #{tpu_custom_call.1} parent=5 // pred_check_branch
        %154 = sbr.rel (%p151) target = $region32
      $region31: #{tpu_custom_call.1} parent=5 // pred_region
        %s155 = ssub.s32 %s13, 1
        // Predicated region
        $region33: #{tpu_custom_call.1} parent=31 // pred_check
          %p156 = pneg %p60
        $region34: #{tpu_custom_call.1} parent=31 // pred_check_branch
          %158 = sbr.rel (%p156) target = $region36
        $region35: #{tpu_custom_call.1} parent=31 // pred_region
          %159 = dma.done [#allocation5], 1792
        $region36: #{tpu_custom_call.1} parent=31 // pred_fallthru
          _
        %p160 = scmp.lt.s32.totalorder %s18, 1
        %s161 = scalar_select %p160, %s18, 1
        %s162 = smul.addr %s161, 4
        %s163 = scalar_lea.vmem %s0, %s162
        %p164 = pneg %p39
        %p165 = pneg %p36
        %p166 = pneg %p60
        %p167 = pneg %p57
        %p168 = pneg %p81
        %p169 = pneg %p78
        %p170 = pneg %p107
        %p171 = pneg %p104
        %s172 = sand.u32 %s94, 1
        %s173 = scalar_lea.sflag [#allocation6], %s172
        %s174 = sand.u32 %s94, 1
        %s175 = smul.addr %s174, 16
        %s176 = scalar_lea.vmem [#allocation7], %s175
        %p177 = scmp.lt.s32.totalorder %s18, 1
        %s178 = scalar_select %p177, %s18, 1
        %s179 = smul.addr %s178, 4
        %s180 = scalar_lea.vmem %s0, %s179
        %182 = vst [vmem:[#allocation2] sm:$0xff] 0
        %183 = vst [vmem:[#allocation2 + $0x8] sm:$0xf0] 0
        %v184 = vld [vmem:[%s180] sm:$0xf]
        %185 = vst [vmem:[#allocation2 + $0x8] sm:$0xf] %v184
        %v186 = vld [vmem:[#allocation2 + $0x8] sm:$0xff]
        %s187 = scalar_lea.vmem [#allocation4], 32
        %v188 = vld [vmem:[%s187] sm:$0xf]
        %v189 = vld [vmem:[%s187 + $0x4] sm:$0xf]
        %v190 = vld [vmem:[%s2] sm:$0xff]
        %v191 = vld [vmem:[%s2 + $0x8] sm:$0xff]
        %193 = vset.pattern.permute.xlu0 2
        %194 = vperm.xlu0 %193, %v190
        %v195 = vpop.permute.xlu0 %194
        %198 = vset.pattern.permute.xlu0 2
        %199 = vperm.xlu0 %198, %v191
        %v200 = vpop.permute.xlu0 %199
        %v204 = vunpack.c.l.b16 %v188
        %v205 = vunpack.c.l.b16 %v189
        %v206 = vpack.c.b16 %v205, %v204
        %vm207 = vcmask 130048
        %v209 = vsel %vm207, %v206, 0
        %211 = vmatprep.subr.bf16.mxu0 0
        %212 = vmatpush1.bf16.msra.mxu0 %v186
        %213 = vmatprep.subr.bf16.mxu0 0
        %214 = vmatpush1.bf16.msra.mxu0 0
        %215 = vmatprep.subr.bf16.mxu0 0
        %216 = vmatpush1.bf16.msra.mxu0 0
        %217 = vmatprep.subr.bf16.mxu0 0
        %218 = vmatpush1.bf16.msra.mxu0 0
        %219 = vmatprep.subr.bf16.mxu0 0
        %220 = vmatpush1.bf16.msra.mxu0 0
        %221 = vmatprep.subr.bf16.mxu0 0
        %222 = vmatpush1.bf16.msra.mxu0 0
        %223 = vmatprep.subr.bf16.mxu0 0
        %224 = vmatpush1.bf16.msra.mxu0 0
        %225 = vmatprep.subr.bf16.mxu0 0
        %226 = vmatpush1.bf16.msra.mxu0 0
        %227 = vmatprep.subr.bf16.mxu0 0
        %228 = vmatpush1.bf16.msra.mxu0 0
        %229 = vmatprep.subr.bf16.mxu0 0
        %230 = vmatpush1.bf16.msra.mxu0 0
        %231 = vmatprep.subr.bf16.mxu0 0
        %232 = vmatpush1.bf16.msra.mxu0 0
        %233 = vmatprep.subr.bf16.mxu0 0
        %234 = vmatpush1.bf16.msra.mxu0 0
        %235 = vmatprep.subr.bf16.mxu0 0
        %236 = vmatpush1.bf16.msra.mxu0 0
        %237 = vmatprep.subr.bf16.mxu0 0
        %238 = vmatpush1.bf16.msra.mxu0 0
        %239 = vmatprep.subr.bf16.mxu0 0
        %240 = vmatpush1.bf16.msra.mxu0 0
        %241 = vmatprep.subr.bf16.mxu0 0
        %242 = vmatpush1.bf16.msra.mxu0 0
        %243 = vmatprep.mubr.bf16.mxu0 0
        %244 = vmatmul.mubr.bf16.gmra.mrb[0].mxu0 %v209
        %v245 = vpop.f32.mrb[0].mxu0
        %v246 = vadd.f32 %v195, %v245
        %v247 = vpop.f32.mrb[0].mxu0
        %v248 = vpop.f32.mrb[0].mxu0
        %v249 = vadd.f32 %v200, %v248
        %v250 = vpop.f32.mrb[0].mxu0
        %251 = vdwg.mxu0
        %v252 = vpack.c.bf16 %v249, %v246
        %253 = vst [vmem:[#allocation3] sm:$0xff] %v252
        %v254 = vld [vmem:[#allocation2] sm:$0xff]
        %v255 = vld [vmem:[#allocation2 + $0x8] sm:$0xff]
        %v256 = vld [vmem:[#allocation4] sm:$0xf]
        %v257 = vld [vmem:[#allocation4 + $0x4] sm:$0xf]
        %s258 = scalar_lea.vmem [#allocation4], 8
        %v259 = vld [vmem:[%s258] sm:$0xf]
        %v260 = vld [vmem:[%s258 + $0x4] sm:$0xf]
        %v263 = vunpack.c.l.b16 %v259
        %v264 = vunpack.c.l.b16 %v260
        %v265 = vpack.c.b16 %v264, %v263
        %v267 = vsel %vm207, %v265, 0
        %269 = vmatprep.subr.bf16.mxu0 0
        %270 = vmatpush1.bf16.msra.mxu0 %v255
        %271 = vmatprep.subr.bf16.mxu0 0
        %272 = vmatpush1.bf16.msra.mxu0 0
        %273 = vmatprep.subr.bf16.mxu0 0
        %274 = vmatpush1.bf16.msra.mxu0 0
        %275 = vmatprep.subr.bf16.mxu0 0
        %276 = vmatpush1.bf16.msra.mxu0 0
        %277 = vmatprep.subr.bf16.mxu0 0
        %278 = vmatpush1.bf16.msra.mxu0 0
        %279 = vmatprep.subr.bf16.mxu0 0
        %280 = vmatpush1.bf16.msra.mxu0 0
        %281 = vmatprep.subr.bf16.mxu0 0
        %282 = vmatpush1.bf16.msra.mxu0 0
        %283 = vmatprep.subr.bf16.mxu0 0
        %284 = vmatpush1.bf16.msra.mxu0 0
        %285 = vmatprep.subr.bf16.mxu0 0
        %286 = vmatpush1.bf16.msra.mxu0 0
        %287 = vmatprep.subr.bf16.mxu0 0
        %288 = vmatpush1.bf16.msra.mxu0 0
        %289 = vmatprep.subr.bf16.mxu0 0
        %290 = vmatpush1.bf16.msra.mxu0 0
        %291 = vmatprep.subr.bf16.mxu0 0
        %292 = vmatpush1.bf16.msra.mxu0 0
        %293 = vmatprep.subr.bf16.mxu0 0
        %294 = vmatpush1.bf16.msra.mxu0 0
        %295 = vmatprep.subr.bf16.mxu0 0
        %296 = vmatpush1.bf16.msra.mxu0 0
        %297 = vmatprep.subr.bf16.mxu0 0
        %298 = vmatpush1.bf16.msra.mxu0 0
        %299 = vmatprep.subr.bf16.mxu0 0
        %300 = vmatpush1.bf16.msra.mxu0 0
        %301 = vmatprep.mubr.bf16.mxu0 0
        %302 = vmatmul.mubr.bf16.gmra.mrb[0].mxu0 %v267
        %v303 = vpop.f32.mrb[0].mxu0
        %v304 = vadd.f32 0.0, %v303
        %v305 = vpop.f32.mrb[0].mxu0
        %v306 = vpop.f32.mrb[0].mxu0
        %v307 = vadd.f32 0.0, %v306
        %v308 = vpop.f32.mrb[0].mxu0
        %309 = vdwg.mxu0
        %v312 = vunpack.c.l.b16 %v256
        %v313 = vunpack.c.l.b16 %v257
        %v314 = vpack.c.b16 %v313, %v312
        %317 = vrot.lane.b32.xlu0 %v254, 1
        %v318 = vpop.permute.xlu0 %317
        %319 = vrot.lane.b32.xlu0 %v255, 1
        %v320 = vpop.permute.xlu0 %319
        %vm321 = vcmask 7168
        %v322 = vsel %vm321, %v318, %v320
        %v325 = vsel %vm207, %v314, 0
        %327 = vmatprep.subr.bf16.mxu0 0
        %328 = vmatpush1.bf16.msra.mxu0 %v322
        %329 = vmatprep.subr.bf16.mxu0 0
        %330 = vmatpush1.bf16.msra.mxu0 0
        %331 = vmatprep.subr.bf16.mxu0 0
        %332 = vmatpush1.bf16.msra.mxu0 0
        %333 = vmatprep.subr.bf16.mxu0 0
        %334 = vmatpush1.bf16.msra.mxu0 0
        %335 = vmatprep.subr.bf16.mxu0 0
        %336 = vmatpush1.bf16.msra.mxu0 0
        %337 = vmatprep.subr.bf16.mxu0 0
        %338 = vmatpush1.bf16.msra.mxu0 0
        %339 = vmatprep.subr.bf16.mxu0 0
        %340 = vmatpush1.bf16.msra.mxu0 0
        %341 = vmatprep.subr.bf16.mxu0 0
        %342 = vmatpush1.bf16.msra.mxu0 0
        %343 = vmatprep.subr.bf16.mxu0 0
        %344 = vmatpush1.bf16.msra.mxu0 0
        %345 = vmatprep.subr.bf16.mxu0 0
        %346 = vmatpush1.bf16.msra.mxu0 0
        %347 = vmatprep.subr.bf16.mxu0 0
        %348 = vmatpush1.bf16.msra.mxu0 0
        %349 = vmatprep.subr.bf16.mxu0 0
        %350 = vmatpush1.bf16.msra.mxu0 0
        %351 = vmatprep.subr.bf16.mxu0 0
        %352 = vmatpush1.bf16.msra.mxu0 0
        %353 = vmatprep.subr.bf16.mxu0 0
        %354 = vmatpush1.bf16.msra.mxu0 0
        %355 = vmatprep.subr.bf16.mxu0 0
        %356 = vmatpush1.bf16.msra.mxu0 0
        %357 = vmatprep.subr.bf16.mxu0 0
        %358 = vmatpush1.bf16.msra.mxu0 0
        %359 = vmatprep.mubr.bf16.mxu0 0
        %360 = vmatmul.mubr.bf16.gmra.mrb[0].mxu0 %v325
        %v361 = vpop.f32.mrb[0].mxu0
        %v362 = vadd.f32 %v304, %v361
        %v363 = vpop.f32.mrb[0].mxu0
        %v364 = vpop.f32.mrb[0].mxu0
        %v365 = vadd.f32 %v307, %v364
        %v366 = vpop.f32.mrb[0].mxu0
        %367 = vdwg.mxu0
        %v368 = vld [vmem:[%s2] sm:$0xff]
        %v369 = vld [vmem:[%s2 + $0x8] sm:$0xff]
        %371 = vset.pattern.permute.xlu0 0
        %372 = vperm.xlu0 %371, %v368
        %v373 = vpop.permute.xlu0 %372
        %376 = vset.pattern.permute.xlu0 0
        %377 = vperm.xlu0 %376, %v369
        %v378 = vpop.permute.xlu0 %377
        %v380 = vadd.f32 %v362, %v373
        %v381 = vadd.f32 %v365, %v378
        %vm382 = vcmp.gt.f32.partialorder %v380, 0.0
        %vm383 = vcmp.gt.f32.partialorder %v381, 0.0
        %v384 = vmin.f32 %v380, 0.0
        %v385 = vmin.f32 %v381, 0.0
        %v386 = vmul.f32 %v384, 1.442695
        %v387 = vpow.pop %v386
        %v388 = vmul.f32 %v385, 1.442695
        %v389 = vpow.pop %v388
        %v390 = vsub.f32 %v387, 1.0
        %v391 = vsub.f32 %v389, 1.0
        %v392 = vsel %vm382, %v380, %v390
        %v393 = vsel %vm383, %v381, %v391
        %v394 = vpack.c.bf16 %v393, %v392
        %395 = vst [vmem:[#allocation2 + $0x8] sm:$0xff] %v394
        %v396 = vld [vmem:[#allocation2] sm:$0xff]
        %v397 = vld [vmem:[#allocation2 + $0x8] sm:$0xff]
        %s398 = scalar_lea.vmem [#allocation4], 16
        %v399 = vld [vmem:[%s398] sm:$0xf]
        %v400 = vld [vmem:[%s398 + $0x4] sm:$0xf]
        %s401 = scalar_lea.vmem [#allocation4], 24
        %v402 = vld [vmem:[%s401] sm:$0xf]
        %v403 = vld [vmem:[%s401 + $0x4] sm:$0xf]
        %v406 = vunpack.c.l.b16 %v402
        %v407 = vunpack.c.l.b16 %v403
        %v408 = vpack.c.b16 %v407, %v406
        %v410 = vsel %vm207, %v408, 0
        %412 = vmatprep.subr.bf16.mxu0 0
        %413 = vmatpush1.bf16.msra.mxu0 %v397
        %414 = vmatprep.subr.bf16.mxu0 0
        %415 = vmatpush1.bf16.msra.mxu0 0
        %416 = vmatprep.subr.bf16.mxu0 0
        %417 = vmatpush1.bf16.msra.mxu0 0
        %418 = vmatprep.subr.bf16.mxu0 0
        %419 = vmatpush1.bf16.msra.mxu0 0
        %420 = vmatprep.subr.bf16.mxu0 0
        %421 = vmatpush1.bf16.msra.mxu0 0
        %422 = vmatprep.subr.bf16.mxu0 0
        %423 = vmatpush1.bf16.msra.mxu0 0
        %424 = vmatprep.subr.bf16.mxu0 0
        %425 = vmatpush1.bf16.msra.mxu0 0
        %426 = vmatprep.subr.bf16.mxu0 0
        %427 = vmatpush1.bf16.msra.mxu0 0
        %428 = vmatprep.subr.bf16.mxu0 0
        %429 = vmatpush1.bf16.msra.mxu0 0
        %430 = vmatprep.subr.bf16.mxu0 0
        %431 = vmatpush1.bf16.msra.mxu0 0
        %432 = vmatprep.subr.bf16.mxu0 0
        %433 = vmatpush1.bf16.msra.mxu0 0
        %434 = vmatprep.subr.bf16.mxu0 0
        %435 = vmatpush1.bf16.msra.mxu0 0
        %436 = vmatprep.subr.bf16.mxu0 0
        %437 = vmatpush1.bf16.msra.mxu0 0
        %438 = vmatprep.subr.bf16.mxu0 0
        %439 = vmatpush1.bf16.msra.mxu0 0
        %440 = vmatprep.subr.bf16.mxu0 0
        %441 = vmatpush1.bf16.msra.mxu0 0
        %442 = vmatprep.subr.bf16.mxu0 0
        %443 = vmatpush1.bf16.msra.mxu0 0
        %444 = vmatprep.mubr.bf16.mxu0 0
        %445 = vmatmul.mubr.bf16.gmra.mrb[0].mxu0 %v410
        %v446 = vpop.f32.mrb[0].mxu0
        %v447 = vadd.f32 0.0, %v446
        %v448 = vpop.f32.mrb[0].mxu0
        %v449 = vpop.f32.mrb[0].mxu0
        %v450 = vadd.f32 0.0, %v449
        %v451 = vpop.f32.mrb[0].mxu0
        %452 = vdwg.mxu0
        %v455 = vunpack.c.l.b16 %v399
        %v456 = vunpack.c.l.b16 %v400
        %v457 = vpack.c.b16 %v456, %v455
        %460 = vrot.lane.b32.xlu0 %v396, 1
        %v461 = vpop.permute.xlu0 %460
        %462 = vrot.lane.b32.xlu0 %v397, 1
        %v463 = vpop.permute.xlu0 %462
        %v464 = vsel %vm321, %v461, %v463
        %v467 = vsel %vm207, %v457, 0
        %469 = vmatprep.subr.bf16.mxu0 0
        %470 = vmatpush1.bf16.msra.mxu0 %v464
        %471 = vmatprep.subr.bf16.mxu0 0
        %472 = vmatpush1.bf16.msra.mxu0 0
        %473 = vmatprep.subr.bf16.mxu0 0
        %474 = vmatpush1.bf16.msra.mxu0 0
        %475 = vmatprep.subr.bf16.mxu0 0
        %476 = vmatpush1.bf16.msra.mxu0 0
        %477 = vmatprep.subr.bf16.mxu0 0
        %478 = vmatpush1.bf16.msra.mxu0 0
        %479 = vmatprep.subr.bf16.mxu0 0
        %480 = vmatpush1.bf16.msra.mxu0 0
        %481 = vmatprep.subr.bf16.mxu0 0
        %482 = vmatpush1.bf16.msra.mxu0 0
        %483 = vmatprep.subr.bf16.mxu0 0
        %484 = vmatpush1.bf16.msra.mxu0 0
        %485 = vmatprep.subr.bf16.mxu0 0
        %486 = vmatpush1.bf16.msra.mxu0 0
        %487 = vmatprep.subr.bf16.mxu0 0
        %488 = vmatpush1.bf16.msra.mxu0 0
        %489 = vmatprep.subr.bf16.mxu0 0
        %490 = vmatpush1.bf16.msra.mxu0 0
        %491 = vmatprep.subr.bf16.mxu0 0
        %492 = vmatpush1.bf16.msra.mxu0 0
        %493 = vmatprep.subr.bf16.mxu0 0
        %494 = vmatpush1.bf16.msra.mxu0 0
        %495 = vmatprep.subr.bf16.mxu0 0
        %496 = vmatpush1.bf16.msra.mxu0 0
        %497 = vmatprep.subr.bf16.mxu0 0
        %498 = vmatpush1.bf16.msra.mxu0 0
        %499 = vmatprep.subr.bf16.mxu0 0
        %500 = vmatpush1.bf16.msra.mxu0 0
        %501 = vmatprep.mubr.bf16.mxu0 0
        %502 = vmatmul.mubr.bf16.gmra.mrb[0].mxu0 %v467
        %v503 = vpop.f32.mrb[0].mxu0
        %v504 = vadd.f32 %v447, %v503
        %v505 = vpop.f32.mrb[0].mxu0
        %v506 = vpop.f32.mrb[0].mxu0
        %v507 = vadd.f32 %v450, %v506
        %v508 = vpop.f32.mrb[0].mxu0
        %509 = vdwg.mxu0
        %v510 = vld [vmem:[%s2] sm:$0xff]
        %v511 = vld [vmem:[%s2 + $0x8] sm:$0xff]
        %513 = vset.pattern.permute.xlu0 1
        %514 = vperm.xlu0 %513, %v510
        %v515 = vpop.permute.xlu0 %514
        %518 = vset.pattern.permute.xlu0 1
        %519 = vperm.xlu0 %518, %v511
        %v520 = vpop.permute.xlu0 %519
        %v522 = vadd.f32 %v504, %v515
        %v523 = vadd.f32 %v507, %v520
        %vm524 = vcmp.gt.f32.partialorder %v522, 0.0
        %vm525 = vcmp.gt.f32.partialorder %v523, 0.0
        %v526 = vmin.f32 %v522, 0.0
        %v527 = vmin.f32 %v523, 0.0
        %v528 = vmul.f32 %v526, 1.442695
        %v529 = vpow.pop %v528
        %v530 = vmul.f32 %v527, 1.442695
        %v531 = vpow.pop %v530
        %v532 = vsub.f32 %v529, 1.0
        %v533 = vsub.f32 %v531, 1.0
        %v534 = vsel %vm524, %v522, %v532
        %v535 = vsel %vm525, %v523, %v533
        %v536 = vld [vmem:[#allocation3] sm:$0xff]
        %v537 = vunpack.c.l.bf16 %v536
        %v538 = vunpack.c.h.bf16 %v536
        %v539 = vadd.f32 %v534, %v537
        %v540 = vadd.f32 %v535, %v538
        %vm541 = vcmp.gt.f32.partialorder %v539, 0.0
        %vm542 = vcmp.gt.f32.partialorder %v540, 0.0
        %v543 = vmin.f32 %v539, 0.0
        %v544 = vmin.f32 %v540, 0.0
        %v545 = vmul.f32 %v543, 1.442695
        %v546 = vpow.pop %v545
        %v547 = vmul.f32 %v544, 1.442695
        %v548 = vpow.pop %v547
        %v549 = vsub.f32 %v546, 1.0
        %v550 = vsub.f32 %v548, 1.0
        %v551 = vsel %vm541, %v539, %v549
        %v552 = vsel %vm542, %v540, %v550
        %v553 = vpack.c.bf16 %v552, %v551
        %554 = vst [vmem:[#allocation2 + $0x8] sm:$0xff] %v553
        %v555 = vld [vmem:[#allocation2 + $0x8] sm:$0xff]
        %556 = vst [vmem:[#allocation3] sm:$0xff] %v555
        %v557 = vld [vmem:[#allocation2] sm:$0xff]
        %v558 = vld [vmem:[#allocation2 + $0x8] sm:$0xff]
        %s559 = scalar_lea.vmem [#allocation4], 40
        %v560 = vld [vmem:[%s559] sm:$0xf]
        %v561 = vld [vmem:[%s559 + $0x4] sm:$0xf]
        %s562 = scalar_lea.vmem [#allocation4], 48
        %v563 = vld [vmem:[%s562] sm:$0xf]
        %v564 = vld [vmem:[%s562 + $0x4] sm:$0xf]
        %v567 = vunpack.c.l.b16 %v563
        %v568 = vunpack.c.l.b16 %v564
        %v569 = vpack.c.b16 %v568, %v567
        %v571 = vsel %vm207, %v569, 0
        %573 = vmatprep.subr.bf16.mxu0 0
        %574 = vmatpush1.bf16.msra.mxu0 %v558
        %575 = vmatprep.subr.bf16.mxu0 0
        %576 = vmatpush1.bf16.msra.mxu0 0
        %577 = vmatprep.subr.bf16.mxu0 0
        %578 = vmatpush1.bf16.msra.mxu0 0
        %579 = vmatprep.subr.bf16.mxu0 0
        %580 = vmatpush1.bf16.msra.mxu0 0
        %581 = vmatprep.subr.bf16.mxu0 0
        %582 = vmatpush1.bf16.msra.mxu0 0
        %583 = vmatprep.subr.bf16.mxu0 0
        %584 = vmatpush1.bf16.msra.mxu0 0
        %585 = vmatprep.subr.bf16.mxu0 0
        %586 = vmatpush1.bf16.msra.mxu0 0
        %587 = vmatprep.subr.bf16.mxu0 0
        %588 = vmatpush1.bf16.msra.mxu0 0
        %589 = vmatprep.subr.bf16.mxu0 0
        %590 = vmatpush1.bf16.msra.mxu0 0
        %591 = vmatprep.subr.bf16.mxu0 0
        %592 = vmatpush1.bf16.msra.mxu0 0
        %593 = vmatprep.subr.bf16.mxu0 0
        %594 = vmatpush1.bf16.msra.mxu0 0
        %595 = vmatprep.subr.bf16.mxu0 0
        %596 = vmatpush1.bf16.msra.mxu0 0
        %597 = vmatprep.subr.bf16.mxu0 0
        %598 = vmatpush1.bf16.msra.mxu0 0
        %599 = vmatprep.subr.bf16.mxu0 0
        %600 = vmatpush1.bf16.msra.mxu0 0
        %601 = vmatprep.subr.bf16.mxu0 0
        %602 = vmatpush1.bf16.msra.mxu0 0
        %603 = vmatprep.subr.bf16.mxu0 0
        %604 = vmatpush1.bf16.msra.mxu0 0
        %605 = vmatprep.mubr.bf16.mxu0 0
        %606 = vmatmul.mubr.bf16.gmra.mrb[0].mxu0 %v571
        %v607 = vpop.f32.mrb[0].mxu0
        %v608 = vadd.f32 0.0, %v607
        %v609 = vpop.f32.mrb[0].mxu0
        %v610 = vpop.f32.mrb[0].mxu0
        %v611 = vadd.f32 0.0, %v610
        %v612 = vpop.f32.mrb[0].mxu0
        %613 = vdwg.mxu0
        %v616 = vunpack.c.l.b16 %v560
        %v617 = vunpack.c.l.b16 %v561
        %v618 = vpack.c.b16 %v617, %v616
        %621 = vrot.lane.b32.xlu0 %v557, 2
        %v622 = vpop.permute.xlu0 %621
        %623 = vrot.lane.b32.xlu0 %v558, 2
        %v624 = vpop.permute.xlu0 %623
        %vm625 = vcmask 15360
        %v626 = vsel %vm625, %v622, %v624
        %v629 = vsel %vm207, %v618, 0
        %631 = vmatprep.subr.bf16.mxu0 0
        %632 = vmatpush1.bf16.msra.mxu0 %v626
        %633 = vmatprep.subr.bf16.mxu0 0
        %634 = vmatpush1.bf16.msra.mxu0 0
        %635 = vmatprep.subr.bf16.mxu0 0
        %636 = vmatpush1.bf16.msra.mxu0 0
        %637 = vmatprep.subr.bf16.mxu0 0
        %638 = vmatpush1.bf16.msra.mxu0 0
        %639 = vmatprep.subr.bf16.mxu0 0
        %640 = vmatpush1.bf16.msra.mxu0 0
        %641 = vmatprep.subr.bf16.mxu0 0
        %642 = vmatpush1.bf16.msra.mxu0 0
        %643 = vmatprep.subr.bf16.mxu0 0
        %644 = vmatpush1.bf16.msra.mxu0 0
        %645 = vmatprep.subr.bf16.mxu0 0
        %646 = vmatpush1.bf16.msra.mxu0 0
        %647 = vmatprep.subr.bf16.mxu0 0
        %648 = vmatpush1.bf16.msra.mxu0 0
        %649 = vmatprep.subr.bf16.mxu0 0
        %650 = vmatpush1.bf16.msra.mxu0 0
        %651 = vmatprep.subr.bf16.mxu0 0
        %652 = vmatpush1.bf16.msra.mxu0 0
        %653 = vmatprep.subr.bf16.mxu0 0
        %654 = vmatpush1.bf16.msra.mxu0 0
        %655 = vmatprep.subr.bf16.mxu0 0
        %656 = vmatpush1.bf16.msra.mxu0 0
        %657 = vmatprep.subr.bf16.mxu0 0
        %658 = vmatpush1.bf16.msra.mxu0 0
        %659 = vmatprep.subr.bf16.mxu0 0
        %660 = vmatpush1.bf16.msra.mxu0 0
        %661 = vmatprep.subr.bf16.mxu0 0
        %662 = vmatpush1.bf16.msra.mxu0 0
        %663 = vmatprep.mubr.bf16.mxu0 0
        %664 = vmatmul.mubr.bf16.gmra.mrb[0].mxu0 %v629
        %v665 = vpop.f32.mrb[0].mxu0
        %v666 = vadd.f32 %v608, %v665
        %v667 = vpop.f32.mrb[0].mxu0
        %v668 = vpop.f32.mrb[0].mxu0
        %v669 = vadd.f32 %v611, %v668
        %v670 = vpop.f32.mrb[0].mxu0
        %671 = vdwg.mxu0
        %v672 = vld [vmem:[%s2] sm:$0xff]
        %v673 = vld [vmem:[%s2 + $0x8] sm:$0xff]
        %675 = vset.pattern.permute.xlu0 3
        %676 = vperm.xlu0 %675, %v672
        %v677 = vpop.permute.xlu0 %676
        %680 = vset.pattern.permute.xlu0 3
        %681 = vperm.xlu0 %680, %v673
        %v682 = vpop.permute.xlu0 %681
        %v684 = vadd.f32 %v666, %v677
        %v685 = vadd.f32 %v669, %v682
        %vm686 = vcmp.gt.f32.partialorder %v684, 0.0
        %vm687 = vcmp.gt.f32.partialorder %v685, 0.0
        %v688 = vmin.f32 %v684, 0.0
        %v689 = vmin.f32 %v685, 0.0
        %v690 = vmul.f32 %v688, 1.442695
        %v691 = vpow.pop %v690
        %v692 = vmul.f32 %v689, 1.442695
        %v693 = vpow.pop %v692
        %v694 = vsub.f32 %v691, 1.0
        %v695 = vsub.f32 %v693, 1.0
        %v696 = vsel %vm686, %v684, %v694
        %v697 = vsel %vm687, %v685, %v695
        %v698 = vpack.c.bf16 %v697, %v696
        %699 = vst [vmem:[#allocation2 + $0x8] sm:$0xff] %v698
        %v700 = vld [vmem:[#allocation2] sm:$0xff]
        %v701 = vld [vmem:[#allocation2 + $0x8] sm:$0xff]
        %s702 = scalar_lea.vmem [#allocation4], 56
        %v703 = vld [vmem:[%s702] sm:$0xf]
        %v704 = vld [vmem:[%s702 + $0x4] sm:$0xf]
        %s705 = scalar_lea.vmem [#allocation4], 64
        %v706 = vld [vmem:[%s705] sm:$0xf]
        %v707 = vld [vmem:[%s705 + $0x4] sm:$0xf]
        %v710 = vunpack.c.l.b16 %v706
        %v711 = vunpack.c.l.b16 %v707
        %v712 = vpack.c.b16 %v711, %v710
        %v714 = vsel %vm207, %v712, 0
        %716 = vmatprep.subr.bf16.mxu0 0
        %717 = vmatpush1.bf16.msra.mxu0 %v701
        %718 = vmatprep.subr.bf16.mxu0 0
        %719 = vmatpush1.bf16.msra.mxu0 0
        %720 = vmatprep.subr.bf16.mxu0 0
        %721 = vmatpush1.bf16.msra.mxu0 0
        %722 = vmatprep.subr.bf16.mxu0 0
        %723 = vmatpush1.bf16.msra.mxu0 0
        %724 = vmatprep.subr.bf16.mxu0 0
        %725 = vmatpush1.bf16.msra.mxu0 0
        %726 = vmatprep.subr.bf16.mxu0 0
        %727 = vmatpush1.bf16.msra.mxu0 0
        %728 = vmatprep.subr.bf16.mxu0 0
        %729 = vmatpush1.bf16.msra.mxu0 0
        %730 = vmatprep.subr.bf16.mxu0 0
        %731 = vmatpush1.bf16.msra.mxu0 0
        %732 = vmatprep.subr.bf16.mxu0 0
        %733 = vmatpush1.bf16.msra.mxu0 0
        %734 = vmatprep.subr.bf16.mxu0 0
        %735 = vmatpush1.bf16.msra.mxu0 0
        %736 = vmatprep.subr.bf16.mxu0 0
        %737 = vmatpush1.bf16.msra.mxu0 0
        %738 = vmatprep.subr.bf16.mxu0 0
        %739 = vmatpush1.bf16.msra.mxu0 0
        %740 = vmatprep.subr.bf16.mxu0 0
        %741 = vmatpush1.bf16.msra.mxu0 0
        %742 = vmatprep.subr.bf16.mxu0 0
        %743 = vmatpush1.bf16.msra.mxu0 0
        %744 = vmatprep.subr.bf16.mxu0 0
        %745 = vmatpush1.bf16.msra.mxu0 0
        %746 = vmatprep.subr.bf16.mxu0 0
        %747 = vmatpush1.bf16.msra.mxu0 0
        %748 = vmatprep.mubr.bf16.mxu0 0
        %749 = vmatmul.mubr.bf16.gmra.mrb[0].mxu0 %v714
        %v750 = vpop.f32.mrb[0].mxu0
        %v751 = vadd.f32 0.0, %v750
        %v752 = vpop.f32.mrb[0].mxu0
        %v753 = vpop.f32.mrb[0].mxu0
        %v754 = vadd.f32 0.0, %v753
        %v755 = vpop.f32.mrb[0].mxu0
        %756 = vdwg.mxu0
        %v759 = vunpack.c.l.b16 %v703
        %v760 = vunpack.c.l.b16 %v704
        %v761 = vpack.c.b16 %v760, %v759
        %764 = vrot.lane.b32.xlu0 %v700, 2
        %v765 = vpop.permute.xlu0 %764
        %766 = vrot.lane.b32.xlu0 %v701, 2
        %v767 = vpop.permute.xlu0 %766
        %v768 = vsel %vm625, %v765, %v767
        %v771 = vsel %vm207, %v761, 0
        %773 = vmatprep.subr.bf16.mxu0 0
        %774 = vmatpush1.bf16.msra.mxu0 %v768
        %775 = vmatprep.subr.bf16.mxu0 0
        %776 = vmatpush1.bf16.msra.mxu0 0
        %777 = vmatprep.subr.bf16.mxu0 0
        %778 = vmatpush1.bf16.msra.mxu0 0
        %779 = vmatprep.subr.bf16.mxu0 0
        %780 = vmatpush1.bf16.msra.mxu0 0
        %781 = vmatprep.subr.bf16.mxu0 0
        %782 = vmatpush1.bf16.msra.mxu0 0
        %783 = vmatprep.subr.bf16.mxu0 0
        %784 = vmatpush1.bf16.msra.mxu0 0
        %785 = vmatprep.subr.bf16.mxu0 0
        %786 = vmatpush1.bf16.msra.mxu0 0
        %787 = vmatprep.subr.bf16.mxu0 0
        %788 = vmatpush1.bf16.msra.mxu0 0
        %789 = vmatprep.subr.bf16.mxu0 0
        %790 = vmatpush1.bf16.msra.mxu0 0
        %791 = vmatprep.subr.bf16.mxu0 0
        %792 = vmatpush1.bf16.msra.mxu0 0
        %793 = vmatprep.subr.bf16.mxu0 0
        %794 = vmatpush1.bf16.msra.mxu0 0
        %795 = vmatprep.subr.bf16.mxu0 0
        %796 = vmatpush1.bf16.msra.mxu0 0
        %797 = vmatprep.subr.bf16.mxu0 0
        %798 = vmatpush1.bf16.msra.mxu0 0
        %799 = vmatprep.subr.bf16.mxu0 0
        %800 = vmatpush1.bf16.msra.mxu0 0
        %801 = vmatprep.subr.bf16.mxu0 0
        %802 = vmatpush1.bf16.msra.mxu0 0
        %803 = vmatprep.subr.bf16.mxu0 0
        %804 = vmatpush1.bf16.msra.mxu0 0
        %805 = vmatprep.mubr.bf16.mxu0 0
        %806 = vmatmul.mubr.bf16.gmra.mrb[0].mxu0 %v771
        %v807 = vpop.f32.mrb[0].mxu0
        %v808 = vadd.f32 %v751, %v807
        %v809 = vpop.f32.mrb[0].mxu0
        %v810 = vpop.f32.mrb[0].mxu0
        %v811 = vadd.f32 %v754, %v810
        %v812 = vpop.f32.mrb[0].mxu0
        %813 = vdwg.mxu0
        %v814 = vld [vmem:[%s2] sm:$0xff]
        %v815 = vld [vmem:[%s2 + $0x8] sm:$0xff]
        %817 = vset.pattern.permute.xlu0 4
        %818 = vperm.xlu0 %817, %v814
        %v819 = vpop.permute.xlu0 %818
        %822 = vset.pattern.permute.xlu0 4
        %823 = vperm.xlu0 %822, %v815
        %v824 = vpop.permute.xlu0 %823
        %v826 = vadd.f32 %v808, %v819
        %v827 = vadd.f32 %v811, %v824
        %vm828 = vcmp.gt.f32.partialorder %v826, 0.0
        %vm829 = vcmp.gt.f32.partialorder %v827, 0.0
        %v830 = vmin.f32 %v826, 0.0
        %v831 = vmin.f32 %v827, 0.0
        %v832 = vmul.f32 %v830, 1.442695
        %v833 = vpow.pop %v832
        %v834 = vmul.f32 %v831, 1.442695
        %v835 = vpow.pop %v834
        %v836 = vsub.f32 %v833, 1.0
        %v837 = vsub.f32 %v835, 1.0
        %v838 = vsel %vm828, %v826, %v836
        %v839 = vsel %vm829, %v827, %v837
        %v840 = vld [vmem:[#allocation3] sm:$0xff]
        %v841 = vunpack.c.l.bf16 %v840
        %v842 = vunpack.c.h.bf16 %v840
        %v843 = vadd.f32 %v838, %v841
        %v844 = vadd.f32 %v839, %v842
        %vm845 = vcmp.gt.f32.partialorder %v843, 0.0
        %vm846 = vcmp.gt.f32.partialorder %v844, 0.0
        %v847 = vmin.f32 %v843, 0.0
        %v848 = vmin.f32 %v844, 0.0
        %v849 = vmul.f32 %v847, 1.442695
        %v850 = vpow.pop %v849
        %v851 = vmul.f32 %v848, 1.442695
        %v852 = vpow.pop %v851
        %v853 = vsub.f32 %v850, 1.0
        %v854 = vsub.f32 %v852, 1.0
        %v855 = vsel %vm845, %v843, %v853
        %v856 = vsel %vm846, %v844, %v854
        %v857 = vpack.c.bf16 %v856, %v855
        %858 = vst [vmem:[#allocation2 + $0x8] sm:$0xff] %v857
        %v859 = vld [vmem:[#allocation2 + $0x8] sm:$0xff]
        %s860 = scalar_lea.vmem [#allocation4], 104
        %v861 = vld [vmem:[%s860] sm:$0xf]
        %v862 = vld [vmem:[%s860 + $0x4] sm:$0xf]
        %v863 = vld [vmem:[%s2] sm:$0xff]
        %v864 = vld [vmem:[%s2 + $0x8] sm:$0xff]
        %866 = vset.pattern.permute.xlu0 7
        %867 = vperm.xlu0 %866, %v863
        %v868 = vpop.permute.xlu0 %867
        %871 = vset.pattern.permute.xlu0 7
        %872 = vperm.xlu0 %871, %v864
        %v873 = vpop.permute.xlu0 %872
        %v877 = vunpack.c.l.b16 %v861
        %v878 = vunpack.c.l.b16 %v862
        %v879 = vpack.c.b16 %v878, %v877
        %v881 = vsel %vm207, %v879, 0
        %883 = vmatprep.subr.bf16.mxu0 0
        %884 = vmatpush1.bf16.msra.mxu0 %v859
        %885 = vmatprep.subr.bf16.mxu0 0
        %886 = vmatpush1.bf16.msra.mxu0 0
        %887 = vmatprep.subr.bf16.mxu0 0
        %888 = vmatpush1.bf16.msra.mxu0 0
        %889 = vmatprep.subr.bf16.mxu0 0
        %890 = vmatpush1.bf16.msra.mxu0 0
        %891 = vmatprep.subr.bf16.mxu0 0
        %892 = vmatpush1.bf16.msra.mxu0 0
        %893 = vmatprep.subr.bf16.mxu0 0
        %894 = vmatpush1.bf16.msra.mxu0 0
        %895 = vmatprep.subr.bf16.mxu0 0
        %896 = vmatpush1.bf16.msra.mxu0 0
        %897 = vmatprep.subr.bf16.mxu0 0
        %898 = vmatpush1.bf16.msra.mxu0 0
        %899 = vmatprep.subr.bf16.mxu0 0
        %900 = vmatpush1.bf16.msra.mxu0 0
        %901 = vmatprep.subr.bf16.mxu0 0
        %902 = vmatpush1.bf16.msra.mxu0 0
        %903 = vmatprep.subr.bf16.mxu0 0
        %904 = vmatpush1.bf16.msra.mxu0 0
        %905 = vmatprep.subr.bf16.mxu0 0
        %906 = vmatpush1.bf16.msra.mxu0 0
        %907 = vmatprep.subr.bf16.mxu0 0
        %908 = vmatpush1.bf16.msra.mxu0 0
        %909 = vmatprep.subr.bf16.mxu0 0
        %910 = vmatpush1.bf16.msra.mxu0 0
        %911 = vmatprep.subr.bf16.mxu0 0
        %912 = vmatpush1.bf16.msra.mxu0 0
        %913 = vmatprep.subr.bf16.mxu0 0
        %914 = vmatpush1.bf16.msra.mxu0 0
        %915 = vmatprep.mubr.bf16.mxu0 0
        %916 = vmatmul.mubr.bf16.gmra.mrb[0].mxu0 %v881
        %v917 = vpop.f32.mrb[0].mxu0
        %v918 = vadd.f32 %v868, %v917
        %v919 = vpop.f32.mrb[0].mxu0
        %v920 = vpop.f32.mrb[0].mxu0
        %v921 = vadd.f32 %v873, %v920
        %v922 = vpop.f32.mrb[0].mxu0
        %923 = vdwg.mxu0
        %v924 = vpack.c.bf16 %v921, %v918
        %925 = vst [vmem:[#allocation3] sm:$0xff] %v924
        %v926 = vld [vmem:[#allocation2] sm:$0xff]
        %v927 = vld [vmem:[#allocation2 + $0x8] sm:$0xff]
        %s928 = scalar_lea.vmem [#allocation4], 72
        %v929 = vld [vmem:[%s928] sm:$0xf]
        %v930 = vld [vmem:[%s928 + $0x4] sm:$0xf]
        %s931 = scalar_lea.vmem [#allocation4], 80
        %v932 = vld [vmem:[%s931] sm:$0xf]
        %v933 = vld [vmem:[%s931 + $0x4] sm:$0xf]
        %v936 = vunpack.c.l.b16 %v932
        %v937 = vunpack.c.l.b16 %v933
        %v938 = vpack.c.b16 %v937, %v936
        %v940 = vsel %vm207, %v938, 0
        %942 = vmatprep.subr.bf16.mxu0 0
        %943 = vmatpush1.bf16.msra.mxu0 %v927
        %944 = vmatprep.subr.bf16.mxu0 0
        %945 = vmatpush1.bf16.msra.mxu0 0
        %946 = vmatprep.subr.bf16.mxu0 0
        %947 = vmatpush1.bf16.msra.mxu0 0
        %948 = vmatprep.subr.bf16.mxu0 0
        %949 = vmatpush1.bf16.msra.mxu0 0
        %950 = vmatprep.subr.bf16.mxu0 0
        %951 = vmatpush1.bf16.msra.mxu0 0
        %952 = vmatprep.subr.bf16.mxu0 0
        %953 = vmatpush1.bf16.msra.mxu0 0
        %954 = vmatprep.subr.bf16.mxu0 0
        %955 = vmatpush1.bf16.msra.mxu0 0
        %956 = vmatprep.subr.bf16.mxu0 0
        %957 = vmatpush1.bf16.msra.mxu0 0
        %958 = vmatprep.subr.bf16.mxu0 0
        %959 = vmatpush1.bf16.msra.mxu0 0
        %960 = vmatprep.subr.bf16.mxu0 0
        %961 = vmatpush1.bf16.msra.mxu0 0
        %962 = vmatprep.subr.bf16.mxu0 0
        %963 = vmatpush1.bf16.msra.mxu0 0
        %964 = vmatprep.subr.bf16.mxu0 0
        %965 = vmatpush1.bf16.msra.mxu0 0
        %966 = vmatprep.subr.bf16.mxu0 0
        %967 = vmatpush1.bf16.msra.mxu0 0
        %968 = vmatprep.subr.bf16.mxu0 0
        %969 = vmatpush1.bf16.msra.mxu0 0
        %970 = vmatprep.subr.bf16.mxu0 0
        %971 = vmatpush1.bf16.msra.mxu0 0
        %972 = vmatprep.subr.bf16.mxu0 0
        %973 = vmatpush1.bf16.msra.mxu0 0
        %974 = vmatprep.mubr.bf16.mxu0 0
        %975 = vmatmul.mubr.bf16.gmra.mrb[0].mxu0 %v940
        %v976 = vpop.f32.mrb[0].mxu0
        %v977 = vadd.f32 0.0, %v976
        %v978 = vpop.f32.mrb[0].mxu0
        %v979 = vpop.f32.mrb[0].mxu0
        %v980 = vadd.f32 0.0, %v979
        %v981 = vpop.f32.mrb[0].mxu0
        %982 = vdwg.mxu0
        %v985 = vunpack.c.l.b16 %v929
        %v986 = vunpack.c.l.b16 %v930
        %v987 = vpack.c.b16 %v986, %v985
        %990 = vrot.lane.b32.xlu0 %v926, 4
        %v991 = vpop.permute.xlu0 %990
        %992 = vrot.lane.b32.xlu0 %v927, 4
        %v993 = vpop.permute.xlu0 %992
        %vm994 = vcmask 31744
        %v995 = vsel %vm994, %v991, %v993
        %v998 = vsel %vm207, %v987, 0
        %1000 = vmatprep.subr.bf16.mxu0 0
        %1001 = vmatpush1.bf16.msra.mxu0 %v995
        %1002 = vmatprep.subr.bf16.mxu0 0
        %1003 = vmatpush1.bf16.msra.mxu0 0
        %1004 = vmatprep.subr.bf16.mxu0 0
        %1005 = vmatpush1.bf16.msra.mxu0 0
        %1006 = vmatprep.subr.bf16.mxu0 0
        %1007 = vmatpush1.bf16.msra.mxu0 0
        %1008 = vmatprep.subr.bf16.mxu0 0
        %1009 = vmatpush1.bf16.msra.mxu0 0
        %1010 = vmatprep.subr.bf16.mxu0 0
        %1011 = vmatpush1.bf16.msra.mxu0 0
        %1012 = vmatprep.subr.bf16.mxu0 0
        %1013 = vmatpush1.bf16.msra.mxu0 0
        %1014 = vmatprep.subr.bf16.mxu0 0
        %1015 = vmatpush1.bf16.msra.mxu0 0
        %1016 = vmatprep.subr.bf16.mxu0 0
        %1017 = vmatpush1.bf16.msra.mxu0 0
        %1018 = vmatprep.subr.bf16.mxu0 0
        %1019 = vmatpush1.bf16.msra.mxu0 0
        %1020 = vmatprep.subr.bf16.mxu0 0
        %1021 = vmatpush1.bf16.msra.mxu0 0
        %1022 = vmatprep.subr.bf16.mxu0 0
        %1023 = vmatpush1.bf16.msra.mxu0 0
        %1024 = vmatprep.subr.bf16.mxu0 0
        %1025 = vmatpush1.bf16.msra.mxu0 0
        %1026 = vmatprep.subr.bf16.mxu0 0
        %1027 = vmatpush1.bf16.msra.mxu0 0
        %1028 = vmatprep.subr.bf16.mxu0 0
        %1029 = vmatpush1.bf16.msra.mxu0 0
        %1030 = vmatprep.subr.bf16.mxu0 0
        %1031 = vmatpush1.bf16.msra.mxu0 0
        %1032 = vmatprep.mubr.bf16.mxu0 0
        %1033 = vmatmul.mubr.bf16.gmra.mrb[0].mxu0 %v998
        %v1034 = vpop.f32.mrb[0].mxu0
        %v1035 = vadd.f32 %v977, %v1034
        %v1036 = vpop.f32.mrb[0].mxu0
        %v1037 = vpop.f32.mrb[0].mxu0
        %v1038 = vadd.f32 %v980, %v1037
        %v1039 = vpop.f32.mrb[0].mxu0
        %1040 = vdwg.mxu0
        %v1041 = vld [vmem:[%s2] sm:$0xff]
        %v1042 = vld [vmem:[%s2 + $0x8] sm:$0xff]
        %1044 = vset.pattern.permute.xlu0 5
        %1045 = vperm.xlu0 %1044, %v1041
        %v1046 = vpop.permute.xlu0 %1045
        %1049 = vset.pattern.permute.xlu0 5
        %1050 = vperm.xlu0 %1049, %v1042
        %v1051 = vpop.permute.xlu0 %1050
        %v1053 = vadd.f32 %v1035, %v1046
        %v1054 = vadd.f32 %v1038, %v1051
        %vm1055 = vcmp.gt.f32.partialorder %v1053, 0.0
        %vm1056 = vcmp.gt.f32.partialorder %v1054, 0.0
        %v1057 = vmin.f32 %v1053, 0.0
        %v1058 = vmin.f32 %v1054, 0.0
        %v1059 = vmul.f32 %v1057, 1.442695
        %v1060 = vpow.pop %v1059
        %v1061 = vmul.f32 %v1058, 1.442695
        %v1062 = vpow.pop %v1061
        %v1063 = vsub.f32 %v1060, 1.0
        %v1064 = vsub.f32 %v1062, 1.0
        %v1065 = vsel %vm1055, %v1053, %v1063
        %v1066 = vsel %vm1056, %v1054, %v1064
        %v1067 = vpack.c.bf16 %v1066, %v1065
        %1068 = vst [vmem:[#allocation2 + $0x8] sm:$0xff] %v1067
        %v1069 = vld [vmem:[#allocation2] sm:$0xff]
        %v1070 = vld [vmem:[#allocation2 + $0x8] sm:$0xff]
        %s1071 = scalar_lea.vmem [#allocation4], 88
        %v1072 = vld [vmem:[%s1071] sm:$0xf]
        %v1073 = vld [vmem:[%s1071 + $0x4] sm:$0xf]
        %s1074 = scalar_lea.vmem [#allocation4], 96
        %v1075 = vld [vmem:[%s1074] sm:$0xf]
        %v1076 = vld [vmem:[%s1074 + $0x4] sm:$0xf]
        %v1079 = vunpack.c.l.b16 %v1075
        %v1080 = vunpack.c.l.b16 %v1076
        %v1081 = vpack.c.b16 %v1080, %v1079
        %v1083 = vsel %vm207, %v1081, 0
        %1085 = vmatprep.subr.bf16.mxu0 0
        %1086 = vmatpush1.bf16.msra.mxu0 %v1070
        %1087 = vmatprep.subr.bf16.mxu0 0
        %1088 = vmatpush1.bf16.msra.mxu0 0
        %1089 = vmatprep.subr.bf16.mxu0 0
        %1090 = vmatpush1.bf16.msra.mxu0 0
        %1091 = vmatprep.subr.bf16.mxu0 0
        %1092 = vmatpush1.bf16.msra.mxu0 0
        %1093 = vmatprep.subr.bf16.mxu0 0
        %1094 = vmatpush1.bf16.msra.mxu0 0
        %1095 = vmatprep.subr.bf16.mxu0 0
        %1096 = vmatpush1.bf16.msra.mxu0 0
        %1097 = vmatprep.subr.bf16.mxu0 0
        %1098 = vmatpush1.bf16.msra.mxu0 0
        %1099 = vmatprep.subr.bf16.mxu0 0
        %1100 = vmatpush1.bf16.msra.mxu0 0
        %1101 = vmatprep.subr.bf16.mxu0 0
        %1102 = vmatpush1.bf16.msra.mxu0 0
        %1103 = vmatprep.subr.bf16.mxu0 0
        %1104 = vmatpush1.bf16.msra.mxu0 0
        %1105 = vmatprep.subr.bf16.mxu0 0
        %1106 = vmatpush1.bf16.msra.mxu0 0
        %1107 = vmatprep.subr.bf16.mxu0 0
        %1108 = vmatpush1.bf16.msra.mxu0 0
        %1109 = vmatprep.subr.bf16.mxu0 0
        %1110 = vmatpush1.bf16.msra.mxu0 0
        %1111 = vmatprep.subr.bf16.mxu0 0
        %1112 = vmatpush1.bf16.msra.mxu0 0
        %1113 = vmatprep.subr.bf16.mxu0 0
        %1114 = vmatpush1.bf16.msra.mxu0 0
        %1115 = vmatprep.subr.bf16.mxu0 0
        %1116 = vmatpush1.bf16.msra.mxu0 0
        %1117 = vmatprep.mubr.bf16.mxu0 0
        %1118 = vmatmul.mubr.bf16.gmra.mrb[0].mxu0 %v1083
        %v1119 = vpop.f32.mrb[0].mxu0
        %v1120 = vadd.f32 0.0, %v1119
        %v1121 = vpop.f32.mrb[0].mxu0
        %v1122 = vpop.f32.mrb[0].mxu0
        %v1123 = vadd.f32 0.0, %v1122
        %v1124 = vpop.f32.mrb[0].mxu0
        %1125 = vdwg.mxu0
        %v1128 = vunpack.c.l.b16 %v1072
        %v1129 = vunpack.c.l.b16 %v1073
        %v1130 = vpack.c.b16 %v1129, %v1128
        %1133 = vrot.lane.b32.xlu0 %v1069, 4
        %v1134 = vpop.permute.xlu0 %1133
        %1135 = vrot.lane.b32.xlu0 %v1070, 4
        %v1136 = vpop.permute.xlu0 %1135
        %v1137 = vsel %vm994, %v1134, %v1136
        %v1140 = vsel %vm207, %v1130, 0
        %1142 = vmatprep.subr.bf16.mxu0 0
        %1143 = vmatpush1.bf16.msra.mxu0 %v1137
        %1144 = vmatprep.subr.bf16.mxu0 0
        %1145 = vmatpush1.bf16.msra.mxu0 0
        %1146 = vmatprep.subr.bf16.mxu0 0
        %1147 = vmatpush1.bf16.msra.mxu0 0
        %1148 = vmatprep.subr.bf16.mxu0 0
        %1149 = vmatpush1.bf16.msra.mxu0 0
        %1150 = vmatprep.subr.bf16.mxu0 0
        %1151 = vmatpush1.bf16.msra.mxu0 0
        %1152 = vmatprep.subr.bf16.mxu0 0
        %1153 = vmatpush1.bf16.msra.mxu0 0
        %1154 = vmatprep.subr.bf16.mxu0 0
        %1155 = vmatpush1.bf16.msra.mxu0 0
        %1156 = vmatprep.subr.bf16.mxu0 0
        %1157 = vmatpush1.bf16.msra.mxu0 0
        %1158 = vmatprep.subr.bf16.mxu0 0
        %1159 = vmatpush1.bf16.msra.mxu0 0
        %1160 = vmatprep.subr.bf16.mxu0 0
        %1161 = vmatpush1.bf16.msra.mxu0 0
        %1162 = vmatprep.subr.bf16.mxu0 0
        %1163 = vmatpush1.bf16.msra.mxu0 0
        %1164 = vmatprep.subr.bf16.mxu0 0
        %1165 = vmatpush1.bf16.msra.mxu0 0
        %1166 = vmatprep.subr.bf16.mxu0 0
        %1167 = vmatpush1.bf16.msra.mxu0 0
        %1168 = vmatprep.subr.bf16.mxu0 0
        %1169 = vmatpush1.bf16.msra.mxu0 0
        %1170 = vmatprep.subr.bf16.mxu0 0
        %1171 = vmatpush1.bf16.msra.mxu0 0
        %1172 = vmatprep.subr.bf16.mxu0 0
        %1173 = vmatpush1.bf16.msra.mxu0 0
        %1174 = vmatprep.mubr.bf16.mxu0 0
        %1175 = vmatmul.mubr.bf16.gmra.mrb[0].mxu0 %v1140
        %v1176 = vpop.f32.mrb[0].mxu0
        %v1177 = vadd.f32 %v1120, %v1176
        %v1178 = vpop.f32.mrb[0].mxu0
        %v1179 = vpop.f32.mrb[0].mxu0
        %v1180 = vadd.f32 %v1123, %v1179
        %v1181 = vpop.f32.mrb[0].mxu0
        %1182 = vdwg.mxu0
        %v1183 = vld [vmem:[%s2] sm:$0xff]
        %v1184 = vld [vmem:[%s2 + $0x8] sm:$0xff]
        %1186 = vset.pattern.permute.xlu0 6
        %1187 = vperm.xlu0 %1186, %v1183
        %v1188 = vpop.permute.xlu0 %1187
        %1191 = vset.pattern.permute.xlu0 6
        %1192 = vperm.xlu0 %1191, %v1184
        %v1193 = vpop.permute.xlu0 %1192
        %v1195 = vadd.f32 %v1177, %v1188
        %v1196 = vadd.f32 %v1180, %v1193
        %vm1197 = vcmp.gt.f32.partialorder %v1195, 0.0
        %vm1198 = vcmp.gt.f32.partialorder %v1196, 0.0
        %v1199 = vmin.f32 %v1195, 0.0
        %v1200 = vmin.f32 %v1196, 0.0
        %v1201 = vmul.f32 %v1199, 1.442695
        %v1202 = vpow.pop %v1201
        %v1203 = vmul.f32 %v1200, 1.442695
        %v1204 = vpow.pop %v1203
        %v1205 = vsub.f32 %v1202, 1.0
        %v1206 = vsub.f32 %v1204, 1.0
        %v1207 = vsel %vm1197, %v1195, %v1205
        %v1208 = vsel %vm1198, %v1196, %v1206
        %v1209 = vld [vmem:[#allocation3] sm:$0xff]
        %v1210 = vunpack.c.l.bf16 %v1209
        %v1211 = vunpack.c.h.bf16 %v1209
        %v1212 = vadd.f32 %v1207, %v1210
        %v1213 = vadd.f32 %v1208, %v1211
        %vm1214 = vcmp.gt.f32.partialorder %v1212, 0.0
        %vm1215 = vcmp.gt.f32.partialorder %v1213, 0.0
        %v1216 = vmin.f32 %v1212, 0.0
        %v1217 = vmin.f32 %v1213, 0.0
        %v1218 = vmul.f32 %v1216, 1.442695
        %v1219 = vpow.pop %v1218
        %v1220 = vmul.f32 %v1217, 1.442695
        %v1221 = vpow.pop %v1220
        %v1222 = vsub.f32 %v1219, 1.0
        %v1223 = vsub.f32 %v1221, 1.0
        %v1224 = vsel %vm1214, %v1212, %v1222
        %v1225 = vsel %vm1215, %v1213, %v1223
        %1226 = vst [vmem:[%s176] sm:$0xff] %v1224
        %1227 = vst [vmem:[%s176 + $0x8] sm:$0xff] %v1225
        %s1228 = sand.u32 %s94, 1
        %s1229 = scalar_lea.sflag [#allocation6], %s1228
        %s1230 = sand.u32 %s94, 1
        %s1231 = smul.addr %s1230, 16
        %s1232 = scalar_lea.vmem [#allocation7], %s1231
        // Predicated region
        $region37: #{tpu_custom_call.1} parent=31 // pred_check
          %p1233 = pneg %p104
        $region38: #{tpu_custom_call.1} parent=31 // pred_check_branch
          %1235 = sbr.rel (%p1233) target = $region40
        $region39: #{tpu_custom_call.1} parent=31 // pred_region
          %s1237 = ssub.s32 256, 256
          %1238 = vsyncadd %s1229, %s1237
          %s1239 = smul.addr %s18, 2
          %s1240 = smul.addr %s1239, 128
          %s1241 = scalar_lea.hbm %s3, %s1240
          %s1242 = sshll.u32 %s1232, 4
          %s1243 = int_to_ptr.vmem [resolvable:$true] %s1242
          %1248 = dma.vmem_to_hbm [thread:$0]  %s1243, 256, %s1241, %s1229, 128, 128, 8
        $region40: #{tpu_custom_call.1} parent=31 // pred_fallthru
          _
      $region32: #{tpu_custom_call.1} parent=5 // pred_fallthru
        _
      %p1249 = scmp.le.s32.totalorder 2, %s13
      // Predicated region
      $region41: #{tpu_custom_call.1} parent=5 // pred_check
        %p1250 = pneg %p1249
      $region42: #{tpu_custom_call.1} parent=5 // pred_check_branch
        %1252 = sbr.rel (%p1250) target = $region44
      $region43: #{tpu_custom_call.1} parent=5 // pred_region
        %s1253 = ssub.s32 %s13, 2
        // Predicated region
        $region45: #{tpu_custom_call.1} parent=43 // pred_check
          %p1254 = pneg %p110
        $region46: #{tpu_custom_call.1} parent=43 // pred_check_branch
          %1256 = sbr.rel (%p1254) target = $region48
        $region47: #{tpu_custom_call.1} parent=43 // pred_region
          %s1257 = sand.u32 %s95, 1
          %s1258 = scalar_lea.sflag [#allocation6], %s1257
          %s1259 = sand.u32 %s95, 1
          %s1260 = smul.addr %s1259, 16
          %s1261 = scalar_lea.vmem [#allocation7], %s1260
          %1262 = dma.done %s1258, 256
        $region48: #{tpu_custom_call.1} parent=43 // pred_fallthru
          _
      $region44: #{tpu_custom_call.1} parent=5 // pred_fallthru
        _
    $region6: #{tpu_custom_call.1} parent=1 // loop_footer
      %s17 = sadd.s32 1, %s13
    $region7: #{tpu_custom_call.1} parent=1 // loop_footer_branch
      %12 = sbr.rel target = $region3
    $region8: #{tpu_custom_call.1} parent=1 // loop_exit
      _
    %1263 = vsyncpa [#allocation5], 1
    %s1264 = scalar_lea.sflag [#allocation5], 1
    %1265 = vsyncpa %s1264, 1
    %1266 = vsyncpa [#allocation6], 1
    %s1267 = scalar_lea.sflag [#allocation6], 1
    %1268 = vsyncpa %s1267, 1

</llo_original>
